<compile_context>
chip_gen: v6e
topology: v6e:2x2x1
jax: 0.10.0
libtpu: 0.0.40
codegen_flags: <defaults>
</compile_context>

<pallas_src>
import jax
import jax.numpy as jnp
from jax.experimental import pallas as pl

# ---------------- model dimensions (small, deterministic) ----------------
B, S = 2, 8                    # batch, sequence length
VOCAB, E, H = 50, 32, 32       # vocab size, embed dim, LSTM hidden dim (per direction)
D = 2 * H                      # BiLSTM output width = 64
NUM_HEADS = 4
HEAD_DIM = D // NUM_HEADS      # 16
NUM_TAGS = 8
GATES = 4 * H                  # 128 gate columns per direction (PyTorch order i,f,g,o)


# ---------------------------------------------------------------------------
# Single fused kernel (no grid: whole problem fits trivially in VMEM/registers)
#   x_ref:    [S*B, E]  time-major embedded tokens (row = t*B + b)
#   wih_ref:  [E, 8H]   forward gates in cols [0:4H], backward in [4H:8H]
#   whh_*:    [H, 4H]   per-direction recurrent weights
#   b_ref:    [1, 8H]   combined bias_ih + bias_hh, both directions
#   wqkv/bqkv:[D, 3D]/[1, 3D]   wo/bo: [D, D]/[1, D]
#   gamma/beta: [1, D]  fcw/fcb: [D, NUM_TAGS]/[1, NUM_TAGS]
#   outputs: emissions [B,S,T], layer-normed attn_out [B,S,D], attn_w [B,NH,S,S]
# ---------------------------------------------------------------------------
def fused_forward_kernel(x_ref, wih_ref, whh_f_ref, whh_b_ref, b_ref,
                         wqkv_ref, bqkv_ref, wo_ref, bo_ref,
                         gamma_ref, beta_ref, fcw_ref, fcb_ref,
                         emis_ref, attn_out_ref, attn_w_ref):
    f32 = jnp.float32
    x = x_ref[...]                                                    # [S*B, E]

    # ---- BiLSTM: hoisted input projection (one 256-wide matmul) -------------
    gx = jnp.dot(x, wih_ref[...], preferred_element_type=f32) + b_ref[...]   # [S*B, 8H]
    whh_f = whh_f_ref[...]
    whh_b = whh_b_ref[...]

    def lstm_cell(gates, c):                       # PyTorch gate order i, f, g, o
        i = jax.nn.sigmoid(gates[:, 0 * H:1 * H])
        f = jax.nn.sigmoid(gates[:, 1 * H:2 * H])
        g = jnp.tanh(gates[:, 2 * H:3 * H])
        o = jax.nn.sigmoid(gates[:, 3 * H:4 * H])
        c_new = f * c + i * g
        h_new = o * jnp.tanh(c_new)
        return h_new, c_new

    h_f = jnp.zeros((B, H), f32)
    c_f = jnp.zeros((B, H), f32)
    h_b = jnp.zeros((B, H), f32)
    c_b = jnp.zeros((B, H), f32)
    hs_f = [None] * S
    hs_b = [None] * S
    # Fully unrolled, fwd/bwd interleaved; static indices -> register-only slices.
    for t in range(S):
        tb = S - 1 - t
        g_f = gx[t * B:(t + 1) * B, 0:GATES] + \
            jnp.dot(h_f, whh_f, preferred_element_type=f32)
        g_b = gx[tb * B:(tb + 1) * B, GATES:2 * GATES] + \
            jnp.dot(h_b, whh_b, preferred_element_type=f32)
        h_f, c_f = lstm_cell(g_f, c_f)
        h_b, c_b = lstm_cell(g_b, c_b)
        hs_f[t] = h_f
        hs_b[tb] = h_b

    # Assemble BiLSTM output directly in the consumed [B*S, D] layout (fwd | bwd),
    # without any HBM round trip.  Row order: b*S + s (batch-major).
    lstm_rows = []
    for b in range(B):
        fb = jnp.concatenate([hs_f[s][b:b + 1, :] for s in range(S)], axis=0)  # [S, H]
        bb = jnp.concatenate([hs_b[s][b:b + 1, :] for s in range(S)], axis=0)  # [S, H]
        lstm_rows.append(jnp.concatenate([fb, bb], axis=1))                    # [S, D]
    lstm_flat = jnp.concatenate(lstm_rows, axis=0)                             # [B*S, D]

    # ---- Multi-head self-attention: fused QKV projection, heads batched -----
    qkv = jnp.dot(lstm_flat, wqkv_ref[...], preferred_element_type=f32) + bqkv_ref[...]
    q = qkv[:, 0 * D:1 * D]
    k = qkv[:, 1 * D:2 * D]
    v = qkv[:, 2 * D:3 * D]
    scale = 1.0 / (HEAD_DIM ** 0.5)

    ctx_parts = []
    for b in range(B):
        r0, r1 = b * S, (b + 1) * S
        qh = jnp.transpose(q[r0:r1].reshape(S, NUM_HEADS, HEAD_DIM), (1, 0, 2))  # [NH,S,HD]
        kh = jnp.transpose(k[r0:r1].reshape(S, NUM_HEADS, HEAD_DIM), (1, 0, 2))
        vh = jnp.transpose(v[r0:r1].reshape(S, NUM_HEADS, HEAD_DIM), (1, 0, 2))
        scores = jnp.einsum('hqd,hkd->hqk', qh, kh,
                            preferred_element_type=f32) * scale                  # [NH,S,S]
        scores = scores - jnp.max(scores, axis=-1, keepdims=True)
        e = jnp.exp(scores)
        w = e / jnp.sum(e, axis=-1, keepdims=True)                                # softmax
        attn_w_ref[b] = w                                          # one store per batch
        ctx = jnp.einsum('hqk,hkd->hqd', w, vh, preferred_element_type=f32)      # [NH,S,HD]
        ctx_parts.append(jnp.transpose(ctx, (1, 0, 2)).reshape(S, D))            # heads merged
    context = jnp.concatenate(ctx_parts, axis=0)                                  # [B*S, D]
    attn_proj = jnp.dot(context, wo_ref[...], preferred_element_type=f32) + bo_ref[...]

    # ---- Shared LayerNorm (single pass over both operands) ------------------
    z = jnp.concatenate([lstm_flat, attn_proj], axis=0)                           # [2*B*S, D]
    mu = jnp.mean(z, axis=-1, keepdims=True)
    var = jnp.mean(jnp.square(z - mu), axis=-1, keepdims=True)
    zn = (z - mu) * jax.lax.rsqrt(var + 1e-5) * gamma_ref[...] + beta_ref[...]
    ln_lstm = zn[0:B * S]
    ln_attn = zn[B * S:2 * B * S]

    # dropout(p=0.5) == identity in eval mode; emissions = fc(LayerNorm(lstm_out))
    emis = jnp.dot(ln_lstm, fcw_ref[...], preferred_element_type=f32) + fcb_ref[...]
    for b in range(B):
        emis_ref[b] = emis[b * S:(b + 1) * S, :]
        attn_out_ref[b] = ln_attn[b * S:(b + 1) * S, :]


# ---------------------------------------------------------------------------
# Wrapper: embedding gather (single XLA op) + one fused pallas_call
# ---------------------------------------------------------------------------
def bilstm_crf_attn_forward(tokens, p):
    # Embedding lookup, emitted directly in time-major flat order (row = t*B + b).
    x_flat = jnp.take(p["emb"], tokens.T.reshape(-1), axis=0)        # [S*B, E]

    emissions, attn_out, attn_w = pl.pallas_call(
        fused_forward_kernel,
        out_shape=(
            jax.ShapeDtypeStruct((B, S, NUM_TAGS), jnp.float32),
            jax.ShapeDtypeStruct((B, S, D), jnp.float32),
            jax.ShapeDtypeStruct((B, NUM_HEADS, S, S), jnp.float32),
        ),
    )(x_flat, p["wih"], p["whh_f"], p["whh_b"], p["b"],
      p["wqkv"], p["bqkv"], p["wo"], p["bo"], p["gamma"], p["beta"],
      p["fcw"], p["fcb"])
    return emissions, attn_out, attn_w


# ---------------------------------------------------------------------------
# Deterministic synthetic parameters.  Weights are stored pre-fused in the
# layouts the kernel consumes (a real PyTorch checkpoint would be converted by
# transposing and concatenating: wih = [W_ih_f^T | W_ih_b^T], b = b_ih + b_hh
# for both directions, wqkv = [Wq^T | Wk^T | Wv^T]).
# ---------------------------------------------------------------------------
def init_params(key):
    ks = jax.random.split(key, 12)
    sc = 0.1

    def lin(k, fan_in, fan_out):
        return sc * jax.random.normal(k, (fan_in, fan_out), jnp.float32)

    p = {}
    p["emb"] = jax.random.normal(ks[0], (VOCAB, E), jnp.float32)
    # BiLSTM (gate order i,f,g,o per direction; fwd cols [0:4H], bwd cols [4H:8H])
    p["wih"] = lin(ks[1], E, 8 * H)
    p["whh_f"] = lin(ks[2], H, 4 * H)
    p["whh_b"] = lin(ks[3], H, 4 * H)
    p["b"] = sc * jax.random.normal(ks[4], (1, 8 * H), jnp.float32)
    # Multi-head attention over D = 2*H (shape-consistent reading of the module)
    p["wqkv"] = lin(ks[5], D, 3 * D)
    p["bqkv"] = sc * jax.random.normal(ks[6], (1, 3 * D), jnp.float32)
    p["wo"] = lin(ks[7], D, D)
    p["bo"] = sc * jax.random.normal(ks[8], (1, D), jnp.float32)
    # LayerNorm(2*H) (shared between lstm path and attention path, as in the reference)
    p["gamma"] = jnp.ones((1, D), jnp.float32)
    p["beta"] = jnp.zeros((1, D), jnp.float32)
    # fc: Linear(2*H, num_tags)
    p["fcw"] = lin(ks[9], D, NUM_TAGS)
    p["fcb"] = sc * jax.random.normal(ks[10], (1, NUM_TAGS), jnp.float32)
    return p


if __name__ == "__main__":
    key = jax.random.PRNGKey(0)
    pkey, tkey = jax.random.split(key)
    params = init_params(pkey)
    tokens = jax.random.randint(tkey, (B, S), 0, VOCAB, dtype=jnp.int32)

    fwd = jax.jit(bilstm_crf_attn_forward)
    emissions, attn_out, attn_w = fwd(tokens, params)
    jax.block_until_ready((emissions, attn_out, attn_w))

    assert emissions.shape == (B, S, NUM_TAGS)
    assert attn_out.shape == (B, S, D)
    assert attn_w.shape == (B, NUM_HEADS, S, S)
    assert bool(jnp.all(jnp.isfinite(emissions)))
    assert bool(jnp.all(jnp.isfinite(attn_out)))
    # softmax rows must sum to 1
    assert bool(jnp.allclose(jnp.sum(attn_w, axis=-1), 1.0, atol=1e-4))

    print("KERNEL_OK")
</pallas_src>

<mosaic_0001>
module attributes {stable_mosaic.version = 11 : i64} {
  func.func @fused_forward_kernel(%arg0: memref<16x32xf32, #tpu.memory_space<vmem>>, %arg1: memref<32x256xf32, #tpu.memory_space<vmem>>, %arg2: memref<32x128xf32, #tpu.memory_space<vmem>>, %arg3: memref<32x128xf32, #tpu.memory_space<vmem>>, %arg4: memref<1x256xf32, #tpu.memory_space<vmem>>, %arg5: memref<64x192xf32, #tpu.memory_space<vmem>>, %arg6: memref<1x192xf32, #tpu.memory_space<vmem>>, %arg7: memref<64x64xf32, #tpu.memory_space<vmem>>, %arg8: memref<1x64xf32, #tpu.memory_space<vmem>>, %arg9: memref<1x64xf32, #tpu.memory_space<vmem>>, %arg10: memref<1x64xf32, #tpu.memory_space<vmem>>, %arg11: memref<64x8xf32, #tpu.memory_space<vmem>>, %arg12: memref<1x8xf32, #tpu.memory_space<vmem>>, %arg13: memref<2x8x8xf32, #tpu.memory_space<vmem>>, %arg14: memref<2x8x64xf32, #tpu.memory_space<vmem>>, %arg15: memref<2x4x8x8xf32, #tpu.memory_space<vmem>>) attributes {dimension_semantics = [], scalar_prefetch = 0 : i64, scratch_operands = 0 : i64, tpu.core_type = #tpu.core_type<tc>} {
    %c0 = arith.constant 0 : index
    %c0_0 = arith.constant 0 : index
    %0 = vector.load %arg0[%c0, %c0_0] : memref<16x32xf32, #tpu.memory_space<vmem>>, vector<16x32xf32>
    %c0_1 = arith.constant 0 : index
    %c0_2 = arith.constant 0 : index
    %1 = vector.load %arg1[%c0_1, %c0_2] : memref<32x256xf32, #tpu.memory_space<vmem>>, vector<32x256xf32>
    %cst = arith.constant dense<0.000000e+00> : vector<16x256xf32>
    %2 = tpu.matmul %0, %1, %cst {dimension_numbers = #tpu.dot_dimension_numbers<[1], [0], [0], [1], [0, 0, 1, 1], [], []>} : vector<16x32xf32>, vector<32x256xf32>, vector<16x256xf32> -> vector<16x256xf32>
    %c0_3 = arith.constant 0 : index
    %c0_4 = arith.constant 0 : index
    %3 = vector.load %arg4[%c0_3, %c0_4] : memref<1x256xf32, #tpu.memory_space<vmem>>, vector<1x256xf32>
    %4 = vector.broadcast %3 : vector<1x256xf32> to vector<16x256xf32>
    %5 = arith.addf %2, %4 : vector<16x256xf32>
    %c0_5 = arith.constant 0 : index
    %c0_6 = arith.constant 0 : index
    %6 = vector.load %arg2[%c0_5, %c0_6] : memref<32x128xf32, #tpu.memory_space<vmem>>, vector<32x128xf32>
    %c0_7 = arith.constant 0 : index
    %c0_8 = arith.constant 0 : index
    %7 = vector.load %arg3[%c0_7, %c0_8] : memref<32x128xf32, #tpu.memory_space<vmem>>, vector<32x128xf32>
    %cst_9 = arith.constant 0.000000e+00 : f32
    %8 = vector.broadcast %cst_9 : f32 to vector<2x32xf32>
    %cst_10 = arith.constant 0.000000e+00 : f32
    %9 = vector.broadcast %cst_10 : f32 to vector<2x32xf32>
    %cst_11 = arith.constant 0.000000e+00 : f32
    %10 = vector.broadcast %cst_11 : f32 to vector<2x32xf32>
    %cst_12 = arith.constant 0.000000e+00 : f32
    %11 = vector.broadcast %cst_12 : f32 to vector<2x32xf32>
    %12 = vector.extract_strided_slice %5 {offsets = [0, 0], sizes = [2, 128], strides = [1, 1]} : vector<16x256xf32> to vector<2x128xf32>
    %cst_13 = arith.constant dense<0.000000e+00> : vector<2x128xf32>
    %13 = tpu.matmul %8, %6, %cst_13 {dimension_numbers = #tpu.dot_dimension_numbers<[1], [0], [0], [1], [0, 0, 1, 1], [], []>} : vector<2x32xf32>, vector<32x128xf32>, vector<2x128xf32> -> vector<2x128xf32>
    %14 = arith.addf %12, %13 : vector<2x128xf32>
    %15 = vector.extract_strided_slice %5 {offsets = [14, 128], sizes = [2, 128], strides = [1, 1]} : vector<16x256xf32> to vector<2x128xf32>
    %cst_14 = arith.constant dense<0.000000e+00> : vector<2x128xf32>
    %16 = tpu.matmul %10, %7, %cst_14 {dimension_numbers = #tpu.dot_dimension_numbers<[1], [0], [0], [1], [0, 0, 1, 1], [], []>} : vector<2x32xf32>, vector<32x128xf32>, vector<2x128xf32> -> vector<2x128xf32>
    %17 = arith.addf %15, %16 : vector<2x128xf32>
    %18 = vector.extract_strided_slice %14 {offsets = [0, 0], sizes = [2, 32], strides = [1, 1]} : vector<2x128xf32> to vector<2x32xf32>
    %19 = arith.negf %18 : vector<2x32xf32>
    %20 = math.exp %19 : vector<2x32xf32>
    %cst_15 = arith.constant 1.000000e+00 : f32
    %21 = vector.broadcast %cst_15 : f32 to vector<2x32xf32>
    %22 = arith.addf %21, %20 : vector<2x32xf32>
    %23 = arith.divf %21, %22 : vector<2x32xf32>
    %24 = vector.extract_strided_slice %14 {offsets = [0, 32], sizes = [2, 32], strides = [1, 1]} : vector<2x128xf32> to vector<2x32xf32>
    %25 = arith.negf %24 : vector<2x32xf32>
    %26 = math.exp %25 : vector<2x32xf32>
    %cst_16 = arith.constant 1.000000e+00 : f32
    %27 = vector.broadcast %cst_16 : f32 to vector<2x32xf32>
    %28 = arith.addf %27, %26 : vector<2x32xf32>
    %29 = arith.divf %27, %28 : vector<2x32xf32>
    %30 = vector.extract_strided_slice %14 {offsets = [0, 64], sizes = [2, 32], strides = [1, 1]} : vector<2x128xf32> to vector<2x32xf32>
    %31 = math.tanh %30 : vector<2x32xf32>
    %32 = vector.extract_strided_slice %14 {offsets = [0, 96], sizes = [2, 32], strides = [1, 1]} : vector<2x128xf32> to vector<2x32xf32>
    %33 = arith.negf %32 : vector<2x32xf32>
    %34 = math.exp %33 : vector<2x32xf32>
    %cst_17 = arith.constant 1.000000e+00 : f32
    %35 = vector.broadcast %cst_17 : f32 to vector<2x32xf32>
    %36 = arith.addf %35, %34 : vector<2x32xf32>
    %37 = arith.divf %35, %36 : vector<2x32xf32>
    %38 = arith.mulf %29, %9 : vector<2x32xf32>
    %39 = arith.mulf %23, %31 : vector<2x32xf32>
    %40 = arith.addf %38, %39 : vector<2x32xf32>
    %41 = math.tanh %40 : vector<2x32xf32>
    %42 = arith.mulf %37, %41 : vector<2x32xf32>
    %43 = vector.extract_strided_slice %17 {offsets = [0, 0], sizes = [2, 32], strides = [1, 1]} : vector<2x128xf32> to vector<2x32xf32>
    %44 = arith.negf %43 : vector<2x32xf32>
    %45 = math.exp %44 : vector<2x32xf32>
    %cst_18 = arith.constant 1.000000e+00 : f32
    %46 = vector.broadcast %cst_18 : f32 to vector<2x32xf32>
    %47 = arith.addf %46, %45 : vector<2x32xf32>
    %48 = arith.divf %46, %47 : vector<2x32xf32>
    %49 = vector.extract_strided_slice %17 {offsets = [0, 32], sizes = [2, 32], strides = [1, 1]} : vector<2x128xf32> to vector<2x32xf32>
    %50 = arith.negf %49 : vector<2x32xf32>
    %51 = math.exp %50 : vector<2x32xf32>
    %cst_19 = arith.constant 1.000000e+00 : f32
    %52 = vector.broadcast %cst_19 : f32 to vector<2x32xf32>
    %53 = arith.addf %52, %51 : vector<2x32xf32>
    %54 = arith.divf %52, %53 : vector<2x32xf32>
    %55 = vector.extract_strided_slice %17 {offsets = [0, 64], sizes = [2, 32], strides = [1, 1]} : vector<2x128xf32> to vector<2x32xf32>
    %56 = math.tanh %55 : vector<2x32xf32>
    %57 = vector.extract_strided_slice %17 {offsets = [0, 96], sizes = [2, 32], strides = [1, 1]} : vector<2x128xf32> to vector<2x32xf32>
    %58 = arith.negf %57 : vector<2x32xf32>
    %59 = math.exp %58 : vector<2x32xf32>
    %cst_20 = arith.constant 1.000000e+00 : f32
    %60 = vector.broadcast %cst_20 : f32 to vector<2x32xf32>
    %61 = arith.addf %60, %59 : vector<2x32xf32>
    %62 = arith.divf %60, %61 : vector<2x32xf32>
    %63 = arith.mulf %54, %11 : vector<2x32xf32>
    %64 = arith.mulf %48, %56 : vector<2x32xf32>
    %65 = arith.addf %63, %64 : vector<2x32xf32>
    %66 = math.tanh %65 : vector<2x32xf32>
    %67 = arith.mulf %62, %66 : vector<2x32xf32>
    %68 = vector.extract_strided_slice %5 {offsets = [2, 0], sizes = [2, 128], strides = [1, 1]} : vector<16x256xf32> to vector<2x128xf32>
    %cst_21 = arith.constant dense<0.000000e+00> : vector<2x128xf32>
    %69 = tpu.matmul %42, %6, %cst_21 {dimension_numbers = #tpu.dot_dimension_numbers<[1], [0], [0], [1], [0, 0, 1, 1], [], []>} : vector<2x32xf32>, vector<32x128xf32>, vector<2x128xf32> -> vector<2x128xf32>
    %70 = arith.addf %68, %69 : vector<2x128xf32>
    %71 = vector.extract_strided_slice %5 {offsets = [12, 128], sizes = [2, 128], strides = [1, 1]} : vector<16x256xf32> to vector<2x128xf32>
    %cst_22 = arith.constant dense<0.000000e+00> : vector<2x128xf32>
    %72 = tpu.matmul %67, %7, %cst_22 {dimension_numbers = #tpu.dot_dimension_numbers<[1], [0], [0], [1], [0, 0, 1, 1], [], []>} : vector<2x32xf32>, vector<32x128xf32>, vector<2x128xf32> -> vector<2x128xf32>
    %73 = arith.addf %71, %72 : vector<2x128xf32>
    %74 = vector.extract_strided_slice %70 {offsets = [0, 0], sizes = [2, 32], strides = [1, 1]} : vector<2x128xf32> to vector<2x32xf32>
    %75 = arith.negf %74 : vector<2x32xf32>
    %76 = math.exp %75 : vector<2x32xf32>
    %cst_23 = arith.constant 1.000000e+00 : f32
    %77 = vector.broadcast %cst_23 : f32 to vector<2x32xf32>
    %78 = arith.addf %77, %76 : vector<2x32xf32>
    %79 = arith.divf %77, %78 : vector<2x32xf32>
    %80 = vector.extract_strided_slice %70 {offsets = [0, 32], sizes = [2, 32], strides = [1, 1]} : vector<2x128xf32> to vector<2x32xf32>
    %81 = arith.negf %80 : vector<2x32xf32>
    %82 = math.exp %81 : vector<2x32xf32>
    %cst_24 = arith.constant 1.000000e+00 : f32
    %83 = vector.broadcast %cst_24 : f32 to vector<2x32xf32>
    %84 = arith.addf %83, %82 : vector<2x32xf32>
    %85 = arith.divf %83, %84 : vector<2x32xf32>
    %86 = vector.extract_strided_slice %70 {offsets = [0, 64], sizes = [2, 32], strides = [1, 1]} : vector<2x128xf32> to vector<2x32xf32>
    %87 = math.tanh %86 : vector<2x32xf32>
    %88 = vector.extract_strided_slice %70 {offsets = [0, 96], sizes = [2, 32], strides = [1, 1]} : vector<2x128xf32> to vector<2x32xf32>
    %89 = arith.negf %88 : vector<2x32xf32>
    %90 = math.exp %89 : vector<2x32xf32>
    %cst_25 = arith.constant 1.000000e+00 : f32
    %91 = vector.broadcast %cst_25 : f32 to vector<2x32xf32>
    %92 = arith.addf %91, %90 : vector<2x32xf32>
    %93 = arith.divf %91, %92 : vector<2x32xf32>
    %94 = arith.mulf %85, %40 : vector<2x32xf32>
    %95 = arith.mulf %79, %87 : vector<2x32xf32>
    %96 = arith.addf %94, %95 : vector<2x32xf32>
    %97 = math.tanh %96 : vector<2x32xf32>
    %98 = arith.mulf %93, %97 : vector<2x32xf32>
    %99 = vector.extract_strided_slice %73 {offsets = [0, 0], sizes = [2, 32], strides = [1, 1]} : vector<2x128xf32> to vector<2x32xf32>
    %100 = arith.negf %99 : vector<2x32xf32>
    %101 = math.exp %100 : vector<2x32xf32>
    %cst_26 = arith.constant 1.000000e+00 : f32
    %102 = vector.broadcast %cst_26 : f32 to vector<2x32xf32>
    %103 = arith.addf %102, %101 : vector<2x32xf32>
    %104 = arith.divf %102, %103 : vector<2x32xf32>
    %105 = vector.extract_strided_slice %73 {offsets = [0, 32], sizes = [2, 32], strides = [1, 1]} : vector<2x128xf32> to vector<2x32xf32>
    %106 = arith.negf %105 : vector<2x32xf32>
    %107 = math.exp %106 : vector<2x32xf32>
    %cst_27 = arith.constant 1.000000e+00 : f32
    %108 = vector.broadcast %cst_27 : f32 to vector<2x32xf32>
    %109 = arith.addf %108, %107 : vector<2x32xf32>
    %110 = arith.divf %108, %109 : vector<2x32xf32>
    %111 = vector.extract_strided_slice %73 {offsets = [0, 64], sizes = [2, 32], strides = [1, 1]} : vector<2x128xf32> to vector<2x32xf32>
    %112 = math.tanh %111 : vector<2x32xf32>
    %113 = vector.extract_strided_slice %73 {offsets = [0, 96], sizes = [2, 32], strides = [1, 1]} : vector<2x128xf32> to vector<2x32xf32>
    %114 = arith.negf %113 : vector<2x32xf32>
    %115 = math.exp %114 : vector<2x32xf32>
    %cst_28 = arith.constant 1.000000e+00 : f32
    %116 = vector.broadcast %cst_28 : f32 to vector<2x32xf32>
    %117 = arith.addf %116, %115 : vector<2x32xf32>
    %118 = arith.divf %116, %117 : vector<2x32xf32>
    %119 = arith.mulf %110, %65 : vector<2x32xf32>
    %120 = arith.mulf %104, %112 : vector<2x32xf32>
    %121 = arith.addf %119, %120 : vector<2x32xf32>
    %122 = math.tanh %121 : vector<2x32xf32>
    %123 = arith.mulf %118, %122 : vector<2x32xf32>
    %124 = vector.extract_strided_slice %5 {offsets = [4, 0], sizes = [2, 128], strides = [1, 1]} : vector<16x256xf32> to vector<2x128xf32>
    %cst_29 = arith.constant dense<0.000000e+00> : vector<2x128xf32>
    %125 = tpu.matmul %98, %6, %cst_29 {dimension_numbers = #tpu.dot_dimension_numbers<[1], [0], [0], [1], [0, 0, 1, 1], [], []>} : vector<2x32xf32>, vector<32x128xf32>, vector<2x128xf32> -> vector<2x128xf32>
    %126 = arith.addf %124, %125 : vector<2x128xf32>
    %127 = vector.extract_strided_slice %5 {offsets = [10, 128], sizes = [2, 128], strides = [1, 1]} : vector<16x256xf32> to vector<2x128xf32>
    %cst_30 = arith.constant dense<0.000000e+00> : vector<2x128xf32>
    %128 = tpu.matmul %123, %7, %cst_30 {dimension_numbers = #tpu.dot_dimension_numbers<[1], [0], [0], [1], [0, 0, 1, 1], [], []>} : vector<2x32xf32>, vector<32x128xf32>, vector<2x128xf32> -> vector<2x128xf32>
    %129 = arith.addf %127, %128 : vector<2x128xf32>
    %130 = vector.extract_strided_slice %126 {offsets = [0, 0], sizes = [2, 32], strides = [1, 1]} : vector<2x128xf32> to vector<2x32xf32>
    %131 = arith.negf %130 : vector<2x32xf32>
    %132 = math.exp %131 : vector<2x32xf32>
    %cst_31 = arith.constant 1.000000e+00 : f32
    %133 = vector.broadcast %cst_31 : f32 to vector<2x32xf32>
    %134 = arith.addf %133, %132 : vector<2x32xf32>
    %135 = arith.divf %133, %134 : vector<2x32xf32>
    %136 = vector.extract_strided_slice %126 {offsets = [0, 32], sizes = [2, 32], strides = [1, 1]} : vector<2x128xf32> to vector<2x32xf32>
    %137 = arith.negf %136 : vector<2x32xf32>
    %138 = math.exp %137 : vector<2x32xf32>
    %cst_32 = arith.constant 1.000000e+00 : f32
    %139 = vector.broadcast %cst_32 : f32 to vector<2x32xf32>
    %140 = arith.addf %139, %138 : vector<2x32xf32>
    %141 = arith.divf %139, %140 : vector<2x32xf32>
    %142 = vector.extract_strided_slice %126 {offsets = [0, 64], sizes = [2, 32], strides = [1, 1]} : vector<2x128xf32> to vector<2x32xf32>
    %143 = math.tanh %142 : vector<2x32xf32>
    %144 = vector.extract_strided_slice %126 {offsets = [0, 96], sizes = [2, 32], strides = [1, 1]} : vector<2x128xf32> to vector<2x32xf32>
    %145 = arith.negf %144 : vector<2x32xf32>
    %146 = math.exp %145 : vector<2x32xf32>
    %cst_33 = arith.constant 1.000000e+00 : f32
    %147 = vector.broadcast %cst_33 : f32 to vector<2x32xf32>
    %148 = arith.addf %147, %146 : vector<2x32xf32>
    %149 = arith.divf %147, %148 : vector<2x32xf32>
    %150 = arith.mulf %141, %96 : vector<2x32xf32>
    %151 = arith.mulf %135, %143 : vector<2x32xf32>
    %152 = arith.addf %150, %151 : vector<2x32xf32>
    %153 = math.tanh %152 : vector<2x32xf32>
    %154 = arith.mulf %149, %153 : vector<2x32xf32>
    %155 = vector.extract_strided_slice %129 {offsets = [0, 0], sizes = [2, 32], strides = [1, 1]} : vector<2x128xf32> to vector<2x32xf32>
    %156 = arith.negf %155 : vector<2x32xf32>
    %157 = math.exp %156 : vector<2x32xf32>
    %cst_34 = arith.constant 1.000000e+00 : f32
    %158 = vector.broadcast %cst_34 : f32 to vector<2x32xf32>
    %159 = arith.addf %158, %157 : vector<2x32xf32>
    %160 = arith.divf %158, %159 : vector<2x32xf32>
    %161 = vector.extract_strided_slice %129 {offsets = [0, 32], sizes = [2, 32], strides = [1, 1]} : vector<2x128xf32> to vector<2x32xf32>
    %162 = arith.negf %161 : vector<2x32xf32>
    %163 = math.exp %162 : vector<2x32xf32>
    %cst_35 = arith.constant 1.000000e+00 : f32
    %164 = vector.broadcast %cst_35 : f32 to vector<2x32xf32>
    %165 = arith.addf %164, %163 : vector<2x32xf32>
    %166 = arith.divf %164, %165 : vector<2x32xf32>
    %167 = vector.extract_strided_slice %129 {offsets = [0, 64], sizes = [2, 32], strides = [1, 1]} : vector<2x128xf32> to vector<2x32xf32>
    %168 = math.tanh %167 : vector<2x32xf32>
    %169 = vector.extract_strided_slice %129 {offsets = [0, 96], sizes = [2, 32], strides = [1, 1]} : vector<2x128xf32> to vector<2x32xf32>
    %170 = arith.negf %169 : vector<2x32xf32>
    %171 = math.exp %170 : vector<2x32xf32>
    %cst_36 = arith.constant 1.000000e+00 : f32
    %172 = vector.broadcast %cst_36 : f32 to vector<2x32xf32>
    %173 = arith.addf %172, %171 : vector<2x32xf32>
    %174 = arith.divf %172, %173 : vector<2x32xf32>
    %175 = arith.mulf %166, %121 : vector<2x32xf32>
    %176 = arith.mulf %160, %168 : vector<2x32xf32>
    %177 = arith.addf %175, %176 : vector<2x32xf32>
    %178 = math.tanh %177 : vector<2x32xf32>
    %179 = arith.mulf %174, %178 : vector<2x32xf32>
    %180 = vector.extract_strided_slice %5 {offsets = [6, 0], sizes = [2, 128], strides = [1, 1]} : vector<16x256xf32> to vector<2x128xf32>
    %cst_37 = arith.constant dense<0.000000e+00> : vector<2x128xf32>
    %181 = tpu.matmul %154, %6, %cst_37 {dimension_numbers = #tpu.dot_dimension_numbers<[1], [0], [0], [1], [0, 0, 1, 1], [], []>} : vector<2x32xf32>, vector<32x128xf32>, vector<2x128xf32> -> vector<2x128xf32>
    %182 = arith.addf %180, %181 : vector<2x128xf32>
    %183 = vector.extract_strided_slice %5 {offsets = [8, 128], sizes = [2, 128], strides = [1, 1]} : vector<16x256xf32> to vector<2x128xf32>
    %cst_38 = arith.constant dense<0.000000e+00> : vector<2x128xf32>
    %184 = tpu.matmul %179, %7, %cst_38 {dimension_numbers = #tpu.dot_dimension_numbers<[1], [0], [0], [1], [0, 0, 1, 1], [], []>} : vector<2x32xf32>, vector<32x128xf32>, vector<2x128xf32> -> vector<2x128xf32>
    %185 = arith.addf %183, %184 : vector<2x128xf32>
    %186 = vector.extract_strided_slice %182 {offsets = [0, 0], sizes = [2, 32], strides = [1, 1]} : vector<2x128xf32> to vector<2x32xf32>
    %187 = arith.negf %186 : vector<2x32xf32>
    %188 = math.exp %187 : vector<2x32xf32>
    %cst_39 = arith.constant 1.000000e+00 : f32
    %189 = vector.broadcast %cst_39 : f32 to vector<2x32xf32>
    %190 = arith.addf %189, %188 : vector<2x32xf32>
    %191 = arith.divf %189, %190 : vector<2x32xf32>
    %192 = vector.extract_strided_slice %182 {offsets = [0, 32], sizes = [2, 32], strides = [1, 1]} : vector<2x128xf32> to vector<2x32xf32>
    %193 = arith.negf %192 : vector<2x32xf32>
    %194 = math.exp %193 : vector<2x32xf32>
    %cst_40 = arith.constant 1.000000e+00 : f32
    %195 = vector.broadcast %cst_40 : f32 to vector<2x32xf32>
    %196 = arith.addf %195, %194 : vector<2x32xf32>
    %197 = arith.divf %195, %196 : vector<2x32xf32>
    %198 = vector.extract_strided_slice %182 {offsets = [0, 64], sizes = [2, 32], strides = [1, 1]} : vector<2x128xf32> to vector<2x32xf32>
    %199 = math.tanh %198 : vector<2x32xf32>
    %200 = vector.extract_strided_slice %182 {offsets = [0, 96], sizes = [2, 32], strides = [1, 1]} : vector<2x128xf32> to vector<2x32xf32>
    %201 = arith.negf %200 : vector<2x32xf32>
    %202 = math.exp %201 : vector<2x32xf32>
    %cst_41 = arith.constant 1.000000e+00 : f32
    %203 = vector.broadcast %cst_41 : f32 to vector<2x32xf32>
    %204 = arith.addf %203, %202 : vector<2x32xf32>
    %205 = arith.divf %203, %204 : vector<2x32xf32>
    %206 = arith.mulf %197, %152 : vector<2x32xf32>
    %207 = arith.mulf %191, %199 : vector<2x32xf32>
    %208 = arith.addf %206, %207 : vector<2x32xf32>
    %209 = math.tanh %208 : vector<2x32xf32>
    %210 = arith.mulf %205, %209 : vector<2x32xf32>
    %211 = vector.extract_strided_slice %185 {offsets = [0, 0], sizes = [2, 32], strides = [1, 1]} : vector<2x128xf32> to vector<2x32xf32>
    %212 = arith.negf %211 : vector<2x32xf32>
    %213 = math.exp %212 : vector<2x32xf32>
    %cst_42 = arith.constant 1.000000e+00 : f32
    %214 = vector.broadcast %cst_42 : f32 to vector<2x32xf32>
    %215 = arith.addf %214, %213 : vector<2x32xf32>
    %216 = arith.divf %214, %215 : vector<2x32xf32>
    %217 = vector.extract_strided_slice %185 {offsets = [0, 32], sizes = [2, 32], strides = [1, 1]} : vector<2x128xf32> to vector<2x32xf32>
    %218 = arith.negf %217 : vector<2x32xf32>
    %219 = math.exp %218 : vector<2x32xf32>
    %cst_43 = arith.constant 1.000000e+00 : f32
    %220 = vector.broadcast %cst_43 : f32 to vector<2x32xf32>
    %221 = arith.addf %220, %219 : vector<2x32xf32>
    %222 = arith.divf %220, %221 : vector<2x32xf32>
    %223 = vector.extract_strided_slice %185 {offsets = [0, 64], sizes = [2, 32], strides = [1, 1]} : vector<2x128xf32> to vector<2x32xf32>
    %224 = math.tanh %223 : vector<2x32xf32>
    %225 = vector.extract_strided_slice %185 {offsets = [0, 96], sizes = [2, 32], strides = [1, 1]} : vector<2x128xf32> to vector<2x32xf32>
    %226 = arith.negf %225 : vector<2x32xf32>
    %227 = math.exp %226 : vector<2x32xf32>
    %cst_44 = arith.constant 1.000000e+00 : f32
    %228 = vector.broadcast %cst_44 : f32 to vector<2x32xf32>
    %229 = arith.addf %228, %227 : vector<2x32xf32>
    %230 = arith.divf %228, %229 : vector<2x32xf32>
    %231 = arith.mulf %222, %177 : vector<2x32xf32>
    %232 = arith.mulf %216, %224 : vector<2x32xf32>
    %233 = arith.addf %231, %232 : vector<2x32xf32>
    %234 = math.tanh %233 : vector<2x32xf32>
    %235 = arith.mulf %230, %234 : vector<2x32xf32>
    %236 = vector.extract_strided_slice %5 {offsets = [8, 0], sizes = [2, 128], strides = [1, 1]} : vector<16x256xf32> to vector<2x128xf32>
    %cst_45 = arith.constant dense<0.000000e+00> : vector<2x128xf32>
    %237 = tpu.matmul %210, %6, %cst_45 {dimension_numbers = #tpu.dot_dimension_numbers<[1], [0], [0], [1], [0, 0, 1, 1], [], []>} : vector<2x32xf32>, vector<32x128xf32>, vector<2x128xf32> -> vector<2x128xf32>
    %238 = arith.addf %236, %237 : vector<2x128xf32>
    %239 = vector.extract_strided_slice %5 {offsets = [6, 128], sizes = [2, 128], strides = [1, 1]} : vector<16x256xf32> to vector<2x128xf32>
    %cst_46 = arith.constant dense<0.000000e+00> : vector<2x128xf32>
    %240 = tpu.matmul %235, %7, %cst_46 {dimension_numbers = #tpu.dot_dimension_numbers<[1], [0], [0], [1], [0, 0, 1, 1], [], []>} : vector<2x32xf32>, vector<32x128xf32>, vector<2x128xf32> -> vector<2x128xf32>
    %241 = arith.addf %239, %240 : vector<2x128xf32>
    %242 = vector.extract_strided_slice %238 {offsets = [0, 0], sizes = [2, 32], strides = [1, 1]} : vector<2x128xf32> to vector<2x32xf32>
    %243 = arith.negf %242 : vector<2x32xf32>
    %244 = math.exp %243 : vector<2x32xf32>
    %cst_47 = arith.constant 1.000000e+00 : f32
    %245 = vector.broadcast %cst_47 : f32 to vector<2x32xf32>
    %246 = arith.addf %245, %244 : vector<2x32xf32>
    %247 = arith.divf %245, %246 : vector<2x32xf32>
    %248 = vector.extract_strided_slice %238 {offsets = [0, 32], sizes = [2, 32], strides = [1, 1]} : vector<2x128xf32> to vector<2x32xf32>
    %249 = arith.negf %248 : vector<2x32xf32>
    %250 = math.exp %249 : vector<2x32xf32>
    %cst_48 = arith.constant 1.000000e+00 : f32
    %251 = vector.broadcast %cst_48 : f32 to vector<2x32xf32>
    %252 = arith.addf %251, %250 : vector<2x32xf32>
    %253 = arith.divf %251, %252 : vector<2x32xf32>
    %254 = vector.extract_strided_slice %238 {offsets = [0, 64], sizes = [2, 32], strides = [1, 1]} : vector<2x128xf32> to vector<2x32xf32>
    %255 = math.tanh %254 : vector<2x32xf32>
    %256 = vector.extract_strided_slice %238 {offsets = [0, 96], sizes = [2, 32], strides = [1, 1]} : vector<2x128xf32> to vector<2x32xf32>
    %257 = arith.negf %256 : vector<2x32xf32>
    %258 = math.exp %257 : vector<2x32xf32>
    %cst_49 = arith.constant 1.000000e+00 : f32
    %259 = vector.broadcast %cst_49 : f32 to vector<2x32xf32>
    %260 = arith.addf %259, %258 : vector<2x32xf32>
    %261 = arith.divf %259, %260 : vector<2x32xf32>
    %262 = arith.mulf %253, %208 : vector<2x32xf32>
    %263 = arith.mulf %247, %255 : vector<2x32xf32>
    %264 = arith.addf %262, %263 : vector<2x32xf32>
    %265 = math.tanh %264 : vector<2x32xf32>
    %266 = arith.mulf %261, %265 : vector<2x32xf32>
    %267 = vector.extract_strided_slice %241 {offsets = [0, 0], sizes = [2, 32], strides = [1, 1]} : vector<2x128xf32> to vector<2x32xf32>
    %268 = arith.negf %267 : vector<2x32xf32>
    %269 = math.exp %268 : vector<2x32xf32>
    %cst_50 = arith.constant 1.000000e+00 : f32
    %270 = vector.broadcast %cst_50 : f32 to vector<2x32xf32>
    %271 = arith.addf %270, %269 : vector<2x32xf32>
    %272 = arith.divf %270, %271 : vector<2x32xf32>
    %273 = vector.extract_strided_slice %241 {offsets = [0, 32], sizes = [2, 32], strides = [1, 1]} : vector<2x128xf32> to vector<2x32xf32>
    %274 = arith.negf %273 : vector<2x32xf32>
    %275 = math.exp %274 : vector<2x32xf32>
    %cst_51 = arith.constant 1.000000e+00 : f32
    %276 = vector.broadcast %cst_51 : f32 to vector<2x32xf32>
    %277 = arith.addf %276, %275 : vector<2x32xf32>
    %278 = arith.divf %276, %277 : vector<2x32xf32>
    %279 = vector.extract_strided_slice %241 {offsets = [0, 64], sizes = [2, 32], strides = [1, 1]} : vector<2x128xf32> to vector<2x32xf32>
    %280 = math.tanh %279 : vector<2x32xf32>
    %281 = vector.extract_strided_slice %241 {offsets = [0, 96], sizes = [2, 32], strides = [1, 1]} : vector<2x128xf32> to vector<2x32xf32>
    %282 = arith.negf %281 : vector<2x32xf32>
    %283 = math.exp %282 : vector<2x32xf32>
    %cst_52 = arith.constant 1.000000e+00 : f32
    %284 = vector.broadcast %cst_52 : f32 to vector<2x32xf32>
    %285 = arith.addf %284, %283 : vector<2x32xf32>
    %286 = arith.divf %284, %285 : vector<2x32xf32>
    %287 = arith.mulf %278, %233 : vector<2x32xf32>
    %288 = arith.mulf %272, %280 : vector<2x32xf32>
    %289 = arith.addf %287, %288 : vector<2x32xf32>
    %290 = math.tanh %289 : vector<2x32xf32>
    %291 = arith.mulf %286, %290 : vector<2x32xf32>
    %292 = vector.extract_strided_slice %5 {offsets = [10, 0], sizes = [2, 128], strides = [1, 1]} : vector<16x256xf32> to vector<2x128xf32>
    %cst_53 = arith.constant dense<0.000000e+00> : vector<2x128xf32>
    %293 = tpu.matmul %266, %6, %cst_53 {dimension_numbers = #tpu.dot_dimension_numbers<[1], [0], [0], [1], [0, 0, 1, 1], [], []>} : vector<2x32xf32>, vector<32x128xf32>, vector<2x128xf32> -> vector<2x128xf32>
    %294 = arith.addf %292, %293 : vector<2x128xf32>
    %295 = vector.extract_strided_slice %5 {offsets = [4, 128], sizes = [2, 128], strides = [1, 1]} : vector<16x256xf32> to vector<2x128xf32>
    %cst_54 = arith.constant dense<0.000000e+00> : vector<2x128xf32>
    %296 = tpu.matmul %291, %7, %cst_54 {dimension_numbers = #tpu.dot_dimension_numbers<[1], [0], [0], [1], [0, 0, 1, 1], [], []>} : vector<2x32xf32>, vector<32x128xf32>, vector<2x128xf32> -> vector<2x128xf32>
    %297 = arith.addf %295, %296 : vector<2x128xf32>
    %298 = vector.extract_strided_slice %294 {offsets = [0, 0], sizes = [2, 32], strides = [1, 1]} : vector<2x128xf32> to vector<2x32xf32>
    %299 = arith.negf %298 : vector<2x32xf32>
    %300 = math.exp %299 : vector<2x32xf32>
    %cst_55 = arith.constant 1.000000e+00 : f32
    %301 = vector.broadcast %cst_55 : f32 to vector<2x32xf32>
    %302 = arith.addf %301, %300 : vector<2x32xf32>
    %303 = arith.divf %301, %302 : vector<2x32xf32>
    %304 = vector.extract_strided_slice %294 {offsets = [0, 32], sizes = [2, 32], strides = [1, 1]} : vector<2x128xf32> to vector<2x32xf32>
    %305 = arith.negf %304 : vector<2x32xf32>
    %306 = math.exp %305 : vector<2x32xf32>
    %cst_56 = arith.constant 1.000000e+00 : f32
    %307 = vector.broadcast %cst_56 : f32 to vector<2x32xf32>
    %308 = arith.addf %307, %306 : vector<2x32xf32>
    %309 = arith.divf %307, %308 : vector<2x32xf32>
    %310 = vector.extract_strided_slice %294 {offsets = [0, 64], sizes = [2, 32], strides = [1, 1]} : vector<2x128xf32> to vector<2x32xf32>
    %311 = math.tanh %310 : vector<2x32xf32>
    %312 = vector.extract_strided_slice %294 {offsets = [0, 96], sizes = [2, 32], strides = [1, 1]} : vector<2x128xf32> to vector<2x32xf32>
    %313 = arith.negf %312 : vector<2x32xf32>
    %314 = math.exp %313 : vector<2x32xf32>
    %cst_57 = arith.constant 1.000000e+00 : f32
    %315 = vector.broadcast %cst_57 : f32 to vector<2x32xf32>
    %316 = arith.addf %315, %314 : vector<2x32xf32>
    %317 = arith.divf %315, %316 : vector<2x32xf32>
    %318 = arith.mulf %309, %264 : vector<2x32xf32>
    %319 = arith.mulf %303, %311 : vector<2x32xf32>
    %320 = arith.addf %318, %319 : vector<2x32xf32>
    %321 = math.tanh %320 : vector<2x32xf32>
    %322 = arith.mulf %317, %321 : vector<2x32xf32>
    %323 = vector.extract_strided_slice %297 {offsets = [0, 0], sizes = [2, 32], strides = [1, 1]} : vector<2x128xf32> to vector<2x32xf32>
    %324 = arith.negf %323 : vector<2x32xf32>
    %325 = math.exp %324 : vector<2x32xf32>
    %cst_58 = arith.constant 1.000000e+00 : f32
    %326 = vector.broadcast %cst_58 : f32 to vector<2x32xf32>
    %327 = arith.addf %326, %325 : vector<2x32xf32>
    %328 = arith.divf %326, %327 : vector<2x32xf32>
    %329 = vector.extract_strided_slice %297 {offsets = [0, 32], sizes = [2, 32], strides = [1, 1]} : vector<2x128xf32> to vector<2x32xf32>
    %330 = arith.negf %329 : vector<2x32xf32>
    %331 = math.exp %330 : vector<2x32xf32>
    %cst_59 = arith.constant 1.000000e+00 : f32
    %332 = vector.broadcast %cst_59 : f32 to vector<2x32xf32>
    %333 = arith.addf %332, %331 : vector<2x32xf32>
    %334 = arith.divf %332, %333 : vector<2x32xf32>
    %335 = vector.extract_strided_slice %297 {offsets = [0, 64], sizes = [2, 32], strides = [1, 1]} : vector<2x128xf32> to vector<2x32xf32>
    %336 = math.tanh %335 : vector<2x32xf32>
    %337 = vector.extract_strided_slice %297 {offsets = [0, 96], sizes = [2, 32], strides = [1, 1]} : vector<2x128xf32> to vector<2x32xf32>
    %338 = arith.negf %337 : vector<2x32xf32>
    %339 = math.exp %338 : vector<2x32xf32>
    %cst_60 = arith.constant 1.000000e+00 : f32
    %340 = vector.broadcast %cst_60 : f32 to vector<2x32xf32>
    %341 = arith.addf %340, %339 : vector<2x32xf32>
    %342 = arith.divf %340, %341 : vector<2x32xf32>
    %343 = arith.mulf %334, %289 : vector<2x32xf32>
    %344 = arith.mulf %328, %336 : vector<2x32xf32>
    %345 = arith.addf %343, %344 : vector<2x32xf32>
    %346 = math.tanh %345 : vector<2x32xf32>
    %347 = arith.mulf %342, %346 : vector<2x32xf32>
    %348 = vector.extract_strided_slice %5 {offsets = [12, 0], sizes = [2, 128], strides = [1, 1]} : vector<16x256xf32> to vector<2x128xf32>
    %cst_61 = arith.constant dense<0.000000e+00> : vector<2x128xf32>
    %349 = tpu.matmul %322, %6, %cst_61 {dimension_numbers = #tpu.dot_dimension_numbers<[1], [0], [0], [1], [0, 0, 1, 1], [], []>} : vector<2x32xf32>, vector<32x128xf32>, vector<2x128xf32> -> vector<2x128xf32>
    %350 = arith.addf %348, %349 : vector<2x128xf32>
    %351 = vector.extract_strided_slice %5 {offsets = [2, 128], sizes = [2, 128], strides = [1, 1]} : vector<16x256xf32> to vector<2x128xf32>
    %cst_62 = arith.constant dense<0.000000e+00> : vector<2x128xf32>
    %352 = tpu.matmul %347, %7, %cst_62 {dimension_numbers = #tpu.dot_dimension_numbers<[1], [0], [0], [1], [0, 0, 1, 1], [], []>} : vector<2x32xf32>, vector<32x128xf32>, vector<2x128xf32> -> vector<2x128xf32>
    %353 = arith.addf %351, %352 : vector<2x128xf32>
    %354 = vector.extract_strided_slice %350 {offsets = [0, 0], sizes = [2, 32], strides = [1, 1]} : vector<2x128xf32> to vector<2x32xf32>
    %355 = arith.negf %354 : vector<2x32xf32>
    %356 = math.exp %355 : vector<2x32xf32>
    %cst_63 = arith.constant 1.000000e+00 : f32
    %357 = vector.broadcast %cst_63 : f32 to vector<2x32xf32>
    %358 = arith.addf %357, %356 : vector<2x32xf32>
    %359 = arith.divf %357, %358 : vector<2x32xf32>
    %360 = vector.extract_strided_slice %350 {offsets = [0, 32], sizes = [2, 32], strides = [1, 1]} : vector<2x128xf32> to vector<2x32xf32>
    %361 = arith.negf %360 : vector<2x32xf32>
    %362 = math.exp %361 : vector<2x32xf32>
    %cst_64 = arith.constant 1.000000e+00 : f32
    %363 = vector.broadcast %cst_64 : f32 to vector<2x32xf32>
    %364 = arith.addf %363, %362 : vector<2x32xf32>
    %365 = arith.divf %363, %364 : vector<2x32xf32>
    %366 = vector.extract_strided_slice %350 {offsets = [0, 64], sizes = [2, 32], strides = [1, 1]} : vector<2x128xf32> to vector<2x32xf32>
    %367 = math.tanh %366 : vector<2x32xf32>
    %368 = vector.extract_strided_slice %350 {offsets = [0, 96], sizes = [2, 32], strides = [1, 1]} : vector<2x128xf32> to vector<2x32xf32>
    %369 = arith.negf %368 : vector<2x32xf32>
    %370 = math.exp %369 : vector<2x32xf32>
    %cst_65 = arith.constant 1.000000e+00 : f32
    %371 = vector.broadcast %cst_65 : f32 to vector<2x32xf32>
    %372 = arith.addf %371, %370 : vector<2x32xf32>
    %373 = arith.divf %371, %372 : vector<2x32xf32>
    %374 = arith.mulf %365, %320 : vector<2x32xf32>
    %375 = arith.mulf %359, %367 : vector<2x32xf32>
    %376 = arith.addf %374, %375 : vector<2x32xf32>
    %377 = math.tanh %376 : vector<2x32xf32>
    %378 = arith.mulf %373, %377 : vector<2x32xf32>
    %379 = vector.extract_strided_slice %353 {offsets = [0, 0], sizes = [2, 32], strides = [1, 1]} : vector<2x128xf32> to vector<2x32xf32>
    %380 = arith.negf %379 : vector<2x32xf32>
    %381 = math.exp %380 : vector<2x32xf32>
    %cst_66 = arith.constant 1.000000e+00 : f32
    %382 = vector.broadcast %cst_66 : f32 to vector<2x32xf32>
    %383 = arith.addf %382, %381 : vector<2x32xf32>
    %384 = arith.divf %382, %383 : vector<2x32xf32>
    %385 = vector.extract_strided_slice %353 {offsets = [0, 32], sizes = [2, 32], strides = [1, 1]} : vector<2x128xf32> to vector<2x32xf32>
    %386 = arith.negf %385 : vector<2x32xf32>
    %387 = math.exp %386 : vector<2x32xf32>
    %cst_67 = arith.constant 1.000000e+00 : f32
    %388 = vector.broadcast %cst_67 : f32 to vector<2x32xf32>
    %389 = arith.addf %388, %387 : vector<2x32xf32>
    %390 = arith.divf %388, %389 : vector<2x32xf32>
    %391 = vector.extract_strided_slice %353 {offsets = [0, 64], sizes = [2, 32], strides = [1, 1]} : vector<2x128xf32> to vector<2x32xf32>
    %392 = math.tanh %391 : vector<2x32xf32>
    %393 = vector.extract_strided_slice %353 {offsets = [0, 96], sizes = [2, 32], strides = [1, 1]} : vector<2x128xf32> to vector<2x32xf32>
    %394 = arith.negf %393 : vector<2x32xf32>
    %395 = math.exp %394 : vector<2x32xf32>
    %cst_68 = arith.constant 1.000000e+00 : f32
    %396 = vector.broadcast %cst_68 : f32 to vector<2x32xf32>
    %397 = arith.addf %396, %395 : vector<2x32xf32>
    %398 = arith.divf %396, %397 : vector<2x32xf32>
    %399 = arith.mulf %390, %345 : vector<2x32xf32>
    %400 = arith.mulf %384, %392 : vector<2x32xf32>
    %401 = arith.addf %399, %400 : vector<2x32xf32>
    %402 = math.tanh %401 : vector<2x32xf32>
    %403 = arith.mulf %398, %402 : vector<2x32xf32>
    %404 = vector.extract_strided_slice %5 {offsets = [14, 0], sizes = [2, 128], strides = [1, 1]} : vector<16x256xf32> to vector<2x128xf32>
    %cst_69 = arith.constant dense<0.000000e+00> : vector<2x128xf32>
    %405 = tpu.matmul %378, %6, %cst_69 {dimension_numbers = #tpu.dot_dimension_numbers<[1], [0], [0], [1], [0, 0, 1, 1], [], []>} : vector<2x32xf32>, vector<32x128xf32>, vector<2x128xf32> -> vector<2x128xf32>
    %406 = arith.addf %404, %405 : vector<2x128xf32>
    %407 = vector.extract_strided_slice %5 {offsets = [0, 128], sizes = [2, 128], strides = [1, 1]} : vector<16x256xf32> to vector<2x128xf32>
    %cst_70 = arith.constant dense<0.000000e+00> : vector<2x128xf32>
    %408 = tpu.matmul %403, %7, %cst_70 {dimension_numbers = #tpu.dot_dimension_numbers<[1], [0], [0], [1], [0, 0, 1, 1], [], []>} : vector<2x32xf32>, vector<32x128xf32>, vector<2x128xf32> -> vector<2x128xf32>
    %409 = arith.addf %407, %408 : vector<2x128xf32>
    %410 = vector.extract_strided_slice %406 {offsets = [0, 0], sizes = [2, 32], strides = [1, 1]} : vector<2x128xf32> to vector<2x32xf32>
    %411 = arith.negf %410 : vector<2x32xf32>
    %412 = math.exp %411 : vector<2x32xf32>
    %cst_71 = arith.constant 1.000000e+00 : f32
    %413 = vector.broadcast %cst_71 : f32 to vector<2x32xf32>
    %414 = arith.addf %413, %412 : vector<2x32xf32>
    %415 = arith.divf %413, %414 : vector<2x32xf32>
    %416 = vector.extract_strided_slice %406 {offsets = [0, 32], sizes = [2, 32], strides = [1, 1]} : vector<2x128xf32> to vector<2x32xf32>
    %417 = arith.negf %416 : vector<2x32xf32>
    %418 = math.exp %417 : vector<2x32xf32>
    %cst_72 = arith.constant 1.000000e+00 : f32
    %419 = vector.broadcast %cst_72 : f32 to vector<2x32xf32>
    %420 = arith.addf %419, %418 : vector<2x32xf32>
    %421 = arith.divf %419, %420 : vector<2x32xf32>
    %422 = vector.extract_strided_slice %406 {offsets = [0, 64], sizes = [2, 32], strides = [1, 1]} : vector<2x128xf32> to vector<2x32xf32>
    %423 = math.tanh %422 : vector<2x32xf32>
    %424 = vector.extract_strided_slice %406 {offsets = [0, 96], sizes = [2, 32], strides = [1, 1]} : vector<2x128xf32> to vector<2x32xf32>
    %425 = arith.negf %424 : vector<2x32xf32>
    %426 = math.exp %425 : vector<2x32xf32>
    %cst_73 = arith.constant 1.000000e+00 : f32
    %427 = vector.broadcast %cst_73 : f32 to vector<2x32xf32>
    %428 = arith.addf %427, %426 : vector<2x32xf32>
    %429 = arith.divf %427, %428 : vector<2x32xf32>
    %430 = arith.mulf %421, %376 : vector<2x32xf32>
    %431 = arith.mulf %415, %423 : vector<2x32xf32>
    %432 = arith.addf %430, %431 : vector<2x32xf32>
    %433 = math.tanh %432 : vector<2x32xf32>
    %434 = arith.mulf %429, %433 : vector<2x32xf32>
    %435 = vector.extract_strided_slice %409 {offsets = [0, 0], sizes = [2, 32], strides = [1, 1]} : vector<2x128xf32> to vector<2x32xf32>
    %436 = arith.negf %435 : vector<2x32xf32>
    %437 = math.exp %436 : vector<2x32xf32>
    %cst_74 = arith.constant 1.000000e+00 : f32
    %438 = vector.broadcast %cst_74 : f32 to vector<2x32xf32>
    %439 = arith.addf %438, %437 : vector<2x32xf32>
    %440 = arith.divf %438, %439 : vector<2x32xf32>
    %441 = vector.extract_strided_slice %409 {offsets = [0, 32], sizes = [2, 32], strides = [1, 1]} : vector<2x128xf32> to vector<2x32xf32>
    %442 = arith.negf %441 : vector<2x32xf32>
    %443 = math.exp %442 : vector<2x32xf32>
    %cst_75 = arith.constant 1.000000e+00 : f32
    %444 = vector.broadcast %cst_75 : f32 to vector<2x32xf32>
    %445 = arith.addf %444, %443 : vector<2x32xf32>
    %446 = arith.divf %444, %445 : vector<2x32xf32>
    %447 = vector.extract_strided_slice %409 {offsets = [0, 64], sizes = [2, 32], strides = [1, 1]} : vector<2x128xf32> to vector<2x32xf32>
    %448 = math.tanh %447 : vector<2x32xf32>
    %449 = vector.extract_strided_slice %409 {offsets = [0, 96], sizes = [2, 32], strides = [1, 1]} : vector<2x128xf32> to vector<2x32xf32>
    %450 = arith.negf %449 : vector<2x32xf32>
    %451 = math.exp %450 : vector<2x32xf32>
    %cst_76 = arith.constant 1.000000e+00 : f32
    %452 = vector.broadcast %cst_76 : f32 to vector<2x32xf32>
    %453 = arith.addf %452, %451 : vector<2x32xf32>
    %454 = arith.divf %452, %453 : vector<2x32xf32>
    %455 = arith.mulf %446, %401 : vector<2x32xf32>
    %456 = arith.mulf %440, %448 : vector<2x32xf32>
    %457 = arith.addf %455, %456 : vector<2x32xf32>
    %458 = math.tanh %457 : vector<2x32xf32>
    %459 = arith.mulf %454, %458 : vector<2x32xf32>
    %460 = vector.extract_strided_slice %42 {offsets = [0, 0], sizes = [1, 32], strides = [1, 1]} : vector<2x32xf32> to vector<1x32xf32>
    %461 = vector.extract_strided_slice %98 {offsets = [0, 0], sizes = [1, 32], strides = [1, 1]} : vector<2x32xf32> to vector<1x32xf32>
    %462 = vector.extract_strided_slice %154 {offsets = [0, 0], sizes = [1, 32], strides = [1, 1]} : vector<2x32xf32> to vector<1x32xf32>
    %463 = vector.extract_strided_slice %210 {offsets = [0, 0], sizes = [1, 32], strides = [1, 1]} : vector<2x32xf32> to vector<1x32xf32>
    %464 = vector.extract_strided_slice %266 {offsets = [0, 0], sizes = [1, 32], strides = [1, 1]} : vector<2x32xf32> to vector<1x32xf32>
    %465 = vector.extract_strided_slice %322 {offsets = [0, 0], sizes = [1, 32], strides = [1, 1]} : vector<2x32xf32> to vector<1x32xf32>
    %466 = vector.extract_strided_slice %378 {offsets = [0, 0], sizes = [1, 32], strides = [1, 1]} : vector<2x32xf32> to vector<1x32xf32>
    %467 = vector.extract_strided_slice %434 {offsets = [0, 0], sizes = [1, 32], strides = [1, 1]} : vector<2x32xf32> to vector<1x32xf32>
    %468 = tpu.concatenate %460, %461, %462, %463, %464, %465, %466, %467 in 0 : vector<1x32xf32>, vector<1x32xf32>, vector<1x32xf32>, vector<1x32xf32>, vector<1x32xf32>, vector<1x32xf32>, vector<1x32xf32>, vector<1x32xf32> -> vector<8x32xf32>
    %469 = vector.extract_strided_slice %459 {offsets = [0, 0], sizes = [1, 32], strides = [1, 1]} : vector<2x32xf32> to vector<1x32xf32>
    %470 = vector.extract_strided_slice %403 {offsets = [0, 0], sizes = [1, 32], strides = [1, 1]} : vector<2x32xf32> to vector<1x32xf32>
    %471 = vector.extract_strided_slice %347 {offsets = [0, 0], sizes = [1, 32], strides = [1, 1]} : vector<2x32xf32> to vector<1x32xf32>
    %472 = vector.extract_strided_slice %291 {offsets = [0, 0], sizes = [1, 32], strides = [1, 1]} : vector<2x32xf32> to vector<1x32xf32>
    %473 = vector.extract_strided_slice %235 {offsets = [0, 0], sizes = [1, 32], strides = [1, 1]} : vector<2x32xf32> to vector<1x32xf32>
    %474 = vector.extract_strided_slice %179 {offsets = [0, 0], sizes = [1, 32], strides = [1, 1]} : vector<2x32xf32> to vector<1x32xf32>
    %475 = vector.extract_strided_slice %123 {offsets = [0, 0], sizes = [1, 32], strides = [1, 1]} : vector<2x32xf32> to vector<1x32xf32>
    %476 = vector.extract_strided_slice %67 {offsets = [0, 0], sizes = [1, 32], strides = [1, 1]} : vector<2x32xf32> to vector<1x32xf32>
    %477 = tpu.concatenate %469, %470, %471, %472, %473, %474, %475, %476 in 0 : vector<1x32xf32>, vector<1x32xf32>, vector<1x32xf32>, vector<1x32xf32>, vector<1x32xf32>, vector<1x32xf32>, vector<1x32xf32>, vector<1x32xf32> -> vector<8x32xf32>
    %478 = tpu.concatenate %468, %477 in 1 : vector<8x32xf32>, vector<8x32xf32> -> vector<8x64xf32>
    %479 = vector.extract_strided_slice %42 {offsets = [1, 0], sizes = [1, 32], strides = [1, 1]} : vector<2x32xf32> to vector<1x32xf32>
    %480 = vector.extract_strided_slice %98 {offsets = [1, 0], sizes = [1, 32], strides = [1, 1]} : vector<2x32xf32> to vector<1x32xf32>
    %481 = vector.extract_strided_slice %154 {offsets = [1, 0], sizes = [1, 32], strides = [1, 1]} : vector<2x32xf32> to vector<1x32xf32>
    %482 = vector.extract_strided_slice %210 {offsets = [1, 0], sizes = [1, 32], strides = [1, 1]} : vector<2x32xf32> to vector<1x32xf32>
    %483 = vector.extract_strided_slice %266 {offsets = [1, 0], sizes = [1, 32], strides = [1, 1]} : vector<2x32xf32> to vector<1x32xf32>
    %484 = vector.extract_strided_slice %322 {offsets = [1, 0], sizes = [1, 32], strides = [1, 1]} : vector<2x32xf32> to vector<1x32xf32>
    %485 = vector.extract_strided_slice %378 {offsets = [1, 0], sizes = [1, 32], strides = [1, 1]} : vector<2x32xf32> to vector<1x32xf32>
    %486 = vector.extract_strided_slice %434 {offsets = [1, 0], sizes = [1, 32], strides = [1, 1]} : vector<2x32xf32> to vector<1x32xf32>
    %487 = tpu.concatenate %479, %480, %481, %482, %483, %484, %485, %486 in 0 : vector<1x32xf32>, vector<1x32xf32>, vector<1x32xf32>, vector<1x32xf32>, vector<1x32xf32>, vector<1x32xf32>, vector<1x32xf32>, vector<1x32xf32> -> vector<8x32xf32>
    %488 = vector.extract_strided_slice %459 {offsets = [1, 0], sizes = [1, 32], strides = [1, 1]} : vector<2x32xf32> to vector<1x32xf32>
    %489 = vector.extract_strided_slice %403 {offsets = [1, 0], sizes = [1, 32], strides = [1, 1]} : vector<2x32xf32> to vector<1x32xf32>
    %490 = vector.extract_strided_slice %347 {offsets = [1, 0], sizes = [1, 32], strides = [1, 1]} : vector<2x32xf32> to vector<1x32xf32>
    %491 = vector.extract_strided_slice %291 {offsets = [1, 0], sizes = [1, 32], strides = [1, 1]} : vector<2x32xf32> to vector<1x32xf32>
    %492 = vector.extract_strided_slice %235 {offsets = [1, 0], sizes = [1, 32], strides = [1, 1]} : vector<2x32xf32> to vector<1x32xf32>
    %493 = vector.extract_strided_slice %179 {offsets = [1, 0], sizes = [1, 32], strides = [1, 1]} : vector<2x32xf32> to vector<1x32xf32>
    %494 = vector.extract_strided_slice %123 {offsets = [1, 0], sizes = [1, 32], strides = [1, 1]} : vector<2x32xf32> to vector<1x32xf32>
    %495 = vector.extract_strided_slice %67 {offsets = [1, 0], sizes = [1, 32], strides = [1, 1]} : vector<2x32xf32> to vector<1x32xf32>
    %496 = tpu.concatenate %488, %489, %490, %491, %492, %493, %494, %495 in 0 : vector<1x32xf32>, vector<1x32xf32>, vector<1x32xf32>, vector<1x32xf32>, vector<1x32xf32>, vector<1x32xf32>, vector<1x32xf32>, vector<1x32xf32> -> vector<8x32xf32>
    %497 = tpu.concatenate %487, %496 in 1 : vector<8x32xf32>, vector<8x32xf32> -> vector<8x64xf32>
    %498 = tpu.concatenate %478, %497 in 0 : vector<8x64xf32>, vector<8x64xf32> -> vector<16x64xf32>
    %c0_77 = arith.constant 0 : index
    %c0_78 = arith.constant 0 : index
    %499 = vector.load %arg5[%c0_77, %c0_78] : memref<64x192xf32, #tpu.memory_space<vmem>>, vector<64x192xf32>
    %cst_79 = arith.constant dense<0.000000e+00> : vector<16x192xf32>
    %500 = tpu.matmul %498, %499, %cst_79 {dimension_numbers = #tpu.dot_dimension_numbers<[1], [0], [0], [1], [0, 0, 1, 1], [], []>} : vector<16x64xf32>, vector<64x192xf32>, vector<16x192xf32> -> vector<16x192xf32>
    %c0_80 = arith.constant 0 : index
    %c0_81 = arith.constant 0 : index
    %501 = vector.load %arg6[%c0_80, %c0_81] : memref<1x192xf32, #tpu.memory_space<vmem>>, vector<1x192xf32>
    %502 = vector.broadcast %501 : vector<1x192xf32> to vector<16x192xf32>
    %503 = arith.addf %500, %502 : vector<16x192xf32>
    %504 = vector.extract_strided_slice %503 {offsets = [0, 0], sizes = [16, 64], strides = [1, 1]} : vector<16x192xf32> to vector<16x64xf32>
    %505 = vector.extract_strided_slice %503 {offsets = [0, 64], sizes = [16, 64], strides = [1, 1]} : vector<16x192xf32> to vector<16x64xf32>
    %506 = vector.extract_strided_slice %503 {offsets = [0, 128], sizes = [16, 64], strides = [1, 1]} : vector<16x192xf32> to vector<16x64xf32>
    %507 = vector.extract_strided_slice %504 {offsets = [0, 0], sizes = [8, 64], strides = [1, 1]} : vector<16x64xf32> to vector<8x64xf32>
    %508 = vector.shape_cast %507 : vector<8x64xf32> to vector<8x4x16xf32>
    %509 = tpu.transpose %508, [1, 0, 2] : vector<8x4x16xf32> -> vector<4x8x16xf32>
    %510 = vector.extract_strided_slice %505 {offsets = [0, 0], sizes = [8, 64], strides = [1, 1]} : vector<16x64xf32> to vector<8x64xf32>
    %511 = vector.shape_cast %510 : vector<8x64xf32> to vector<8x4x16xf32>
    %512 = tpu.transpose %511, [1, 0, 2] : vector<8x4x16xf32> -> vector<4x8x16xf32>
    %513 = vector.extract_strided_slice %506 {offsets = [0, 0], sizes = [8, 64], strides = [1, 1]} : vector<16x64xf32> to vector<8x64xf32>
    %514 = vector.shape_cast %513 : vector<8x64xf32> to vector<8x4x16xf32>
    %515 = tpu.transpose %514, [1, 0, 2] : vector<8x4x16xf32> -> vector<4x8x16xf32>
    "tpu.trace_start"() <{level = 10 : i32, message = "hqd,hkd->hqk"}> : () -> ()
    %cst_82 = arith.constant dense<0.000000e+00> : vector<4x8x8xf32>
    %516 = tpu.matmul %509, %512, %cst_82 {dimension_numbers = #tpu.dot_dimension_numbers<[2], [2], [1], [1], [0, 0, 0, 1, 1, 1], [0], [0]>} : vector<4x8x16xf32>, vector<4x8x16xf32>, vector<4x8x8xf32> -> vector<4x8x8xf32>
    "tpu.trace_stop"() : () -> ()
    %cst_83 = arith.constant 2.500000e-01 : f32
    %517 = vector.broadcast %cst_83 : f32 to vector<4x8x8xf32>
    %518 = arith.mulf %516, %517 : vector<4x8x8xf32>
    %cst_84 = arith.constant dense<0xFF800000> : vector<4x8xf32>
    %519 = vector.multi_reduction <maximumf>, %518, %cst_84 [2] : vector<4x8x8xf32> to vector<4x8xf32>
    %520 = vector.shape_cast %519 : vector<4x8xf32> to vector<4x8x1xf32>
    %521 = vector.broadcast %520 : vector<4x8x1xf32> to vector<4x8x8xf32>
    %522 = arith.subf %518, %521 : vector<4x8x8xf32>
    %523 = math.exp %522 : vector<4x8x8xf32>
    %cst_85 = arith.constant dense<0.000000e+00> : vector<4x8xf32>
    %524 = vector.multi_reduction <add>, %523, %cst_85 [2] : vector<4x8x8xf32> to vector<4x8xf32>
    %525 = vector.shape_cast %524 : vector<4x8xf32> to vector<4x8x1xf32>
    %526 = vector.broadcast %525 : vector<4x8x1xf32> to vector<4x8x8xf32>
    %527 = arith.divf %523, %526 : vector<4x8x8xf32>
    %c0_86 = arith.constant 0 : index
    %c0_87 = arith.constant 0 : index
    %c0_88 = arith.constant 0 : index
    %c0_89 = arith.constant 0 : index
    %528 = vector.load %arg15[%c0_86, %c0_87, %c0_88, %c0_89] : memref<2x4x8x8xf32, #tpu.memory_space<vmem>>, vector<1x4x8x8xf32>
    %529 = vector.shape_cast %528 : vector<1x4x8x8xf32> to vector<4x8x8xf32>
    %530 = vector.shape_cast %527 : vector<4x8x8xf32> to vector<1x4x8x8xf32>
    tpu.vector_store %arg15[%c0_86, %c0_87, %c0_88, %c0_89], %530 {strides = array<i32>} : memref<2x4x8x8xf32, #tpu.memory_space<vmem>>, vector<1x4x8x8xf32>,
    "tpu.trace_start"() <{level = 10 : i32, message = "hqk,hkd->hqd"}> : () -> ()
    %cst_90 = arith.constant dense<0.000000e+00> : vector<4x8x16xf32>
    %531 = tpu.matmul %527, %515, %cst_90 {dimension_numbers = #tpu.dot_dimension_numbers<[2], [1], [1], [2], [0, 0, 0, 1, 1, 2], [0], [0]>} : vector<4x8x8xf32>, vector<4x8x16xf32>, vector<4x8x16xf32> -> vector<4x8x16xf32>
    "tpu.trace_stop"() : () -> ()
    %532 = tpu.transpose %531, [1, 0, 2] : vector<4x8x16xf32> -> vector<8x4x16xf32>
    %533 = vector.shape_cast %532 : vector<8x4x16xf32> to vector<8x64xf32>
    %534 = vector.extract_strided_slice %504 {offsets = [8, 0], sizes = [8, 64], strides = [1, 1]} : vector<16x64xf32> to vector<8x64xf32>
    %535 = vector.shape_cast %534 : vector<8x64xf32> to vector<8x4x16xf32>
    %536 = tpu.transpose %535, [1, 0, 2] : vector<8x4x16xf32> -> vector<4x8x16xf32>
    %537 = vector.extract_strided_slice %505 {offsets = [8, 0], sizes = [8, 64], strides = [1, 1]} : vector<16x64xf32> to vector<8x64xf32>
    %538 = vector.shape_cast %537 : vector<8x64xf32> to vector<8x4x16xf32>
    %539 = tpu.transpose %538, [1, 0, 2] : vector<8x4x16xf32> -> vector<4x8x16xf32>
    %540 = vector.extract_strided_slice %506 {offsets = [8, 0], sizes = [8, 64], strides = [1, 1]} : vector<16x64xf32> to vector<8x64xf32>
    %541 = vector.shape_cast %540 : vector<8x64xf32> to vector<8x4x16xf32>
    %542 = tpu.transpose %541, [1, 0, 2] : vector<8x4x16xf32> -> vector<4x8x16xf32>
    "tpu.trace_start"() <{level = 10 : i32, message = "hqd,hkd->hqk"}> : () -> ()
    %cst_91 = arith.constant dense<0.000000e+00> : vector<4x8x8xf32>
    %543 = tpu.matmul %536, %539, %cst_91 {dimension_numbers = #tpu.dot_dimension_numbers<[2], [2], [1], [1], [0, 0, 0, 1, 1, 1], [0], [0]>} : vector<4x8x16xf32>, vector<4x8x16xf32>, vector<4x8x8xf32> -> vector<4x8x8xf32>
    "tpu.trace_stop"() : () -> ()
    %cst_92 = arith.constant 2.500000e-01 : f32
    %544 = vector.broadcast %cst_92 : f32 to vector<4x8x8xf32>
    %545 = arith.mulf %543, %544 : vector<4x8x8xf32>
    %cst_93 = arith.constant dense<0xFF800000> : vector<4x8xf32>
    %546 = vector.multi_reduction <maximumf>, %545, %cst_93 [2] : vector<4x8x8xf32> to vector<4x8xf32>
    %547 = vector.shape_cast %546 : vector<4x8xf32> to vector<4x8x1xf32>
    %548 = vector.broadcast %547 : vector<4x8x1xf32> to vector<4x8x8xf32>
    %549 = arith.subf %545, %548 : vector<4x8x8xf32>
    %550 = math.exp %549 : vector<4x8x8xf32>
    %cst_94 = arith.constant dense<0.000000e+00> : vector<4x8xf32>
    %551 = vector.multi_reduction <add>, %550, %cst_94 [2] : vector<4x8x8xf32> to vector<4x8xf32>
    %552 = vector.shape_cast %551 : vector<4x8xf32> to vector<4x8x1xf32>
    %553 = vector.broadcast %552 : vector<4x8x1xf32> to vector<4x8x8xf32>
    %554 = arith.divf %550, %553 : vector<4x8x8xf32>
    %c1 = arith.constant 1 : index
    %c0_95 = arith.constant 0 : index
    %c0_96 = arith.constant 0 : index
    %c0_97 = arith.constant 0 : index
    %555 = vector.load %arg15[%c1, %c0_95, %c0_96, %c0_97] : memref<2x4x8x8xf32, #tpu.memory_space<vmem>>, vector<1x4x8x8xf32>
    %556 = vector.shape_cast %555 : vector<1x4x8x8xf32> to vector<4x8x8xf32>
    %557 = vector.shape_cast %554 : vector<4x8x8xf32> to vector<1x4x8x8xf32>
    tpu.vector_store %arg15[%c1, %c0_95, %c0_96, %c0_97], %557 {strides = array<i32>} : memref<2x4x8x8xf32, #tpu.memory_space<vmem>>, vector<1x4x8x8xf32>,
    "tpu.trace_start"() <{level = 10 : i32, message = "hqk,hkd->hqd"}> : () -> ()
    %cst_98 = arith.constant dense<0.000000e+00> : vector<4x8x16xf32>
    %558 = tpu.matmul %554, %542, %cst_98 {dimension_numbers = #tpu.dot_dimension_numbers<[2], [1], [1], [2], [0, 0, 0, 1, 1, 2], [0], [0]>} : vector<4x8x8xf32>, vector<4x8x16xf32>, vector<4x8x16xf32> -> vector<4x8x16xf32>
    "tpu.trace_stop"() : () -> ()
    %559 = tpu.transpose %558, [1, 0, 2] : vector<4x8x16xf32> -> vector<8x4x16xf32>
    %560 = vector.shape_cast %559 : vector<8x4x16xf32> to vector<8x64xf32>
    %561 = tpu.concatenate %533, %560 in 0 : vector<8x64xf32>, vector<8x64xf32> -> vector<16x64xf32>
    %c0_99 = arith.constant 0 : index
    %c0_100 = arith.constant 0 : index
    %562 = vector.load %arg7[%c0_99, %c0_100] : memref<64x64xf32, #tpu.memory_space<vmem>>, vector<64x64xf32>
    %cst_101 = arith.constant dense<0.000000e+00> : vector<16x64xf32>
    %563 = tpu.matmul %561, %562, %cst_101 {dimension_numbers = #tpu.dot_dimension_numbers<[1], [0], [0], [1], [0, 0, 1, 1], [], []>} : vector<16x64xf32>, vector<64x64xf32>, vector<16x64xf32> -> vector<16x64xf32>
    %c0_102 = arith.constant 0 : index
    %c0_103 = arith.constant 0 : index
    %564 = vector.load %arg8[%c0_102, %c0_103] : memref<1x64xf32, #tpu.memory_space<vmem>>, vector<1x64xf32>
    %565 = vector.broadcast %564 : vector<1x64xf32> to vector<16x64xf32>
    %566 = arith.addf %563, %565 : vector<16x64xf32>
    %567 = tpu.concatenate %498, %566 in 0 : vector<16x64xf32>, vector<16x64xf32> -> vector<32x64xf32>
    %cst_104 = arith.constant dense<0.000000e+00> : vector<32xf32>
    %568 = vector.multi_reduction <add>, %567, %cst_104 [1] : vector<32x64xf32> to vector<32xf32>
    %569 = vector.shape_cast %568 : vector<32xf32> to vector<32x1xf32>
    %cst_105 = arith.constant 6.400000e+01 : f32
    %570 = vector.broadcast %cst_105 : f32 to vector<32x1xf32>
    %571 = arith.divf %569, %570 : vector<32x1xf32>
    %572 = vector.broadcast %571 : vector<32x1xf32> to vector<32x64xf32>
    %573 = arith.subf %567, %572 : vector<32x64xf32>
    %574 = arith.mulf %573, %573 : vector<32x64xf32>
    %cst_106 = arith.constant dense<0.000000e+00> : vector<32xf32>
    %575 = vector.multi_reduction <add>, %574, %cst_106 [1] : vector<32x64xf32> to vector<32xf32>
    %576 = vector.shape_cast %575 : vector<32xf32> to vector<32x1xf32>
    %cst_107 = arith.constant 6.400000e+01 : f32
    %577 = vector.broadcast %cst_107 : f32 to vector<32x1xf32>
    %578 = arith.divf %576, %577 : vector<32x1xf32>
    %579 = vector.broadcast %571 : vector<32x1xf32> to vector<32x64xf32>
    %580 = arith.subf %567, %579 : vector<32x64xf32>
    %cst_108 = arith.constant 9.99999974E-6 : f32
    %581 = vector.broadcast %cst_108 : f32 to vector<32x1xf32>
    %582 = arith.addf %578, %581 : vector<32x1xf32>
    %583 = math.rsqrt %582 : vector<32x1xf32>
    %584 = vector.broadcast %583 : vector<32x1xf32> to vector<32x64xf32>
    %585 = arith.mulf %580, %584 : vector<32x64xf32>
    %c0_109 = arith.constant 0 : index
    %c0_110 = arith.constant 0 : index
    %586 = vector.load %arg9[%c0_109, %c0_110] : memref<1x64xf32, #tpu.memory_space<vmem>>, vector<1x64xf32>
    %587 = vector.broadcast %586 : vector<1x64xf32> to vector<32x64xf32>
    %588 = arith.mulf %585, %587 : vector<32x64xf32>
    %c0_111 = arith.constant 0 : index
    %c0_112 = arith.constant 0 : index
    %589 = vector.load %arg10[%c0_111, %c0_112] : memref<1x64xf32, #tpu.memory_space<vmem>>, vector<1x64xf32>
    %590 = vector.broadcast %589 : vector<1x64xf32> to vector<32x64xf32>
    %591 = arith.addf %588, %590 : vector<32x64xf32>
    %592 = vector.extract_strided_slice %591 {offsets = [0, 0], sizes = [16, 64], strides = [1, 1]} : vector<32x64xf32> to vector<16x64xf32>
    %593 = vector.extract_strided_slice %591 {offsets = [16, 0], sizes = [16, 64], strides = [1, 1]} : vector<32x64xf32> to vector<16x64xf32>
    %c0_113 = arith.constant 0 : index
    %c0_114 = arith.constant 0 : index
    %594 = vector.load %arg11[%c0_113, %c0_114] : memref<64x8xf32, #tpu.memory_space<vmem>>, vector<64x8xf32>
    %cst_115 = arith.constant dense<0.000000e+00> : vector<16x8xf32>
    %595 = tpu.matmul %592, %594, %cst_115 {dimension_numbers = #tpu.dot_dimension_numbers<[1], [0], [0], [1], [0, 0, 1, 1], [], []>} : vector<16x64xf32>, vector<64x8xf32>, vector<16x8xf32> -> vector<16x8xf32>
    %c0_116 = arith.constant 0 : index
    %c0_117 = arith.constant 0 : index
    %596 = vector.load %arg12[%c0_116, %c0_117] : memref<1x8xf32, #tpu.memory_space<vmem>>, vector<1x8xf32>
    %597 = vector.broadcast %596 : vector<1x8xf32> to vector<16x8xf32>
    %598 = arith.addf %595, %597 : vector<16x8xf32>
    %599 = vector.extract_strided_slice %598 {offsets = [0, 0], sizes = [8, 8], strides = [1, 1]} : vector<16x8xf32> to vector<8x8xf32>
    %c0_118 = arith.constant 0 : index
    %c0_119 = arith.constant 0 : index
    %c0_120 = arith.constant 0 : index
    %600 = vector.load %arg13[%c0_118, %c0_119, %c0_120] : memref<2x8x8xf32, #tpu.memory_space<vmem>>, vector<1x8x8xf32>
    %601 = vector.shape_cast %600 : vector<1x8x8xf32> to vector<8x8xf32>
    %602 = vector.shape_cast %599 : vector<8x8xf32> to vector<1x8x8xf32>
    tpu.vector_store %arg13[%c0_118, %c0_119, %c0_120], %602 {strides = array<i32>} : memref<2x8x8xf32, #tpu.memory_space<vmem>>, vector<1x8x8xf32>,
    %603 = vector.extract_strided_slice %593 {offsets = [0, 0], sizes = [8, 64], strides = [1, 1]} : vector<16x64xf32> to vector<8x64xf32>
    %c0_121 = arith.constant 0 : index
    %c0_122 = arith.constant 0 : index
    %c0_123 = arith.constant 0 : index
    %604 = vector.load %arg14[%c0_121, %c0_122, %c0_123] : memref<2x8x64xf32, #tpu.memory_space<vmem>>, vector<1x8x64xf32>
    %605 = vector.shape_cast %604 : vector<1x8x64xf32> to vector<8x64xf32>
    %606 = vector.shape_cast %603 : vector<8x64xf32> to vector<1x8x64xf32>
    tpu.vector_store %arg14[%c0_121, %c0_122, %c0_123], %606 {strides = array<i32>} : memref<2x8x64xf32, #tpu.memory_space<vmem>>, vector<1x8x64xf32>,
    %607 = vector.extract_strided_slice %598 {offsets = [8, 0], sizes = [8, 8], strides = [1, 1]} : vector<16x8xf32> to vector<8x8xf32>
    %c1_124 = arith.constant 1 : index
    %c0_125 = arith.constant 0 : index
    %c0_126 = arith.constant 0 : index
    %608 = vector.load %arg13[%c1_124, %c0_125, %c0_126] : memref<2x8x8xf32, #tpu.memory_space<vmem>>, vector<1x8x8xf32>
    %609 = vector.shape_cast %608 : vector<1x8x8xf32> to vector<8x8xf32>
    %610 = vector.shape_cast %607 : vector<8x8xf32> to vector<1x8x8xf32>
    tpu.vector_store %arg13[%c1_124, %c0_125, %c0_126], %610 {strides = array<i32>} : memref<2x8x8xf32, #tpu.memory_space<vmem>>, vector<1x8x8xf32>,
    %611 = vector.extract_strided_slice %593 {offsets = [8, 0], sizes = [8, 64], strides = [1, 1]} : vector<16x64xf32> to vector<8x64xf32>
    %c1_127 = arith.constant 1 : index
    %c0_128 = arith.constant 0 : index
    %c0_129 = arith.constant 0 : index
    %612 = vector.load %arg14[%c1_127, %c0_128, %c0_129] : memref<2x8x64xf32, #tpu.memory_space<vmem>>, vector<1x8x64xf32>
    %613 = vector.shape_cast %612 : vector<1x8x64xf32> to vector<8x64xf32>
    %614 = vector.shape_cast %611 : vector<8x64xf32> to vector<1x8x64xf32>
    tpu.vector_store %arg14[%c1_127, %c0_128, %c0_129], %614 {strides = array<i32>} : memref<2x8x64xf32, #tpu.memory_space<vmem>>, vector<1x8x64xf32>,
    return
  }
}

</mosaic_0001>

<llo_original>
// kernel: bilstm_crf_attn_forward.1
$region0: #{bilstm_crf_attn_forward.1}
  #allocation0 [shape = 'u32[]', space=smem, size = 0x4, offset = 0x4, fixed_abs, tag = 'smem constant byte address 0x4 - core index']
  #allocation1 [shape = 'u32[144,128]{1,0:T(1,128)}', space=vmem, size = 0x12000, scoped, tag = 'internal scratch']
  %s0 = inlined_call_operand.vmem [shape: f32[16,32], index: 0, kind: input, shape index: {}]
  %s1 = inlined_call_operand.vmem [shape: f32[32,256], index: 1, kind: input, shape index: {}]
  %s2 = inlined_call_operand.vmem [shape: f32[32,128], index: 2, kind: input, shape index: {}]
  %s3 = inlined_call_operand.vmem [shape: f32[32,128], index: 3, kind: input, shape index: {}]
  %s4 = inlined_call_operand.vmem [shape: f32[1,256], index: 4, kind: input, shape index: {}]
  %s5 = inlined_call_operand.vmem [shape: f32[64,192], index: 5, kind: input, shape index: {}]
  %s6 = inlined_call_operand.vmem [shape: f32[1,192], index: 6, kind: input, shape index: {}]
  %s7 = inlined_call_operand.vmem [shape: f32[64,64], index: 7, kind: input, shape index: {}]
  %s8 = inlined_call_operand.vmem [shape: f32[1,64], index: 8, kind: input, shape index: {}]
  %s9 = inlined_call_operand.vmem [shape: f32[1,64], index: 9, kind: input, shape index: {}]
  %s10 = inlined_call_operand.vmem [shape: f32[1,64], index: 10, kind: input, shape index: {}]
  %s11 = inlined_call_operand.vmem [shape: f32[64,8], index: 11, kind: input, shape index: {}]
  %s12 = inlined_call_operand.vmem [shape: f32[1,8], index: 12, kind: input, shape index: {}]
  %s13 = inlined_call_operand.hbm [shape: f32[2,8,8], index: 13, kind: output, shape index: {0}]
  %s14 = inlined_call_operand.hbm [shape: f32[2,8,64], index: 14, kind: output, shape index: {1}]
  %s15 = inlined_call_operand.hbm [shape: f32[2,4,8,8], index: 15, kind: output, shape index: {2}]
  %16 = xla_tuple %s13, %s14, %s15
  %s17 = sld [smem:[#allocation0]]
  $region78: #{bilstm_crf_attn_forward.1} parent=0
    _
  %s19 = ssub.s32 1, %s17
  %s20 = scalar_select 0, %s19, %s17
  $region1: #{bilstm_crf_attn_forward.1} parent=0
    #allocation2 [shape = 'u8[8192]{0}', space=vmem, size = 0x2000, scoped, tag = 'output window, operand 0, single buffered']
    #allocation3 [shape = 's32[1]{0}', space=sflag, size = 0x4, scoped, tag = 'scoped memory for bilstm_crf_attn_forward.1']
    #allocation4 [shape = 'u8[8192]{0}', space=vmem, size = 0x2000, scoped, tag = 'output window, operand 1, single buffered']
    #allocation5 [shape = 's32[1]{0}', space=sflag, size = 0x4, scoped, tag = 'scoped memory for bilstm_crf_attn_forward.1']
    #allocation6 [shape = 'u8[32768]{0}', space=vmem, size = 0x8000, scoped, tag = 'output window, operand 2, single buffered']
    %21 = vsyncpa [#allocation3], 0
    %22 = vsyncpa [#allocation5], 0
    // Predicated region
    $region2: #{bilstm_crf_attn_forward.1} parent=1 // pred_check
      _
    $region3: #{bilstm_crf_attn_forward.1} parent=1 // pred_check_branch
      %24 = sbr.rel (0) target = $region5
    $region4: #{bilstm_crf_attn_forward.1} parent=1 // pred_region
      _
    $region5: #{bilstm_crf_attn_forward.1} parent=1 // pred_fallthru
      _
    // Predicated region
    $region6: #{bilstm_crf_attn_forward.1} parent=1 // pred_check
      _
    $region7: #{bilstm_crf_attn_forward.1} parent=1 // pred_check_branch
      %26 = sbr.rel (0) target = $region9
    $region8: #{bilstm_crf_attn_forward.1} parent=1 // pred_region
      _
    $region9: #{bilstm_crf_attn_forward.1} parent=1 // pred_fallthru
      _
    // Predicated region
    $region10: #{bilstm_crf_attn_forward.1} parent=1 // pred_check
      _
    $region11: #{bilstm_crf_attn_forward.1} parent=1 // pred_check_branch
      %28 = sbr.rel (0) target = $region13
    $region12: #{bilstm_crf_attn_forward.1} parent=1 // pred_region
      _
    $region13: #{bilstm_crf_attn_forward.1} parent=1 // pred_fallthru
      _
    // Predicated region
    $region14: #{bilstm_crf_attn_forward.1} parent=1 // pred_check
      _
    $region15: #{bilstm_crf_attn_forward.1} parent=1 // pred_check_branch
      %30 = sbr.rel (0) target = $region17
    $region16: #{bilstm_crf_attn_forward.1} parent=1 // pred_region
      _
    $region17: #{bilstm_crf_attn_forward.1} parent=1 // pred_fallthru
      _
    // Predicated region
    $region18: #{bilstm_crf_attn_forward.1} parent=1 // pred_check
      _
    $region19: #{bilstm_crf_attn_forward.1} parent=1 // pred_check_branch
      %32 = sbr.rel (0) target = $region21
    $region20: #{bilstm_crf_attn_forward.1} parent=1 // pred_region
      _
    $region21: #{bilstm_crf_attn_forward.1} parent=1 // pred_fallthru
      _
    // Predicated region
    $region22: #{bilstm_crf_attn_forward.1} parent=1 // pred_check
      _
    $region23: #{bilstm_crf_attn_forward.1} parent=1 // pred_check_branch
      %34 = sbr.rel (0) target = $region25
    $region24: #{bilstm_crf_attn_forward.1} parent=1 // pred_region
      _
    $region25: #{bilstm_crf_attn_forward.1} parent=1 // pred_fallthru
      _
    // Predicated region
    $region26: #{bilstm_crf_attn_forward.1} parent=1 // pred_check
      _
    $region27: #{bilstm_crf_attn_forward.1} parent=1 // pred_check_branch
      %36 = sbr.rel (0) target = $region29
    $region28: #{bilstm_crf_attn_forward.1} parent=1 // pred_region
      _
    $region29: #{bilstm_crf_attn_forward.1} parent=1 // pred_fallthru
      _
    // Predicated region
    $region30: #{bilstm_crf_attn_forward.1} parent=1 // pred_check
      _
    $region31: #{bilstm_crf_attn_forward.1} parent=1 // pred_check_branch
      %38 = sbr.rel (0) target = $region33
    $region32: #{bilstm_crf_attn_forward.1} parent=1 // pred_region
      _
    $region33: #{bilstm_crf_attn_forward.1} parent=1 // pred_fallthru
      _
    // Predicated region
    $region34: #{bilstm_crf_attn_forward.1} parent=1 // pred_check
      _
    $region35: #{bilstm_crf_attn_forward.1} parent=1 // pred_check_branch
      %40 = sbr.rel (0) target = $region37
    $region36: #{bilstm_crf_attn_forward.1} parent=1 // pred_region
      _
    $region37: #{bilstm_crf_attn_forward.1} parent=1 // pred_fallthru
      _
    // Predicated region
    $region38: #{bilstm_crf_attn_forward.1} parent=1 // pred_check
      _
    $region39: #{bilstm_crf_attn_forward.1} parent=1 // pred_check_branch
      %42 = sbr.rel (0) target = $region41
    $region40: #{bilstm_crf_attn_forward.1} parent=1 // pred_region
      _
    $region41: #{bilstm_crf_attn_forward.1} parent=1 // pred_fallthru
      _
    // Predicated region
    $region42: #{bilstm_crf_attn_forward.1} parent=1 // pred_check
      _
    $region43: #{bilstm_crf_attn_forward.1} parent=1 // pred_check_branch
      %44 = sbr.rel (0) target = $region45
    $region44: #{bilstm_crf_attn_forward.1} parent=1 // pred_region
      _
    $region45: #{bilstm_crf_attn_forward.1} parent=1 // pred_fallthru
      _
    // Predicated region
    $region46: #{bilstm_crf_attn_forward.1} parent=1 // pred_check
      _
    $region47: #{bilstm_crf_attn_forward.1} parent=1 // pred_check_branch
      %46 = sbr.rel (0) target = $region49
    $region48: #{bilstm_crf_attn_forward.1} parent=1 // pred_region
      _
    $region49: #{bilstm_crf_attn_forward.1} parent=1 // pred_fallthru
      _
    // Predicated region
    $region50: #{bilstm_crf_attn_forward.1} parent=1 // pred_check
      _
    $region51: #{bilstm_crf_attn_forward.1} parent=1 // pred_check_branch
      %48 = sbr.rel (0) target = $region53
    $region52: #{bilstm_crf_attn_forward.1} parent=1 // pred_region
      _
    $region53: #{bilstm_crf_attn_forward.1} parent=1 // pred_fallthru
      _
    %v49 = vld [vmem:[%s0] sm:$0xff]
    %v50 = vld [vmem:[%s0 + $0x8] sm:$0xff]
    %v51 = vld [vmem:[%s1] sm:$0xff]
    %v52 = vld [vmem:[%s1 + $0x8] sm:$0xff]
    %v53 = vld [vmem:[%s1 + $0x10] sm:$0xff]
    %v54 = vld [vmem:[%s1 + $0x18] sm:$0xff]
    %v55 = vld [vmem:[%s1 + $0x20] sm:$0xff]
    %v56 = vld [vmem:[%s1 + $0x28] sm:$0xff]
    %v57 = vld [vmem:[%s1 + $0x30] sm:$0xff]
    %v58 = vld [vmem:[%s1 + $0x38] sm:$0xff]
    %v59 = vld [vmem:[%s4] sm:$0x3]
    %v61 = vlaneseq
    %v62 = vshrl.u32 %v61, 7
    %v63 = vsub.s32 0, %v62
    %v64 = vrot.slane %v59, %v63
    %v65 = vlaneseq
    %v66 = vshrl.u32 %v65, 7
    %v67 = vsub.s32 1, %v66
    %v68 = vrot.slane %v59, %v67
    %vm71 = vcmask 261120
    %v73 = vsel %vm71, %v49, 0
    %v76 = vsel %vm71, %v50, 0
    %78 = vmatprep.subr.mxu0 0.0
    %79 = vmatpush1.msra.mxu0 0.0
    %80 = vmatprep.subr.mxu0 0.0
    %81 = vmatpush1.msra.mxu0 0.0
    %82 = vmatprep.subr.mxu0 0.0
    %83 = vmatpush1.msra.mxu0 0.0
    %84 = vmatprep.subr.mxu0 0.0
    %85 = vmatpush1.msra.mxu0 0.0
    %86 = vmatprep.subr.mxu0 0.0
    %87 = vmatpush1.msra.mxu0 0.0
    %88 = vmatprep.subr.mxu0 0.0
    %89 = vmatpush1.msra.mxu0 0.0
    %90 = vmatprep.subr.mxu0 0.0
    %91 = vmatpush1.msra.mxu0 0.0
    %92 = vmatprep.subr.mxu0 0.0
    %93 = vmatpush1.msra.mxu0 0.0
    %94 = vmatprep.subr.mxu0 0.0
    %95 = vmatpush1.msra.mxu0 0.0
    %96 = vmatprep.subr.mxu0 0.0
    %97 = vmatpush1.msra.mxu0 0.0
    %98 = vmatprep.subr.mxu0 0.0
    %99 = vmatpush1.msra.mxu0 0.0
    %100 = vmatprep.subr.mxu0 0.0
    %101 = vmatpush1.msra.mxu0 0.0
    %102 = vmatprep.subr.mxu0 %v58
    %103 = vmatpush1.msra.mxu0 %v57
    %104 = vmatprep.subr.mxu0 %v56
    %105 = vmatpush1.msra.mxu0 %v55
    %106 = vmatprep.subr.mxu0 %v54
    %107 = vmatpush1.msra.mxu0 %v53
    %108 = vmatprep.subr.mxu0 %v52
    %109 = vmatpush1.msra.mxu0 %v51
    %110 = vmatprep.subr.mxu0 0.0
    %111 = vmatpush2.msra.mxu0 0.0
    %112 = vmatprep.subr.mxu0 0.0
    %113 = vmatpush2.msra.mxu0 0.0
    %114 = vmatprep.subr.mxu0 0.0
    %115 = vmatpush2.msra.mxu0 0.0
    %116 = vmatprep.subr.mxu0 0.0
    %117 = vmatpush2.msra.mxu0 0.0
    %118 = vmatprep.subr.mxu0 0.0
    %119 = vmatpush2.msra.mxu0 0.0
    %120 = vmatprep.subr.mxu0 0.0
    %121 = vmatpush2.msra.mxu0 0.0
    %122 = vmatprep.subr.mxu0 0.0
    %123 = vmatpush2.msra.mxu0 0.0
    %124 = vmatprep.subr.mxu0 0.0
    %125 = vmatpush2.msra.mxu0 0.0
    %126 = vmatprep.subr.mxu0 0.0
    %127 = vmatpush2.msra.mxu0 0.0
    %128 = vmatprep.subr.mxu0 0.0
    %129 = vmatpush2.msra.mxu0 0.0
    %130 = vmatprep.subr.mxu0 0.0
    %131 = vmatpush2.msra.mxu0 0.0
    %132 = vmatprep.subr.mxu0 0.0
    %133 = vmatpush2.msra.mxu0 0.0
    %134 = vmatprep.subr.mxu0 0.0
    %135 = vmatpush2.msra.mxu0 0.0
    %136 = vmatprep.subr.mxu0 0.0
    %137 = vmatpush2.msra.mxu0 0.0
    %138 = vmatprep.subr.mxu0 0.0
    %139 = vmatpush2.msra.mxu0 0.0
    %140 = vmatprep.subr.mxu0 0.0
    %141 = vmatpush2.msra.mxu0 0.0
    %142 = vmatprep.mubr.f32.mxu0 0.0
    %143 = vmatmul.mubr.f32.gmra.mxu0 %v73
    %v144 = vpop.f32.mrf.mxu0
    %v145 = vadd.f32 %v64, %v144
    %v146 = vpop.f32.mrf.mxu0
    %v147 = vadd.f32 %v68, %v146
    %148 = vmatprep.mubr.f32.mxu0 0.0
    %149 = vmatmul.mubr.f32.gmra.mxu0 %v76
    %v150 = vpop.f32.mrf.mxu0
    %v151 = vadd.f32 %v64, %v150
    %v152 = vpop.f32.mrf.mxu0
    %v153 = vadd.f32 %v68, %v152
    %154 = vdwg.mxu0
    %v155 = vld [vmem:[%s2] sm:$0xff]
    %v156 = vld [vmem:[%s2 + $0x8] sm:$0xff]
    %v157 = vld [vmem:[%s2 + $0x10] sm:$0xff]
    %v158 = vld [vmem:[%s2 + $0x18] sm:$0xff]
    %v159 = vld [vmem:[%s3] sm:$0xff]
    %v160 = vld [vmem:[%s3 + $0x8] sm:$0xff]
    %v161 = vld [vmem:[%s3 + $0x10] sm:$0xff]
    %v162 = vld [vmem:[%s3 + $0x18] sm:$0xff]
    %v164 = vsel %vm71, 0.0, 0
    %166 = vmatprep.subr.mxu0 0.0
    %167 = vmatpush1.msra.mxu0 0.0
    %168 = vmatprep.subr.mxu0 0.0
    %169 = vmatpush1.msra.mxu0 0.0
    %170 = vmatprep.subr.mxu0 0.0
    %171 = vmatpush1.msra.mxu0 0.0
    %172 = vmatprep.subr.mxu0 0.0
    %173 = vmatpush1.msra.mxu0 0.0
    %174 = vmatprep.subr.mxu0 0.0
    %175 = vmatpush1.msra.mxu0 0.0
    %176 = vmatprep.subr.mxu0 0.0
    %177 = vmatpush1.msra.mxu0 0.0
    %178 = vmatprep.subr.mxu0 0.0
    %179 = vmatpush1.msra.mxu0 0.0
    %180 = vmatprep.subr.mxu0 0.0
    %181 = vmatpush1.msra.mxu0 0.0
    %182 = vmatprep.subr.mxu0 0.0
    %183 = vmatpush1.msra.mxu0 0.0
    %184 = vmatprep.subr.mxu0 0.0
    %185 = vmatpush1.msra.mxu0 0.0
    %186 = vmatprep.subr.mxu0 0.0
    %187 = vmatpush1.msra.mxu0 0.0
    %188 = vmatprep.subr.mxu0 0.0
    %189 = vmatpush1.msra.mxu0 0.0
    %190 = vmatprep.subr.mxu0 0.0
    %191 = vmatpush1.msra.mxu0 %v158
    %192 = vmatprep.subr.mxu0 0.0
    %193 = vmatpush1.msra.mxu0 %v157
    %194 = vmatprep.subr.mxu0 0.0
    %195 = vmatpush1.msra.mxu0 %v156
    %196 = vmatprep.subr.mxu0 0.0
    %197 = vmatpush1.msra.mxu0 %v155
    %198 = vmatprep.subr.mxu0 0.0
    %199 = vmatpush2.msra.mxu0 0.0
    %200 = vmatprep.subr.mxu0 0.0
    %201 = vmatpush2.msra.mxu0 0.0
    %202 = vmatprep.subr.mxu0 0.0
    %203 = vmatpush2.msra.mxu0 0.0
    %204 = vmatprep.subr.mxu0 0.0
    %205 = vmatpush2.msra.mxu0 0.0
    %206 = vmatprep.subr.mxu0 0.0
    %207 = vmatpush2.msra.mxu0 0.0
    %208 = vmatprep.subr.mxu0 0.0
    %209 = vmatpush2.msra.mxu0 0.0
    %210 = vmatprep.subr.mxu0 0.0
    %211 = vmatpush2.msra.mxu0 0.0
    %212 = vmatprep.subr.mxu0 0.0
    %213 = vmatpush2.msra.mxu0 0.0
    %214 = vmatprep.subr.mxu0 0.0
    %215 = vmatpush2.msra.mxu0 0.0
    %216 = vmatprep.subr.mxu0 0.0
    %217 = vmatpush2.msra.mxu0 0.0
    %218 = vmatprep.subr.mxu0 0.0
    %219 = vmatpush2.msra.mxu0 0.0
    %220 = vmatprep.subr.mxu0 0.0
    %221 = vmatpush2.msra.mxu0 0.0
    %222 = vmatprep.subr.mxu0 0.0
    %223 = vmatpush2.msra.mxu0 0.0
    %224 = vmatprep.subr.mxu0 0.0
    %225 = vmatpush2.msra.mxu0 0.0
    %226 = vmatprep.subr.mxu0 0.0
    %227 = vmatpush2.msra.mxu0 0.0
    %228 = vmatprep.subr.mxu0 0.0
    %229 = vmatpush2.msra.mxu0 0.0
    %230 = vmatprep.mubr.f32.mxu0 0.0
    %231 = vmatmul.mubr.f32.gmra.mxu0 %v164
    %v232 = vpop.f32.mrf.mxu0
    %v233 = vadd.f32 0.0, %v232
    %v234 = vpop.f32.mrf.mxu0
    %235 = vdwg.mxu0
    %v236 = vadd.f32 %v145, %v233
    %237 = vmatprep.subr.mxu0 0.0
    %238 = vmatpush1.msra.mxu0 0.0
    %239 = vmatprep.subr.mxu0 0.0
    %240 = vmatpush1.msra.mxu0 0.0
    %241 = vmatprep.subr.mxu0 0.0
    %242 = vmatpush1.msra.mxu0 0.0
    %243 = vmatprep.subr.mxu0 0.0
    %244 = vmatpush1.msra.mxu0 0.0
    %245 = vmatprep.subr.mxu0 0.0
    %246 = vmatpush1.msra.mxu0 0.0
    %247 = vmatprep.subr.mxu0 0.0
    %248 = vmatpush1.msra.mxu0 0.0
    %249 = vmatprep.subr.mxu0 0.0
    %250 = vmatpush1.msra.mxu0 0.0
    %251 = vmatprep.subr.mxu0 0.0
    %252 = vmatpush1.msra.mxu0 0.0
    %253 = vmatprep.subr.mxu0 0.0
    %254 = vmatpush1.msra.mxu0 0.0
    %255 = vmatprep.subr.mxu0 0.0
    %256 = vmatpush1.msra.mxu0 0.0
    %257 = vmatprep.subr.mxu0 0.0
    %258 = vmatpush1.msra.mxu0 0.0
    %259 = vmatprep.subr.mxu0 0.0
    %260 = vmatpush1.msra.mxu0 0.0
    %261 = vmatprep.subr.mxu0 0.0
    %262 = vmatpush1.msra.mxu0 %v162
    %263 = vmatprep.subr.mxu0 0.0
    %264 = vmatpush1.msra.mxu0 %v161
    %265 = vmatprep.subr.mxu0 0.0
    %266 = vmatpush1.msra.mxu0 %v160
    %267 = vmatprep.subr.mxu0 0.0
    %268 = vmatpush1.msra.mxu0 %v159
    %269 = vmatprep.subr.mxu0 0.0
    %270 = vmatpush2.msra.mxu0 0.0
    %271 = vmatprep.subr.mxu0 0.0
    %272 = vmatpush2.msra.mxu0 0.0
    %273 = vmatprep.subr.mxu0 0.0
    %274 = vmatpush2.msra.mxu0 0.0
    %275 = vmatprep.subr.mxu0 0.0
    %276 = vmatpush2.msra.mxu0 0.0
    %277 = vmatprep.subr.mxu0 0.0
    %278 = vmatpush2.msra.mxu0 0.0
    %279 = vmatprep.subr.mxu0 0.0
    %280 = vmatpush2.msra.mxu0 0.0
    %281 = vmatprep.subr.mxu0 0.0
    %282 = vmatpush2.msra.mxu0 0.0
    %283 = vmatprep.subr.mxu0 0.0
    %284 = vmatpush2.msra.mxu0 0.0
    %285 = vmatprep.subr.mxu0 0.0
    %286 = vmatpush2.msra.mxu0 0.0
    %287 = vmatprep.subr.mxu0 0.0
    %288 = vmatpush2.msra.mxu0 0.0
    %289 = vmatprep.subr.mxu0 0.0
    %290 = vmatpush2.msra.mxu0 0.0
    %291 = vmatprep.subr.mxu0 0.0
    %292 = vmatpush2.msra.mxu0 0.0
    %293 = vmatprep.subr.mxu0 0.0
    %294 = vmatpush2.msra.mxu0 0.0
    %295 = vmatprep.subr.mxu0 0.0
    %296 = vmatpush2.msra.mxu0 0.0
    %297 = vmatprep.subr.mxu0 0.0
    %298 = vmatpush2.msra.mxu0 0.0
    %299 = vmatprep.subr.mxu0 0.0
    %300 = vmatpush2.msra.mxu0 0.0
    %301 = vmatprep.mubr.f32.mxu0 0.0
    %302 = vmatmul.mubr.f32.gmra.mxu0 %v164
    %v303 = vpop.f32.mrf.mxu0
    %v304 = vadd.f32 0.0, %v303
    %v305 = vpop.f32.mrf.mxu0
    %306 = vdwg.mxu0
    %v308 = vrot.slane %v304, 2
    %v310 = vadd.f32 %v153, %v308
    %v311 = vxor.u32 %v236, 2147483648
    %v312 = vmul.f32 %v311, 1.442695
    %v313 = vpow.pop %v312
    %v314 = vadd.f32 %v313, 1.0
    %v315 = vrcp.pop %v314
    %v316 = vmul.f32 1.0, %v315
    %v317 = vtanh.pop %v236
    %v318 = vmul.f32 %v316, 0.0
    %320 = vrot.lane.b32.xlu0 %v317, 64
    %v321 = vpop.permute.xlu0 %320
    %v323 = vmul.f32 %v316, %v321
    %325 = vrot.lane.b32.xlu0 %v323, 32
    %v326 = vpop.permute.xlu0 %325
    %v328 = vadd.f32 %v318, %v326
    %v329 = vtanh.pop %v328
    %331 = vrot.lane.b32.xlu0 %v329, 64
    %v332 = vpop.permute.xlu0 %331
    %v334 = vmul.f32 %v316, %v332
    %v335 = vxor.u32 %v310, 2147483648
    %v336 = vmul.f32 %v335, 1.442695
    %v337 = vpow.pop %v336
    %v338 = vadd.f32 %v337, 1.0
    %v339 = vrcp.pop %v338
    %v340 = vmul.f32 1.0, %v339
    %v341 = vtanh.pop %v310
    %v342 = vmul.f32 %v340, 0.0
    %344 = vrot.lane.b32.xlu0 %v341, 64
    %v345 = vpop.permute.xlu0 %344
    %v347 = vmul.f32 %v340, %v345
    %349 = vrot.lane.b32.xlu0 %v347, 32
    %v350 = vpop.permute.xlu0 %349
    %v352 = vadd.f32 %v342, %v350
    %v353 = vtanh.pop %v352
    %355 = vrot.lane.b32.xlu0 %v353, 64
    %v356 = vpop.permute.xlu0 %355
    %v358 = vmul.f32 %v340, %v356
    %360 = vrot.lane.b32.xlu0 %v334, 32
    %v361 = vpop.permute.xlu0 %360
    %v362 = vsel %vm71, %v361, 0
    %364 = vmatprep.subr.mxu0 0.0
    %365 = vmatpush1.msra.mxu0 0.0
    %366 = vmatprep.subr.mxu0 0.0
    %367 = vmatpush1.msra.mxu0 0.0
    %368 = vmatprep.subr.mxu0 0.0
    %369 = vmatpush1.msra.mxu0 0.0
    %370 = vmatprep.subr.mxu0 0.0
    %371 = vmatpush1.msra.mxu0 0.0
    %372 = vmatprep.subr.mxu0 0.0
    %373 = vmatpush1.msra.mxu0 0.0
    %374 = vmatprep.subr.mxu0 0.0
    %375 = vmatpush1.msra.mxu0 0.0
    %376 = vmatprep.subr.mxu0 0.0
    %377 = vmatpush1.msra.mxu0 0.0
    %378 = vmatprep.subr.mxu0 0.0
    %379 = vmatpush1.msra.mxu0 0.0
    %380 = vmatprep.subr.mxu0 0.0
    %381 = vmatpush1.msra.mxu0 0.0
    %382 = vmatprep.subr.mxu0 0.0
    %383 = vmatpush1.msra.mxu0 0.0
    %384 = vmatprep.subr.mxu0 0.0
    %385 = vmatpush1.msra.mxu0 0.0
    %386 = vmatprep.subr.mxu0 0.0
    %387 = vmatpush1.msra.mxu0 0.0
    %388 = vmatprep.subr.mxu0 0.0
    %389 = vmatpush1.msra.mxu0 %v158
    %390 = vmatprep.subr.mxu0 0.0
    %391 = vmatpush1.msra.mxu0 %v157
    %392 = vmatprep.subr.mxu0 0.0
    %393 = vmatpush1.msra.mxu0 %v156
    %394 = vmatprep.subr.mxu0 0.0
    %395 = vmatpush1.msra.mxu0 %v155
    %396 = vmatprep.subr.mxu0 0.0
    %397 = vmatpush2.msra.mxu0 0.0
    %398 = vmatprep.subr.mxu0 0.0
    %399 = vmatpush2.msra.mxu0 0.0
    %400 = vmatprep.subr.mxu0 0.0
    %401 = vmatpush2.msra.mxu0 0.0
    %402 = vmatprep.subr.mxu0 0.0
    %403 = vmatpush2.msra.mxu0 0.0
    %404 = vmatprep.subr.mxu0 0.0
    %405 = vmatpush2.msra.mxu0 0.0
    %406 = vmatprep.subr.mxu0 0.0
    %407 = vmatpush2.msra.mxu0 0.0
    %408 = vmatprep.subr.mxu0 0.0
    %409 = vmatpush2.msra.mxu0 0.0
    %410 = vmatprep.subr.mxu0 0.0
    %411 = vmatpush2.msra.mxu0 0.0
    %412 = vmatprep.subr.mxu0 0.0
    %413 = vmatpush2.msra.mxu0 0.0
    %414 = vmatprep.subr.mxu0 0.0
    %415 = vmatpush2.msra.mxu0 0.0
    %416 = vmatprep.subr.mxu0 0.0
    %417 = vmatpush2.msra.mxu0 0.0
    %418 = vmatprep.subr.mxu0 0.0
    %419 = vmatpush2.msra.mxu0 0.0
    %420 = vmatprep.subr.mxu0 0.0
    %421 = vmatpush2.msra.mxu0 0.0
    %422 = vmatprep.subr.mxu0 0.0
    %423 = vmatpush2.msra.mxu0 0.0
    %424 = vmatprep.subr.mxu0 0.0
    %425 = vmatpush2.msra.mxu0 0.0
    %426 = vmatprep.subr.mxu0 0.0
    %427 = vmatpush2.msra.mxu0 0.0
    %428 = vmatprep.mubr.f32.mxu0 0.0
    %429 = vmatmul.mubr.f32.gmra.mxu0 %v362
    %v430 = vpop.f32.mrf.mxu0
    %v431 = vadd.f32 0.0, %v430
    %v432 = vpop.f32.mrf.mxu0
    %433 = vdwg.mxu0
    %v435 = vrot.slane %v431, 6
    %v437 = vadd.f32 %v145, %v435
    %v439 = vrot.slane %v358, 6
    %440 = vrot.lane.b32.xlu0 %v439, 32
    %v441 = vpop.permute.xlu0 %440
    %v442 = vsel %vm71, %v441, 0
    %444 = vmatprep.subr.mxu0 0.0
    %445 = vmatpush1.msra.mxu0 0.0
    %446 = vmatprep.subr.mxu0 0.0
    %447 = vmatpush1.msra.mxu0 0.0
    %448 = vmatprep.subr.mxu0 0.0
    %449 = vmatpush1.msra.mxu0 0.0
    %450 = vmatprep.subr.mxu0 0.0
    %451 = vmatpush1.msra.mxu0 0.0
    %452 = vmatprep.subr.mxu0 0.0
    %453 = vmatpush1.msra.mxu0 0.0
    %454 = vmatprep.subr.mxu0 0.0
    %455 = vmatpush1.msra.mxu0 0.0
    %456 = vmatprep.subr.mxu0 0.0
    %457 = vmatpush1.msra.mxu0 0.0
    %458 = vmatprep.subr.mxu0 0.0
    %459 = vmatpush1.msra.mxu0 0.0
    %460 = vmatprep.subr.mxu0 0.0
    %461 = vmatpush1.msra.mxu0 0.0
    %462 = vmatprep.subr.mxu0 0.0
    %463 = vmatpush1.msra.mxu0 0.0
    %464 = vmatprep.subr.mxu0 0.0
    %465 = vmatpush1.msra.mxu0 0.0
    %466 = vmatprep.subr.mxu0 0.0
    %467 = vmatpush1.msra.mxu0 0.0
    %468 = vmatprep.subr.mxu0 0.0
    %469 = vmatpush1.msra.mxu0 %v162
    %470 = vmatprep.subr.mxu0 0.0
    %471 = vmatpush1.msra.mxu0 %v161
    %472 = vmatprep.subr.mxu0 0.0
    %473 = vmatpush1.msra.mxu0 %v160
    %474 = vmatprep.subr.mxu0 0.0
    %475 = vmatpush1.msra.mxu0 %v159
    %476 = vmatprep.subr.mxu0 0.0
    %477 = vmatpush2.msra.mxu0 0.0
    %478 = vmatprep.subr.mxu0 0.0
    %479 = vmatpush2.msra.mxu0 0.0
    %480 = vmatprep.subr.mxu0 0.0
    %481 = vmatpush2.msra.mxu0 0.0
    %482 = vmatprep.subr.mxu0 0.0
    %483 = vmatpush2.msra.mxu0 0.0
    %484 = vmatprep.subr.mxu0 0.0
    %485 = vmatpush2.msra.mxu0 0.0
    %486 = vmatprep.subr.mxu0 0.0
    %487 = vmatpush2.msra.mxu0 0.0
    %488 = vmatprep.subr.mxu0 0.0
    %489 = vmatpush2.msra.mxu0 0.0
    %490 = vmatprep.subr.mxu0 0.0
    %491 = vmatpush2.msra.mxu0 0.0
    %492 = vmatprep.subr.mxu0 0.0
    %493 = vmatpush2.msra.mxu0 0.0
    %494 = vmatprep.subr.mxu0 0.0
    %495 = vmatpush2.msra.mxu0 0.0
    %496 = vmatprep.subr.mxu0 0.0
    %497 = vmatpush2.msra.mxu0 0.0
    %498 = vmatprep.subr.mxu0 0.0
    %499 = vmatpush2.msra.mxu0 0.0
    %500 = vmatprep.subr.mxu0 0.0
    %501 = vmatpush2.msra.mxu0 0.0
    %502 = vmatprep.subr.mxu0 0.0
    %503 = vmatpush2.msra.mxu0 0.0
    %504 = vmatprep.subr.mxu0 0.0
    %505 = vmatpush2.msra.mxu0 0.0
    %506 = vmatprep.subr.mxu0 0.0
    %507 = vmatpush2.msra.mxu0 0.0
    %508 = vmatprep.mubr.f32.mxu0 0.0
    %509 = vmatmul.mubr.f32.gmra.mxu0 %v442
    %v510 = vpop.f32.mrf.mxu0
    %v511 = vadd.f32 0.0, %v510
    %v512 = vpop.f32.mrf.mxu0
    %513 = vdwg.mxu0
    %v515 = vrot.slane %v511, 4
    %v517 = vadd.f32 %v153, %v515
    %v518 = vxor.u32 %v437, 2147483648
    %v519 = vmul.f32 %v518, 1.442695
    %v520 = vpow.pop %v519
    %v521 = vadd.f32 %v520, 1.0
    %v522 = vrcp.pop %v521
    %v523 = vmul.f32 1.0, %v522
    %v524 = vtanh.pop %v437
    %v526 = vrot.slane %v328, 6
    %v528 = vmul.f32 %v523, %v526
    %530 = vrot.lane.b32.xlu0 %v524, 64
    %v531 = vpop.permute.xlu0 %530
    %v533 = vmul.f32 %v523, %v531
    %535 = vrot.lane.b32.xlu0 %v533, 32
    %v536 = vpop.permute.xlu0 %535
    %v538 = vadd.f32 %v528, %v536
    %v539 = vtanh.pop %v538
    %541 = vrot.lane.b32.xlu0 %v539, 64
    %v542 = vpop.permute.xlu0 %541
    %v544 = vmul.f32 %v523, %v542
    %v545 = vxor.u32 %v517, 2147483648
    %v546 = vmul.f32 %v545, 1.442695
    %v547 = vpow.pop %v546
    %v548 = vadd.f32 %v547, 1.0
    %v549 = vrcp.pop %v548
    %v550 = vmul.f32 1.0, %v549
    %v551 = vtanh.pop %v517
    %v553 = vrot.slane %v352, 2
    %v555 = vmul.f32 %v550, %v553
    %557 = vrot.lane.b32.xlu0 %v551, 64
    %v558 = vpop.permute.xlu0 %557
    %v560 = vmul.f32 %v550, %v558
    %562 = vrot.lane.b32.xlu0 %v560, 32
    %v563 = vpop.permute.xlu0 %562
    %v565 = vadd.f32 %v555, %v563
    %v566 = vtanh.pop %v565
    %568 = vrot.lane.b32.xlu0 %v566, 64
    %v569 = vpop.permute.xlu0 %568
    %v571 = vmul.f32 %v550, %v569
    %v573 = vrot.slane %v544, 2
    %574 = vrot.lane.b32.xlu0 %v573, 32
    %v575 = vpop.permute.xlu0 %574
    %v576 = vsel %vm71, %v575, 0
    %578 = vmatprep.subr.mxu0 0.0
    %579 = vmatpush1.msra.mxu0 0.0
    %580 = vmatprep.subr.mxu0 0.0
    %581 = vmatpush1.msra.mxu0 0.0
    %582 = vmatprep.subr.mxu0 0.0
    %583 = vmatpush1.msra.mxu0 0.0
    %584 = vmatprep.subr.mxu0 0.0
    %585 = vmatpush1.msra.mxu0 0.0
    %586 = vmatprep.subr.mxu0 0.0
    %587 = vmatpush1.msra.mxu0 0.0
    %588 = vmatprep.subr.mxu0 0.0
    %589 = vmatpush1.msra.mxu0 0.0
    %590 = vmatprep.subr.mxu0 0.0
    %591 = vmatpush1.msra.mxu0 0.0
    %592 = vmatprep.subr.mxu0 0.0
    %593 = vmatpush1.msra.mxu0 0.0
    %594 = vmatprep.subr.mxu0 0.0
    %595 = vmatpush1.msra.mxu0 0.0
    %596 = vmatprep.subr.mxu0 0.0
    %597 = vmatpush1.msra.mxu0 0.0
    %598 = vmatprep.subr.mxu0 0.0
    %599 = vmatpush1.msra.mxu0 0.0
    %600 = vmatprep.subr.mxu0 0.0
    %601 = vmatpush1.msra.mxu0 0.0
    %602 = vmatprep.subr.mxu0 0.0
    %603 = vmatpush1.msra.mxu0 %v158
    %604 = vmatprep.subr.mxu0 0.0
    %605 = vmatpush1.msra.mxu0 %v157
    %606 = vmatprep.subr.mxu0 0.0
    %607 = vmatpush1.msra.mxu0 %v156
    %608 = vmatprep.subr.mxu0 0.0
    %609 = vmatpush1.msra.mxu0 %v155
    %610 = vmatprep.subr.mxu0 0.0
    %611 = vmatpush2.msra.mxu0 0.0
    %612 = vmatprep.subr.mxu0 0.0
    %613 = vmatpush2.msra.mxu0 0.0
    %614 = vmatprep.subr.mxu0 0.0
    %615 = vmatpush2.msra.mxu0 0.0
    %616 = vmatprep.subr.mxu0 0.0
    %617 = vmatpush2.msra.mxu0 0.0
    %618 = vmatprep.subr.mxu0 0.0
    %619 = vmatpush2.msra.mxu0 0.0
    %620 = vmatprep.subr.mxu0 0.0
    %621 = vmatpush2.msra.mxu0 0.0
    %622 = vmatprep.subr.mxu0 0.0
    %623 = vmatpush2.msra.mxu0 0.0
    %624 = vmatprep.subr.mxu0 0.0
    %625 = vmatpush2.msra.mxu0 0.0
    %626 = vmatprep.subr.mxu0 0.0
    %627 = vmatpush2.msra.mxu0 0.0
    %628 = vmatprep.subr.mxu0 0.0
    %629 = vmatpush2.msra.mxu0 0.0
    %630 = vmatprep.subr.mxu0 0.0
    %631 = vmatpush2.msra.mxu0 0.0
    %632 = vmatprep.subr.mxu0 0.0
    %633 = vmatpush2.msra.mxu0 0.0
    %634 = vmatprep.subr.mxu0 0.0
    %635 = vmatpush2.msra.mxu0 0.0
    %636 = vmatprep.subr.mxu0 0.0
    %637 = vmatpush2.msra.mxu0 0.0
    %638 = vmatprep.subr.mxu0 0.0
    %639 = vmatpush2.msra.mxu0 0.0
    %640 = vmatprep.subr.mxu0 0.0
    %641 = vmatpush2.msra.mxu0 0.0
    %642 = vmatprep.mubr.f32.mxu0 0.0
    %643 = vmatmul.mubr.f32.gmra.mxu0 %v576
    %v644 = vpop.f32.mrf.mxu0
    %v645 = vadd.f32 0.0, %v644
    %v646 = vpop.f32.mrf.mxu0
    %647 = vdwg.mxu0
    %v649 = vrot.slane %v645, 4
    %v651 = vadd.f32 %v145, %v649
    %v653 = vrot.slane %v571, 4
    %654 = vrot.lane.b32.xlu0 %v653, 32
    %v655 = vpop.permute.xlu0 %654
    %v656 = vsel %vm71, %v655, 0
    %658 = vmatprep.subr.mxu0 0.0
    %659 = vmatpush1.msra.mxu0 0.0
    %660 = vmatprep.subr.mxu0 0.0
    %661 = vmatpush1.msra.mxu0 0.0
    %662 = vmatprep.subr.mxu0 0.0
    %663 = vmatpush1.msra.mxu0 0.0
    %664 = vmatprep.subr.mxu0 0.0
    %665 = vmatpush1.msra.mxu0 0.0
    %666 = vmatprep.subr.mxu0 0.0
    %667 = vmatpush1.msra.mxu0 0.0
    %668 = vmatprep.subr.mxu0 0.0
    %669 = vmatpush1.msra.mxu0 0.0
    %670 = vmatprep.subr.mxu0 0.0
    %671 = vmatpush1.msra.mxu0 0.0
    %672 = vmatprep.subr.mxu0 0.0
    %673 = vmatpush1.msra.mxu0 0.0
    %674 = vmatprep.subr.mxu0 0.0
    %675 = vmatpush1.msra.mxu0 0.0
    %676 = vmatprep.subr.mxu0 0.0
    %677 = vmatpush1.msra.mxu0 0.0
    %678 = vmatprep.subr.mxu0 0.0
    %679 = vmatpush1.msra.mxu0 0.0
    %680 = vmatprep.subr.mxu0 0.0
    %681 = vmatpush1.msra.mxu0 0.0
    %682 = vmatprep.subr.mxu0 0.0
    %683 = vmatpush1.msra.mxu0 %v162
    %684 = vmatprep.subr.mxu0 0.0
    %685 = vmatpush1.msra.mxu0 %v161
    %686 = vmatprep.subr.mxu0 0.0
    %687 = vmatpush1.msra.mxu0 %v160
    %688 = vmatprep.subr.mxu0 0.0
    %689 = vmatpush1.msra.mxu0 %v159
    %690 = vmatprep.subr.mxu0 0.0
    %691 = vmatpush2.msra.mxu0 0.0
    %692 = vmatprep.subr.mxu0 0.0
    %693 = vmatpush2.msra.mxu0 0.0
    %694 = vmatprep.subr.mxu0 0.0
    %695 = vmatpush2.msra.mxu0 0.0
    %696 = vmatprep.subr.mxu0 0.0
    %697 = vmatpush2.msra.mxu0 0.0
    %698 = vmatprep.subr.mxu0 0.0
    %699 = vmatpush2.msra.mxu0 0.0
    %700 = vmatprep.subr.mxu0 0.0
    %701 = vmatpush2.msra.mxu0 0.0
    %702 = vmatprep.subr.mxu0 0.0
    %703 = vmatpush2.msra.mxu0 0.0
    %704 = vmatprep.subr.mxu0 0.0
    %705 = vmatpush2.msra.mxu0 0.0
    %706 = vmatprep.subr.mxu0 0.0
    %707 = vmatpush2.msra.mxu0 0.0
    %708 = vmatprep.subr.mxu0 0.0
    %709 = vmatpush2.msra.mxu0 0.0
    %710 = vmatprep.subr.mxu0 0.0
    %711 = vmatpush2.msra.mxu0 0.0
    %712 = vmatprep.subr.mxu0 0.0
    %713 = vmatpush2.msra.mxu0 0.0
    %714 = vmatprep.subr.mxu0 0.0
    %715 = vmatpush2.msra.mxu0 0.0
    %716 = vmatprep.subr.mxu0 0.0
    %717 = vmatpush2.msra.mxu0 0.0
    %718 = vmatprep.subr.mxu0 0.0
    %719 = vmatpush2.msra.mxu0 0.0
    %720 = vmatprep.subr.mxu0 0.0
    %721 = vmatpush2.msra.mxu0 0.0
    %722 = vmatprep.mubr.f32.mxu0 0.0
    %723 = vmatmul.mubr.f32.gmra.mxu0 %v656
    %v724 = vpop.f32.mrf.mxu0
    %v725 = vadd.f32 0.0, %v724
    %v726 = vpop.f32.mrf.mxu0
    %727 = vdwg.mxu0
    %v729 = vrot.slane %v725, 6
    %v731 = vadd.f32 %v153, %v729
    %v732 = vxor.u32 %v651, 2147483648
    %v733 = vmul.f32 %v732, 1.442695
    %v734 = vpow.pop %v733
    %v735 = vadd.f32 %v734, 1.0
    %v736 = vrcp.pop %v735
    %v737 = vmul.f32 1.0, %v736
    %v738 = vtanh.pop %v651
    %v740 = vrot.slane %v538, 6
    %v742 = vmul.f32 %v737, %v740
    %744 = vrot.lane.b32.xlu0 %v738, 64
    %v745 = vpop.permute.xlu0 %744
    %v747 = vmul.f32 %v737, %v745
    %749 = vrot.lane.b32.xlu0 %v747, 32
    %v750 = vpop.permute.xlu0 %749
    %v752 = vadd.f32 %v742, %v750
    %v753 = vtanh.pop %v752
    %755 = vrot.lane.b32.xlu0 %v753, 64
    %v756 = vpop.permute.xlu0 %755
    %v758 = vmul.f32 %v737, %v756
    %v759 = vxor.u32 %v731, 2147483648
    %v760 = vmul.f32 %v759, 1.442695
    %v761 = vpow.pop %v760
    %v762 = vadd.f32 %v761, 1.0
    %v763 = vrcp.pop %v762
    %v764 = vmul.f32 1.0, %v763
    %v765 = vtanh.pop %v731
    %v767 = vrot.slane %v565, 2
    %v769 = vmul.f32 %v764, %v767
    %771 = vrot.lane.b32.xlu0 %v765, 64
    %v772 = vpop.permute.xlu0 %771
    %v774 = vmul.f32 %v764, %v772
    %776 = vrot.lane.b32.xlu0 %v774, 32
    %v777 = vpop.permute.xlu0 %776
    %v779 = vadd.f32 %v769, %v777
    %v780 = vtanh.pop %v779
    %782 = vrot.lane.b32.xlu0 %v780, 64
    %v783 = vpop.permute.xlu0 %782
    %v785 = vmul.f32 %v764, %v783
    %v787 = vrot.slane %v758, 4
    %788 = vrot.lane.b32.xlu0 %v787, 32
    %v789 = vpop.permute.xlu0 %788
    %v790 = vsel %vm71, %v789, 0
    %792 = vmatprep.subr.mxu0 0.0
    %793 = vmatpush1.msra.mxu0 0.0
    %794 = vmatprep.subr.mxu0 0.0
    %795 = vmatpush1.msra.mxu0 0.0
    %796 = vmatprep.subr.mxu0 0.0
    %797 = vmatpush1.msra.mxu0 0.0
    %798 = vmatprep.subr.mxu0 0.0
    %799 = vmatpush1.msra.mxu0 0.0
    %800 = vmatprep.subr.mxu0 0.0
    %801 = vmatpush1.msra.mxu0 0.0
    %802 = vmatprep.subr.mxu0 0.0
    %803 = vmatpush1.msra.mxu0 0.0
    %804 = vmatprep.subr.mxu0 0.0
    %805 = vmatpush1.msra.mxu0 0.0
    %806 = vmatprep.subr.mxu0 0.0
    %807 = vmatpush1.msra.mxu0 0.0
    %808 = vmatprep.subr.mxu0 0.0
    %809 = vmatpush1.msra.mxu0 0.0
    %810 = vmatprep.subr.mxu0 0.0
    %811 = vmatpush1.msra.mxu0 0.0
    %812 = vmatprep.subr.mxu0 0.0
    %813 = vmatpush1.msra.mxu0 0.0
    %814 = vmatprep.subr.mxu0 0.0
    %815 = vmatpush1.msra.mxu0 0.0
    %816 = vmatprep.subr.mxu0 0.0
    %817 = vmatpush1.msra.mxu0 %v158
    %818 = vmatprep.subr.mxu0 0.0
    %819 = vmatpush1.msra.mxu0 %v157
    %820 = vmatprep.subr.mxu0 0.0
    %821 = vmatpush1.msra.mxu0 %v156
    %822 = vmatprep.subr.mxu0 0.0
    %823 = vmatpush1.msra.mxu0 %v155
    %824 = vmatprep.subr.mxu0 0.0
    %825 = vmatpush2.msra.mxu0 0.0
    %826 = vmatprep.subr.mxu0 0.0
    %827 = vmatpush2.msra.mxu0 0.0
    %828 = vmatprep.subr.mxu0 0.0
    %829 = vmatpush2.msra.mxu0 0.0
    %830 = vmatprep.subr.mxu0 0.0
    %831 = vmatpush2.msra.mxu0 0.0
    %832 = vmatprep.subr.mxu0 0.0
    %833 = vmatpush2.msra.mxu0 0.0
    %834 = vmatprep.subr.mxu0 0.0
    %835 = vmatpush2.msra.mxu0 0.0
    %836 = vmatprep.subr.mxu0 0.0
    %837 = vmatpush2.msra.mxu0 0.0
    %838 = vmatprep.subr.mxu0 0.0
    %839 = vmatpush2.msra.mxu0 0.0
    %840 = vmatprep.subr.mxu0 0.0
    %841 = vmatpush2.msra.mxu0 0.0
    %842 = vmatprep.subr.mxu0 0.0
    %843 = vmatpush2.msra.mxu0 0.0
    %844 = vmatprep.subr.mxu0 0.0
    %845 = vmatpush2.msra.mxu0 0.0
    %846 = vmatprep.subr.mxu0 0.0
    %847 = vmatpush2.msra.mxu0 0.0
    %848 = vmatprep.subr.mxu0 0.0
    %849 = vmatpush2.msra.mxu0 0.0
    %850 = vmatprep.subr.mxu0 0.0
    %851 = vmatpush2.msra.mxu0 0.0
    %852 = vmatprep.subr.mxu0 0.0
    %853 = vmatpush2.msra.mxu0 0.0
    %854 = vmatprep.subr.mxu0 0.0
    %855 = vmatpush2.msra.mxu0 0.0
    %856 = vmatprep.mubr.f32.mxu0 0.0
    %857 = vmatmul.mubr.f32.gmra.mxu0 %v790
    %v858 = vpop.f32.mrf.mxu0
    %v859 = vadd.f32 0.0, %v858
    %v860 = vpop.f32.mrf.mxu0
    %861 = vdwg.mxu0
    %v863 = vrot.slane %v859, 2
    %v865 = vadd.f32 %v145, %v863
    %v867 = vrot.slane %v785, 2
    %868 = vrot.lane.b32.xlu0 %v867, 32
    %v869 = vpop.permute.xlu0 %868
    %v870 = vsel %vm71, %v869, 0
    %872 = vmatprep.subr.mxu0 0.0
    %873 = vmatpush1.msra.mxu0 0.0
    %874 = vmatprep.subr.mxu0 0.0
    %875 = vmatpush1.msra.mxu0 0.0
    %876 = vmatprep.subr.mxu0 0.0
    %877 = vmatpush1.msra.mxu0 0.0
    %878 = vmatprep.subr.mxu0 0.0
    %879 = vmatpush1.msra.mxu0 0.0
    %880 = vmatprep.subr.mxu0 0.0
    %881 = vmatpush1.msra.mxu0 0.0
    %882 = vmatprep.subr.mxu0 0.0
    %883 = vmatpush1.msra.mxu0 0.0
    %884 = vmatprep.subr.mxu0 0.0
    %885 = vmatpush1.msra.mxu0 0.0
    %886 = vmatprep.subr.mxu0 0.0
    %887 = vmatpush1.msra.mxu0 0.0
    %888 = vmatprep.subr.mxu0 0.0
    %889 = vmatpush1.msra.mxu0 0.0
    %890 = vmatprep.subr.mxu0 0.0
    %891 = vmatpush1.msra.mxu0 0.0
    %892 = vmatprep.subr.mxu0 0.0
    %893 = vmatpush1.msra.mxu0 0.0
    %894 = vmatprep.subr.mxu0 0.0
    %895 = vmatpush1.msra.mxu0 0.0
    %896 = vmatprep.subr.mxu0 0.0
    %897 = vmatpush1.msra.mxu0 %v162
    %898 = vmatprep.subr.mxu0 0.0
    %899 = vmatpush1.msra.mxu0 %v161
    %900 = vmatprep.subr.mxu0 0.0
    %901 = vmatpush1.msra.mxu0 %v160
    %902 = vmatprep.subr.mxu0 0.0
    %903 = vmatpush1.msra.mxu0 %v159
    %904 = vmatprep.subr.mxu0 0.0
    %905 = vmatpush2.msra.mxu0 0.0
    %906 = vmatprep.subr.mxu0 0.0
    %907 = vmatpush2.msra.mxu0 0.0
    %908 = vmatprep.subr.mxu0 0.0
    %909 = vmatpush2.msra.mxu0 0.0
    %910 = vmatprep.subr.mxu0 0.0
    %911 = vmatpush2.msra.mxu0 0.0
    %912 = vmatprep.subr.mxu0 0.0
    %913 = vmatpush2.msra.mxu0 0.0
    %914 = vmatprep.subr.mxu0 0.0
    %915 = vmatpush2.msra.mxu0 0.0
    %916 = vmatprep.subr.mxu0 0.0
    %917 = vmatpush2.msra.mxu0 0.0
    %918 = vmatprep.subr.mxu0 0.0
    %919 = vmatpush2.msra.mxu0 0.0
    %920 = vmatprep.subr.mxu0 0.0
    %921 = vmatpush2.msra.mxu0 0.0
    %922 = vmatprep.subr.mxu0 0.0
    %923 = vmatpush2.msra.mxu0 0.0
    %924 = vmatprep.subr.mxu0 0.0
    %925 = vmatpush2.msra.mxu0 0.0
    %926 = vmatprep.subr.mxu0 0.0
    %927 = vmatpush2.msra.mxu0 0.0
    %928 = vmatprep.subr.mxu0 0.0
    %929 = vmatpush2.msra.mxu0 0.0
    %930 = vmatprep.subr.mxu0 0.0
    %931 = vmatpush2.msra.mxu0 0.0
    %932 = vmatprep.subr.mxu0 0.0
    %933 = vmatpush2.msra.mxu0 0.0
    %934 = vmatprep.subr.mxu0 0.0
    %935 = vmatpush2.msra.mxu0 0.0
    %936 = vmatprep.mubr.f32.mxu0 0.0
    %937 = vmatmul.mubr.f32.gmra.mxu0 %v870
    %v938 = vpop.f32.mrf.mxu0
    %v939 = vadd.f32 0.0, %v938
    %v940 = vpop.f32.mrf.mxu0
    %941 = vdwg.mxu0
    %v942 = vadd.f32 %v153, %v939
    %v943 = vxor.u32 %v865, 2147483648
    %v944 = vmul.f32 %v943, 1.442695
    %v945 = vpow.pop %v944
    %v946 = vadd.f32 %v945, 1.0
    %v947 = vrcp.pop %v946
    %v948 = vmul.f32 1.0, %v947
    %v949 = vtanh.pop %v865
    %v951 = vrot.slane %v752, 6
    %v953 = vmul.f32 %v948, %v951
    %955 = vrot.lane.b32.xlu0 %v949, 64
    %v956 = vpop.permute.xlu0 %955
    %v958 = vmul.f32 %v948, %v956
    %960 = vrot.lane.b32.xlu0 %v958, 32
    %v961 = vpop.permute.xlu0 %960
    %v963 = vadd.f32 %v953, %v961
    %v964 = vtanh.pop %v963
    %966 = vrot.lane.b32.xlu0 %v964, 64
    %v967 = vpop.permute.xlu0 %966
    %v969 = vmul.f32 %v948, %v967
    %v970 = vxor.u32 %v942, 2147483648
    %v971 = vmul.f32 %v970, 1.442695
    %v972 = vpow.pop %v971
    %v973 = vadd.f32 %v972, 1.0
    %v974 = vrcp.pop %v973
    %v975 = vmul.f32 1.0, %v974
    %v976 = vtanh.pop %v942
    %v978 = vrot.slane %v779, 2
    %v980 = vmul.f32 %v975, %v978
    %982 = vrot.lane.b32.xlu0 %v976, 64
    %v983 = vpop.permute.xlu0 %982
    %v985 = vmul.f32 %v975, %v983
    %987 = vrot.lane.b32.xlu0 %v985, 32
    %v988 = vpop.permute.xlu0 %987
    %v990 = vadd.f32 %v980, %v988
    %v991 = vtanh.pop %v990
    %993 = vrot.lane.b32.xlu0 %v991, 64
    %v994 = vpop.permute.xlu0 %993
    %v996 = vmul.f32 %v975, %v994
    %v998 = vrot.slane %v969, 6
    %999 = vrot.lane.b32.xlu0 %v998, 32
    %v1000 = vpop.permute.xlu0 %999
    %v1001 = vsel %vm71, %v1000, 0
    %1003 = vmatprep.subr.mxu0 0.0
    %1004 = vmatpush1.msra.mxu0 0.0
    %1005 = vmatprep.subr.mxu0 0.0
    %1006 = vmatpush1.msra.mxu0 0.0
    %1007 = vmatprep.subr.mxu0 0.0
    %1008 = vmatpush1.msra.mxu0 0.0
    %1009 = vmatprep.subr.mxu0 0.0
    %1010 = vmatpush1.msra.mxu0 0.0
    %1011 = vmatprep.subr.mxu0 0.0
    %1012 = vmatpush1.msra.mxu0 0.0
    %1013 = vmatprep.subr.mxu0 0.0
    %1014 = vmatpush1.msra.mxu0 0.0
    %1015 = vmatprep.subr.mxu0 0.0
    %1016 = vmatpush1.msra.mxu0 0.0
    %1017 = vmatprep.subr.mxu0 0.0
    %1018 = vmatpush1.msra.mxu0 0.0
    %1019 = vmatprep.subr.mxu0 0.0
    %1020 = vmatpush1.msra.mxu0 0.0
    %1021 = vmatprep.subr.mxu0 0.0
    %1022 = vmatpush1.msra.mxu0 0.0
    %1023 = vmatprep.subr.mxu0 0.0
    %1024 = vmatpush1.msra.mxu0 0.0
    %1025 = vmatprep.subr.mxu0 0.0
    %1026 = vmatpush1.msra.mxu0 0.0
    %1027 = vmatprep.subr.mxu0 0.0
    %1028 = vmatpush1.msra.mxu0 %v158
    %1029 = vmatprep.subr.mxu0 0.0
    %1030 = vmatpush1.msra.mxu0 %v157
    %1031 = vmatprep.subr.mxu0 0.0
    %1032 = vmatpush1.msra.mxu0 %v156
    %1033 = vmatprep.subr.mxu0 0.0
    %1034 = vmatpush1.msra.mxu0 %v155
    %1035 = vmatprep.subr.mxu0 0.0
    %1036 = vmatpush2.msra.mxu0 0.0
    %1037 = vmatprep.subr.mxu0 0.0
    %1038 = vmatpush2.msra.mxu0 0.0
    %1039 = vmatprep.subr.mxu0 0.0
    %1040 = vmatpush2.msra.mxu0 0.0
    %1041 = vmatprep.subr.mxu0 0.0
    %1042 = vmatpush2.msra.mxu0 0.0
    %1043 = vmatprep.subr.mxu0 0.0
    %1044 = vmatpush2.msra.mxu0 0.0
    %1045 = vmatprep.subr.mxu0 0.0
    %1046 = vmatpush2.msra.mxu0 0.0
    %1047 = vmatprep.subr.mxu0 0.0
    %1048 = vmatpush2.msra.mxu0 0.0
    %1049 = vmatprep.subr.mxu0 0.0
    %1050 = vmatpush2.msra.mxu0 0.0
    %1051 = vmatprep.subr.mxu0 0.0
    %1052 = vmatpush2.msra.mxu0 0.0
    %1053 = vmatprep.subr.mxu0 0.0
    %1054 = vmatpush2.msra.mxu0 0.0
    %1055 = vmatprep.subr.mxu0 0.0
    %1056 = vmatpush2.msra.mxu0 0.0
    %1057 = vmatprep.subr.mxu0 0.0
    %1058 = vmatpush2.msra.mxu0 0.0
    %1059 = vmatprep.subr.mxu0 0.0
    %1060 = vmatpush2.msra.mxu0 0.0
    %1061 = vmatprep.subr.mxu0 0.0
    %1062 = vmatpush2.msra.mxu0 0.0
    %1063 = vmatprep.subr.mxu0 0.0
    %1064 = vmatpush2.msra.mxu0 0.0
    %1065 = vmatprep.subr.mxu0 0.0
    %1066 = vmatpush2.msra.mxu0 0.0
    %1067 = vmatprep.mubr.f32.mxu0 0.0
    %1068 = vmatmul.mubr.f32.gmra.mxu0 %v1001
    %v1069 = vpop.f32.mrf.mxu0
    %v1070 = vadd.f32 0.0, %v1069
    %v1071 = vpop.f32.mrf.mxu0
    %1072 = vdwg.mxu0
    %v1073 = vadd.f32 %v151, %v1070
    %1075 = vrot.lane.b32.xlu0 %v996, 32
    %v1076 = vpop.permute.xlu0 %1075
    %v1077 = vsel %vm71, %v1076, 0
    %1079 = vmatprep.subr.mxu0 0.0
    %1080 = vmatpush1.msra.mxu0 0.0
    %1081 = vmatprep.subr.mxu0 0.0
    %1082 = vmatpush1.msra.mxu0 0.0
    %1083 = vmatprep.subr.mxu0 0.0
    %1084 = vmatpush1.msra.mxu0 0.0
    %1085 = vmatprep.subr.mxu0 0.0
    %1086 = vmatpush1.msra.mxu0 0.0
    %1087 = vmatprep.subr.mxu0 0.0
    %1088 = vmatpush1.msra.mxu0 0.0
    %1089 = vmatprep.subr.mxu0 0.0
    %1090 = vmatpush1.msra.mxu0 0.0
    %1091 = vmatprep.subr.mxu0 0.0
    %1092 = vmatpush1.msra.mxu0 0.0
    %1093 = vmatprep.subr.mxu0 0.0
    %1094 = vmatpush1.msra.mxu0 0.0
    %1095 = vmatprep.subr.mxu0 0.0
    %1096 = vmatpush1.msra.mxu0 0.0
    %1097 = vmatprep.subr.mxu0 0.0
    %1098 = vmatpush1.msra.mxu0 0.0
    %1099 = vmatprep.subr.mxu0 0.0
    %1100 = vmatpush1.msra.mxu0 0.0
    %1101 = vmatprep.subr.mxu0 0.0
    %1102 = vmatpush1.msra.mxu0 0.0
    %1103 = vmatprep.subr.mxu0 0.0
    %1104 = vmatpush1.msra.mxu0 %v162
    %1105 = vmatprep.subr.mxu0 0.0
    %1106 = vmatpush1.msra.mxu0 %v161
    %1107 = vmatprep.subr.mxu0 0.0
    %1108 = vmatpush1.msra.mxu0 %v160
    %1109 = vmatprep.subr.mxu0 0.0
    %1110 = vmatpush1.msra.mxu0 %v159
    %1111 = vmatprep.subr.mxu0 0.0
    %1112 = vmatpush2.msra.mxu0 0.0
    %1113 = vmatprep.subr.mxu0 0.0
    %1114 = vmatpush2.msra.mxu0 0.0
    %1115 = vmatprep.subr.mxu0 0.0
    %1116 = vmatpush2.msra.mxu0 0.0
    %1117 = vmatprep.subr.mxu0 0.0
    %1118 = vmatpush2.msra.mxu0 0.0
    %1119 = vmatprep.subr.mxu0 0.0
    %1120 = vmatpush2.msra.mxu0 0.0
    %1121 = vmatprep.subr.mxu0 0.0
    %1122 = vmatpush2.msra.mxu0 0.0
    %1123 = vmatprep.subr.mxu0 0.0
    %1124 = vmatpush2.msra.mxu0 0.0
    %1125 = vmatprep.subr.mxu0 0.0
    %1126 = vmatpush2.msra.mxu0 0.0
    %1127 = vmatprep.subr.mxu0 0.0
    %1128 = vmatpush2.msra.mxu0 0.0
    %1129 = vmatprep.subr.mxu0 0.0
    %1130 = vmatpush2.msra.mxu0 0.0
    %1131 = vmatprep.subr.mxu0 0.0
    %1132 = vmatpush2.msra.mxu0 0.0
    %1133 = vmatprep.subr.mxu0 0.0
    %1134 = vmatpush2.msra.mxu0 0.0
    %1135 = vmatprep.subr.mxu0 0.0
    %1136 = vmatpush2.msra.mxu0 0.0
    %1137 = vmatprep.subr.mxu0 0.0
    %1138 = vmatpush2.msra.mxu0 0.0
    %1139 = vmatprep.subr.mxu0 0.0
    %1140 = vmatpush2.msra.mxu0 0.0
    %1141 = vmatprep.subr.mxu0 0.0
    %1142 = vmatpush2.msra.mxu0 0.0
    %1143 = vmatprep.mubr.f32.mxu0 0.0
    %1144 = vmatmul.mubr.f32.gmra.mxu0 %v1077
    %v1145 = vpop.f32.mrf.mxu0
    %v1146 = vadd.f32 0.0, %v1145
    %v1147 = vpop.f32.mrf.mxu0
    %1148 = vdwg.mxu0
    %v1150 = vrot.slane %v1146, 2
    %v1152 = vadd.f32 %v147, %v1150
    %v1153 = vxor.u32 %v1073, 2147483648
    %v1154 = vmul.f32 %v1153, 1.442695
    %v1155 = vpow.pop %v1154
    %v1156 = vadd.f32 %v1155, 1.0
    %v1157 = vrcp.pop %v1156
    %v1158 = vmul.f32 1.0, %v1157
    %v1159 = vtanh.pop %v1073
    %v1161 = vrot.slane %v963, 6
    %v1163 = vmul.f32 %v1158, %v1161
    %1165 = vrot.lane.b32.xlu0 %v1159, 64
    %v1166 = vpop.permute.xlu0 %1165
    %v1168 = vmul.f32 %v1158, %v1166
    %1170 = vrot.lane.b32.xlu0 %v1168, 32
    %v1171 = vpop.permute.xlu0 %1170
    %v1173 = vadd.f32 %v1163, %v1171
    %v1174 = vtanh.pop %v1173
    %1176 = vrot.lane.b32.xlu0 %v1174, 64
    %v1177 = vpop.permute.xlu0 %1176
    %v1179 = vmul.f32 %v1158, %v1177
    %v1180 = vxor.u32 %v1152, 2147483648
    %v1181 = vmul.f32 %v1180, 1.442695
    %v1182 = vpow.pop %v1181
    %v1183 = vadd.f32 %v1182, 1.0
    %v1184 = vrcp.pop %v1183
    %v1185 = vmul.f32 1.0, %v1184
    %v1186 = vtanh.pop %v1152
    %v1188 = vrot.slane %v990, 2
    %v1190 = vmul.f32 %v1185, %v1188
    %1192 = vrot.lane.b32.xlu0 %v1186, 64
    %v1193 = vpop.permute.xlu0 %1192
    %v1195 = vmul.f32 %v1185, %v1193
    %1197 = vrot.lane.b32.xlu0 %v1195, 32
    %v1198 = vpop.permute.xlu0 %1197
    %v1200 = vadd.f32 %v1190, %v1198
    %v1201 = vtanh.pop %v1200
    %1203 = vrot.lane.b32.xlu0 %v1201, 64
    %v1204 = vpop.permute.xlu0 %1203
    %v1206 = vmul.f32 %v1185, %v1204
    %1208 = vrot.lane.b32.xlu0 %v1179, 32
    %v1209 = vpop.permute.xlu0 %1208
    %v1210 = vsel %vm71, %v1209, 0
    %1212 = vmatprep.subr.mxu0 0.0
    %1213 = vmatpush1.msra.mxu0 0.0
    %1214 = vmatprep.subr.mxu0 0.0
    %1215 = vmatpush1.msra.mxu0 0.0
    %1216 = vmatprep.subr.mxu0 0.0
    %1217 = vmatpush1.msra.mxu0 0.0
    %1218 = vmatprep.subr.mxu0 0.0
    %1219 = vmatpush1.msra.mxu0 0.0
    %1220 = vmatprep.subr.mxu0 0.0
    %1221 = vmatpush1.msra.mxu0 0.0
    %1222 = vmatprep.subr.mxu0 0.0
    %1223 = vmatpush1.msra.mxu0 0.0
    %1224 = vmatprep.subr.mxu0 0.0
    %1225 = vmatpush1.msra.mxu0 0.0
    %1226 = vmatprep.subr.mxu0 0.0
    %1227 = vmatpush1.msra.mxu0 0.0
    %1228 = vmatprep.subr.mxu0 0.0
    %1229 = vmatpush1.msra.mxu0 0.0
    %1230 = vmatprep.subr.mxu0 0.0
    %1231 = vmatpush1.msra.mxu0 0.0
    %1232 = vmatprep.subr.mxu0 0.0
    %1233 = vmatpush1.msra.mxu0 0.0
    %1234 = vmatprep.subr.mxu0 0.0
    %1235 = vmatpush1.msra.mxu0 0.0
    %1236 = vmatprep.subr.mxu0 0.0
    %1237 = vmatpush1.msra.mxu0 %v158
    %1238 = vmatprep.subr.mxu0 0.0
    %1239 = vmatpush1.msra.mxu0 %v157
    %1240 = vmatprep.subr.mxu0 0.0
    %1241 = vmatpush1.msra.mxu0 %v156
    %1242 = vmatprep.subr.mxu0 0.0
    %1243 = vmatpush1.msra.mxu0 %v155
    %1244 = vmatprep.subr.mxu0 0.0
    %1245 = vmatpush2.msra.mxu0 0.0
    %1246 = vmatprep.subr.mxu0 0.0
    %1247 = vmatpush2.msra.mxu0 0.0
    %1248 = vmatprep.subr.mxu0 0.0
    %1249 = vmatpush2.msra.mxu0 0.0
    %1250 = vmatprep.subr.mxu0 0.0
    %1251 = vmatpush2.msra.mxu0 0.0
    %1252 = vmatprep.subr.mxu0 0.0
    %1253 = vmatpush2.msra.mxu0 0.0
    %1254 = vmatprep.subr.mxu0 0.0
    %1255 = vmatpush2.msra.mxu0 0.0
    %1256 = vmatprep.subr.mxu0 0.0
    %1257 = vmatpush2.msra.mxu0 0.0
    %1258 = vmatprep.subr.mxu0 0.0
    %1259 = vmatpush2.msra.mxu0 0.0
    %1260 = vmatprep.subr.mxu0 0.0
    %1261 = vmatpush2.msra.mxu0 0.0
    %1262 = vmatprep.subr.mxu0 0.0
    %1263 = vmatpush2.msra.mxu0 0.0
    %1264 = vmatprep.subr.mxu0 0.0
    %1265 = vmatpush2.msra.mxu0 0.0
    %1266 = vmatprep.subr.mxu0 0.0
    %1267 = vmatpush2.msra.mxu0 0.0
    %1268 = vmatprep.subr.mxu0 0.0
    %1269 = vmatpush2.msra.mxu0 0.0
    %1270 = vmatprep.subr.mxu0 0.0
    %1271 = vmatpush2.msra.mxu0 0.0
    %1272 = vmatprep.subr.mxu0 0.0
    %1273 = vmatpush2.msra.mxu0 0.0
    %1274 = vmatprep.subr.mxu0 0.0
    %1275 = vmatpush2.msra.mxu0 0.0
    %1276 = vmatprep.mubr.f32.mxu0 0.0
    %1277 = vmatmul.mubr.f32.gmra.mxu0 %v1210
    %v1278 = vpop.f32.mrf.mxu0
    %v1279 = vadd.f32 0.0, %v1278
    %v1280 = vpop.f32.mrf.mxu0
    %1281 = vdwg.mxu0
    %v1283 = vrot.slane %v1279, 6
    %v1285 = vadd.f32 %v151, %v1283
    %v1287 = vrot.slane %v1206, 6
    %1288 = vrot.lane.b32.xlu0 %v1287, 32
    %v1289 = vpop.permute.xlu0 %1288
    %v1290 = vsel %vm71, %v1289, 0
    %1292 = vmatprep.subr.mxu0 0.0
    %1293 = vmatpush1.msra.mxu0 0.0
    %1294 = vmatprep.subr.mxu0 0.0
    %1295 = vmatpush1.msra.mxu0 0.0
    %1296 = vmatprep.subr.mxu0 0.0
    %1297 = vmatpush1.msra.mxu0 0.0
    %1298 = vmatprep.subr.mxu0 0.0
    %1299 = vmatpush1.msra.mxu0 0.0
    %1300 = vmatprep.subr.mxu0 0.0
    %1301 = vmatpush1.msra.mxu0 0.0
    %1302 = vmatprep.subr.mxu0 0.0
    %1303 = vmatpush1.msra.mxu0 0.0
    %1304 = vmatprep.subr.mxu0 0.0
    %1305 = vmatpush1.msra.mxu0 0.0
    %1306 = vmatprep.subr.mxu0 0.0
    %1307 = vmatpush1.msra.mxu0 0.0
    %1308 = vmatprep.subr.mxu0 0.0
    %1309 = vmatpush1.msra.mxu0 0.0
    %1310 = vmatprep.subr.mxu0 0.0
    %1311 = vmatpush1.msra.mxu0 0.0
    %1312 = vmatprep.subr.mxu0 0.0
    %1313 = vmatpush1.msra.mxu0 0.0
    %1314 = vmatprep.subr.mxu0 0.0
    %1315 = vmatpush1.msra.mxu0 0.0
    %1316 = vmatprep.subr.mxu0 0.0
    %1317 = vmatpush1.msra.mxu0 %v162
    %1318 = vmatprep.subr.mxu0 0.0
    %1319 = vmatpush1.msra.mxu0 %v161
    %1320 = vmatprep.subr.mxu0 0.0
    %1321 = vmatpush1.msra.mxu0 %v160
    %1322 = vmatprep.subr.mxu0 0.0
    %1323 = vmatpush1.msra.mxu0 %v159
    %1324 = vmatprep.subr.mxu0 0.0
    %1325 = vmatpush2.msra.mxu0 0.0
    %1326 = vmatprep.subr.mxu0 0.0
    %1327 = vmatpush2.msra.mxu0 0.0
    %1328 = vmatprep.subr.mxu0 0.0
    %1329 = vmatpush2.msra.mxu0 0.0
    %1330 = vmatprep.subr.mxu0 0.0
    %1331 = vmatpush2.msra.mxu0 0.0
    %1332 = vmatprep.subr.mxu0 0.0
    %1333 = vmatpush2.msra.mxu0 0.0
    %1334 = vmatprep.subr.mxu0 0.0
    %1335 = vmatpush2.msra.mxu0 0.0
    %1336 = vmatprep.subr.mxu0 0.0
    %1337 = vmatpush2.msra.mxu0 0.0
    %1338 = vmatprep.subr.mxu0 0.0
    %1339 = vmatpush2.msra.mxu0 0.0
    %1340 = vmatprep.subr.mxu0 0.0
    %1341 = vmatpush2.msra.mxu0 0.0
    %1342 = vmatprep.subr.mxu0 0.0
    %1343 = vmatpush2.msra.mxu0 0.0
    %1344 = vmatprep.subr.mxu0 0.0
    %1345 = vmatpush2.msra.mxu0 0.0
    %1346 = vmatprep.subr.mxu0 0.0
    %1347 = vmatpush2.msra.mxu0 0.0
    %1348 = vmatprep.subr.mxu0 0.0
    %1349 = vmatpush2.msra.mxu0 0.0
    %1350 = vmatprep.subr.mxu0 0.0
    %1351 = vmatpush2.msra.mxu0 0.0
    %1352 = vmatprep.subr.mxu0 0.0
    %1353 = vmatpush2.msra.mxu0 0.0
    %1354 = vmatprep.subr.mxu0 0.0
    %1355 = vmatpush2.msra.mxu0 0.0
    %1356 = vmatprep.mubr.f32.mxu0 0.0
    %1357 = vmatmul.mubr.f32.gmra.mxu0 %v1290
    %v1358 = vpop.f32.mrf.mxu0
    %v1359 = vadd.f32 0.0, %v1358
    %v1360 = vpop.f32.mrf.mxu0
    %1361 = vdwg.mxu0
    %v1363 = vrot.slane %v1359, 4
    %v1365 = vadd.f32 %v147, %v1363
    %v1366 = vxor.u32 %v1285, 2147483648
    %v1367 = vmul.f32 %v1366, 1.442695
    %v1368 = vpow.pop %v1367
    %v1369 = vadd.f32 %v1368, 1.0
    %v1370 = vrcp.pop %v1369
    %v1371 = vmul.f32 1.0, %v1370
    %v1372 = vtanh.pop %v1285
    %v1374 = vrot.slane %v1173, 6
    %v1376 = vmul.f32 %v1371, %v1374
    %1378 = vrot.lane.b32.xlu0 %v1372, 64
    %v1379 = vpop.permute.xlu0 %1378
    %v1381 = vmul.f32 %v1371, %v1379
    %1383 = vrot.lane.b32.xlu0 %v1381, 32
    %v1384 = vpop.permute.xlu0 %1383
    %v1386 = vadd.f32 %v1376, %v1384
    %v1387 = vtanh.pop %v1386
    %1389 = vrot.lane.b32.xlu0 %v1387, 64
    %v1390 = vpop.permute.xlu0 %1389
    %v1392 = vmul.f32 %v1371, %v1390
    %v1393 = vxor.u32 %v1365, 2147483648
    %v1394 = vmul.f32 %v1393, 1.442695
    %v1395 = vpow.pop %v1394
    %v1396 = vadd.f32 %v1395, 1.0
    %v1397 = vrcp.pop %v1396
    %v1398 = vmul.f32 1.0, %v1397
    %v1399 = vtanh.pop %v1365
    %v1401 = vrot.slane %v1200, 2
    %v1403 = vmul.f32 %v1398, %v1401
    %1405 = vrot.lane.b32.xlu0 %v1399, 64
    %v1406 = vpop.permute.xlu0 %1405
    %v1408 = vmul.f32 %v1398, %v1406
    %1410 = vrot.lane.b32.xlu0 %v1408, 32
    %v1411 = vpop.permute.xlu0 %1410
    %v1413 = vadd.f32 %v1403, %v1411
    %v1414 = vtanh.pop %v1413
    %1416 = vrot.lane.b32.xlu0 %v1414, 64
    %v1417 = vpop.permute.xlu0 %1416
    %v1419 = vmul.f32 %v1398, %v1417
    %v1421 = vrot.slane %v1392, 2
    %1422 = vrot.lane.b32.xlu0 %v1421, 32
    %v1423 = vpop.permute.xlu0 %1422
    %v1424 = vsel %vm71, %v1423, 0
    %1426 = vmatprep.subr.mxu0 0.0
    %1427 = vmatpush1.msra.mxu0 0.0
    %1428 = vmatprep.subr.mxu0 0.0
    %1429 = vmatpush1.msra.mxu0 0.0
    %1430 = vmatprep.subr.mxu0 0.0
    %1431 = vmatpush1.msra.mxu0 0.0
    %1432 = vmatprep.subr.mxu0 0.0
    %1433 = vmatpush1.msra.mxu0 0.0
    %1434 = vmatprep.subr.mxu0 0.0
    %1435 = vmatpush1.msra.mxu0 0.0
    %1436 = vmatprep.subr.mxu0 0.0
    %1437 = vmatpush1.msra.mxu0 0.0
    %1438 = vmatprep.subr.mxu0 0.0
    %1439 = vmatpush1.msra.mxu0 0.0
    %1440 = vmatprep.subr.mxu0 0.0
    %1441 = vmatpush1.msra.mxu0 0.0
    %1442 = vmatprep.subr.mxu0 0.0
    %1443 = vmatpush1.msra.mxu0 0.0
    %1444 = vmatprep.subr.mxu0 0.0
    %1445 = vmatpush1.msra.mxu0 0.0
    %1446 = vmatprep.subr.mxu0 0.0
    %1447 = vmatpush1.msra.mxu0 0.0
    %1448 = vmatprep.subr.mxu0 0.0
    %1449 = vmatpush1.msra.mxu0 0.0
    %1450 = vmatprep.subr.mxu0 0.0
    %1451 = vmatpush1.msra.mxu0 %v158
    %1452 = vmatprep.subr.mxu0 0.0
    %1453 = vmatpush1.msra.mxu0 %v157
    %1454 = vmatprep.subr.mxu0 0.0
    %1455 = vmatpush1.msra.mxu0 %v156
    %1456 = vmatprep.subr.mxu0 0.0
    %1457 = vmatpush1.msra.mxu0 %v155
    %1458 = vmatprep.subr.mxu0 0.0
    %1459 = vmatpush2.msra.mxu0 0.0
    %1460 = vmatprep.subr.mxu0 0.0
    %1461 = vmatpush2.msra.mxu0 0.0
    %1462 = vmatprep.subr.mxu0 0.0
    %1463 = vmatpush2.msra.mxu0 0.0
    %1464 = vmatprep.subr.mxu0 0.0
    %1465 = vmatpush2.msra.mxu0 0.0
    %1466 = vmatprep.subr.mxu0 0.0
    %1467 = vmatpush2.msra.mxu0 0.0
    %1468 = vmatprep.subr.mxu0 0.0
    %1469 = vmatpush2.msra.mxu0 0.0
    %1470 = vmatprep.subr.mxu0 0.0
    %1471 = vmatpush2.msra.mxu0 0.0
    %1472 = vmatprep.subr.mxu0 0.0
    %1473 = vmatpush2.msra.mxu0 0.0
    %1474 = vmatprep.subr.mxu0 0.0
    %1475 = vmatpush2.msra.mxu0 0.0
    %1476 = vmatprep.subr.mxu0 0.0
    %1477 = vmatpush2.msra.mxu0 0.0
    %1478 = vmatprep.subr.mxu0 0.0
    %1479 = vmatpush2.msra.mxu0 0.0
    %1480 = vmatprep.subr.mxu0 0.0
    %1481 = vmatpush2.msra.mxu0 0.0
    %1482 = vmatprep.subr.mxu0 0.0
    %1483 = vmatpush2.msra.mxu0 0.0
    %1484 = vmatprep.subr.mxu0 0.0
    %1485 = vmatpush2.msra.mxu0 0.0
    %1486 = vmatprep.subr.mxu0 0.0
    %1487 = vmatpush2.msra.mxu0 0.0
    %1488 = vmatprep.subr.mxu0 0.0
    %1489 = vmatpush2.msra.mxu0 0.0
    %1490 = vmatprep.mubr.f32.mxu0 0.0
    %1491 = vmatmul.mubr.f32.gmra.mxu0 %v1424
    %v1492 = vpop.f32.mrf.mxu0
    %v1493 = vadd.f32 0.0, %v1492
    %v1494 = vpop.f32.mrf.mxu0
    %1495 = vdwg.mxu0
    %v1497 = vrot.slane %v1493, 4
    %v1499 = vadd.f32 %v151, %v1497
    %v1501 = vrot.slane %v1419, 4
    %1502 = vrot.lane.b32.xlu0 %v1501, 32
    %v1503 = vpop.permute.xlu0 %1502
    %v1504 = vsel %vm71, %v1503, 0
    %1506 = vmatprep.subr.mxu0 0.0
    %1507 = vmatpush1.msra.mxu0 0.0
    %1508 = vmatprep.subr.mxu0 0.0
    %1509 = vmatpush1.msra.mxu0 0.0
    %1510 = vmatprep.subr.mxu0 0.0
    %1511 = vmatpush1.msra.mxu0 0.0
    %1512 = vmatprep.subr.mxu0 0.0
    %1513 = vmatpush1.msra.mxu0 0.0
    %1514 = vmatprep.subr.mxu0 0.0
    %1515 = vmatpush1.msra.mxu0 0.0
    %1516 = vmatprep.subr.mxu0 0.0
    %1517 = vmatpush1.msra.mxu0 0.0
    %1518 = vmatprep.subr.mxu0 0.0
    %1519 = vmatpush1.msra.mxu0 0.0
    %1520 = vmatprep.subr.mxu0 0.0
    %1521 = vmatpush1.msra.mxu0 0.0
    %1522 = vmatprep.subr.mxu0 0.0
    %1523 = vmatpush1.msra.mxu0 0.0
    %1524 = vmatprep.subr.mxu0 0.0
    %1525 = vmatpush1.msra.mxu0 0.0
    %1526 = vmatprep.subr.mxu0 0.0
    %1527 = vmatpush1.msra.mxu0 0.0
    %1528 = vmatprep.subr.mxu0 0.0
    %1529 = vmatpush1.msra.mxu0 0.0
    %1530 = vmatprep.subr.mxu0 0.0
    %1531 = vmatpush1.msra.mxu0 %v162
    %1532 = vmatprep.subr.mxu0 0.0
    %1533 = vmatpush1.msra.mxu0 %v161
    %1534 = vmatprep.subr.mxu0 0.0
    %1535 = vmatpush1.msra.mxu0 %v160
    %1536 = vmatprep.subr.mxu0 0.0
    %1537 = vmatpush1.msra.mxu0 %v159
    %1538 = vmatprep.subr.mxu0 0.0
    %1539 = vmatpush2.msra.mxu0 0.0
    %1540 = vmatprep.subr.mxu0 0.0
    %1541 = vmatpush2.msra.mxu0 0.0
    %1542 = vmatprep.subr.mxu0 0.0
    %1543 = vmatpush2.msra.mxu0 0.0
    %1544 = vmatprep.subr.mxu0 0.0
    %1545 = vmatpush2.msra.mxu0 0.0
    %1546 = vmatprep.subr.mxu0 0.0
    %1547 = vmatpush2.msra.mxu0 0.0
    %1548 = vmatprep.subr.mxu0 0.0
    %1549 = vmatpush2.msra.mxu0 0.0
    %1550 = vmatprep.subr.mxu0 0.0
    %1551 = vmatpush2.msra.mxu0 0.0
    %1552 = vmatprep.subr.mxu0 0.0
    %1553 = vmatpush2.msra.mxu0 0.0
    %1554 = vmatprep.subr.mxu0 0.0
    %1555 = vmatpush2.msra.mxu0 0.0
    %1556 = vmatprep.subr.mxu0 0.0
    %1557 = vmatpush2.msra.mxu0 0.0
    %1558 = vmatprep.subr.mxu0 0.0
    %1559 = vmatpush2.msra.mxu0 0.0
    %1560 = vmatprep.subr.mxu0 0.0
    %1561 = vmatpush2.msra.mxu0 0.0
    %1562 = vmatprep.subr.mxu0 0.0
    %1563 = vmatpush2.msra.mxu0 0.0
    %1564 = vmatprep.subr.mxu0 0.0
    %1565 = vmatpush2.msra.mxu0 0.0
    %1566 = vmatprep.subr.mxu0 0.0
    %1567 = vmatpush2.msra.mxu0 0.0
    %1568 = vmatprep.subr.mxu0 0.0
    %1569 = vmatpush2.msra.mxu0 0.0
    %1570 = vmatprep.mubr.f32.mxu0 0.0
    %1571 = vmatmul.mubr.f32.gmra.mxu0 %v1504
    %v1572 = vpop.f32.mrf.mxu0
    %v1573 = vadd.f32 0.0, %v1572
    %v1574 = vpop.f32.mrf.mxu0
    %1575 = vdwg.mxu0
    %v1577 = vrot.slane %v1573, 6
    %v1579 = vadd.f32 %v147, %v1577
    %v1580 = vxor.u32 %v1499, 2147483648
    %v1581 = vmul.f32 %v1580, 1.442695
    %v1582 = vpow.pop %v1581
    %v1583 = vadd.f32 %v1582, 1.0
    %v1584 = vrcp.pop %v1583
    %v1585 = vmul.f32 1.0, %v1584
    %v1586 = vtanh.pop %v1499
    %v1588 = vrot.slane %v1386, 6
    %v1590 = vmul.f32 %v1585, %v1588
    %1592 = vrot.lane.b32.xlu0 %v1586, 64
    %v1593 = vpop.permute.xlu0 %1592
    %v1595 = vmul.f32 %v1585, %v1593
    %1597 = vrot.lane.b32.xlu0 %v1595, 32
    %v1598 = vpop.permute.xlu0 %1597
    %v1600 = vadd.f32 %v1590, %v1598
    %v1601 = vtanh.pop %v1600
    %1603 = vrot.lane.b32.xlu0 %v1601, 64
    %v1604 = vpop.permute.xlu0 %1603
    %v1606 = vmul.f32 %v1585, %v1604
    %v1607 = vxor.u32 %v1579, 2147483648
    %v1608 = vmul.f32 %v1607, 1.442695
    %v1609 = vpow.pop %v1608
    %v1610 = vadd.f32 %v1609, 1.0
    %v1611 = vrcp.pop %v1610
    %v1612 = vmul.f32 1.0, %v1611
    %v1613 = vtanh.pop %v1579
    %v1615 = vrot.slane %v1413, 2
    %v1617 = vmul.f32 %v1612, %v1615
    %1619 = vrot.lane.b32.xlu0 %v1613, 64
    %v1620 = vpop.permute.xlu0 %1619
    %v1622 = vmul.f32 %v1612, %v1620
    %1624 = vrot.lane.b32.xlu0 %v1622, 32
    %v1625 = vpop.permute.xlu0 %1624
    %v1627 = vadd.f32 %v1617, %v1625
    %v1628 = vtanh.pop %v1627
    %1630 = vrot.lane.b32.xlu0 %v1628, 64
    %v1631 = vpop.permute.xlu0 %1630
    %v1633 = vmul.f32 %v1612, %v1631
    %v1635 = vrot.slane %v1606, 4
    %1636 = vrot.lane.b32.xlu0 %v1635, 32
    %v1637 = vpop.permute.xlu0 %1636
    %v1638 = vsel %vm71, %v1637, 0
    %1640 = vmatprep.subr.mxu0 0.0
    %1641 = vmatpush1.msra.mxu0 0.0
    %1642 = vmatprep.subr.mxu0 0.0
    %1643 = vmatpush1.msra.mxu0 0.0
    %1644 = vmatprep.subr.mxu0 0.0
    %1645 = vmatpush1.msra.mxu0 0.0
    %1646 = vmatprep.subr.mxu0 0.0
    %1647 = vmatpush1.msra.mxu0 0.0
    %1648 = vmatprep.subr.mxu0 0.0
    %1649 = vmatpush1.msra.mxu0 0.0
    %1650 = vmatprep.subr.mxu0 0.0
    %1651 = vmatpush1.msra.mxu0 0.0
    %1652 = vmatprep.subr.mxu0 0.0
    %1653 = vmatpush1.msra.mxu0 0.0
    %1654 = vmatprep.subr.mxu0 0.0
    %1655 = vmatpush1.msra.mxu0 0.0
    %1656 = vmatprep.subr.mxu0 0.0
    %1657 = vmatpush1.msra.mxu0 0.0
    %1658 = vmatprep.subr.mxu0 0.0
    %1659 = vmatpush1.msra.mxu0 0.0
    %1660 = vmatprep.subr.mxu0 0.0
    %1661 = vmatpush1.msra.mxu0 0.0
    %1662 = vmatprep.subr.mxu0 0.0
    %1663 = vmatpush1.msra.mxu0 0.0
    %1664 = vmatprep.subr.mxu0 0.0
    %1665 = vmatpush1.msra.mxu0 %v158
    %1666 = vmatprep.subr.mxu0 0.0
    %1667 = vmatpush1.msra.mxu0 %v157
    %1668 = vmatprep.subr.mxu0 0.0
    %1669 = vmatpush1.msra.mxu0 %v156
    %1670 = vmatprep.subr.mxu0 0.0
    %1671 = vmatpush1.msra.mxu0 %v155
    %1672 = vmatprep.subr.mxu0 0.0
    %1673 = vmatpush2.msra.mxu0 0.0
    %1674 = vmatprep.subr.mxu0 0.0
    %1675 = vmatpush2.msra.mxu0 0.0
    %1676 = vmatprep.subr.mxu0 0.0
    %1677 = vmatpush2.msra.mxu0 0.0
    %1678 = vmatprep.subr.mxu0 0.0
    %1679 = vmatpush2.msra.mxu0 0.0
    %1680 = vmatprep.subr.mxu0 0.0
    %1681 = vmatpush2.msra.mxu0 0.0
    %1682 = vmatprep.subr.mxu0 0.0
    %1683 = vmatpush2.msra.mxu0 0.0
    %1684 = vmatprep.subr.mxu0 0.0
    %1685 = vmatpush2.msra.mxu0 0.0
    %1686 = vmatprep.subr.mxu0 0.0
    %1687 = vmatpush2.msra.mxu0 0.0
    %1688 = vmatprep.subr.mxu0 0.0
    %1689 = vmatpush2.msra.mxu0 0.0
    %1690 = vmatprep.subr.mxu0 0.0
    %1691 = vmatpush2.msra.mxu0 0.0
    %1692 = vmatprep.subr.mxu0 0.0
    %1693 = vmatpush2.msra.mxu0 0.0
    %1694 = vmatprep.subr.mxu0 0.0
    %1695 = vmatpush2.msra.mxu0 0.0
    %1696 = vmatprep.subr.mxu0 0.0
    %1697 = vmatpush2.msra.mxu0 0.0
    %1698 = vmatprep.subr.mxu0 0.0
    %1699 = vmatpush2.msra.mxu0 0.0
    %1700 = vmatprep.subr.mxu0 0.0
    %1701 = vmatpush2.msra.mxu0 0.0
    %1702 = vmatprep.subr.mxu0 0.0
    %1703 = vmatpush2.msra.mxu0 0.0
    %1704 = vmatprep.mubr.f32.mxu0 0.0
    %1705 = vmatmul.mubr.f32.gmra.mxu0 %v1638
    %v1706 = vpop.f32.mrf.mxu0
    %v1707 = vadd.f32 0.0, %v1706
    %v1708 = vpop.f32.mrf.mxu0
    %1709 = vdwg.mxu0
    %v1711 = vrot.slane %v1707, 2
    %v1713 = vadd.f32 %v151, %v1711
    %v1715 = vrot.slane %v1633, 2
    %1716 = vrot.lane.b32.xlu0 %v1715, 32
    %v1717 = vpop.permute.xlu0 %1716
    %v1718 = vsel %vm71, %v1717, 0
    %1720 = vmatprep.subr.mxu0 0.0
    %1721 = vmatpush1.msra.mxu0 0.0
    %1722 = vmatprep.subr.mxu0 0.0
    %1723 = vmatpush1.msra.mxu0 0.0
    %1724 = vmatprep.subr.mxu0 0.0
    %1725 = vmatpush1.msra.mxu0 0.0
    %1726 = vmatprep.subr.mxu0 0.0
    %1727 = vmatpush1.msra.mxu0 0.0
    %1728 = vmatprep.subr.mxu0 0.0
    %1729 = vmatpush1.msra.mxu0 0.0
    %1730 = vmatprep.subr.mxu0 0.0
    %1731 = vmatpush1.msra.mxu0 0.0
    %1732 = vmatprep.subr.mxu0 0.0
    %1733 = vmatpush1.msra.mxu0 0.0
    %1734 = vmatprep.subr.mxu0 0.0
    %1735 = vmatpush1.msra.mxu0 0.0
    %1736 = vmatprep.subr.mxu0 0.0
    %1737 = vmatpush1.msra.mxu0 0.0
    %1738 = vmatprep.subr.mxu0 0.0
    %1739 = vmatpush1.msra.mxu0 0.0
    %1740 = vmatprep.subr.mxu0 0.0
    %1741 = vmatpush1.msra.mxu0 0.0
    %1742 = vmatprep.subr.mxu0 0.0
    %1743 = vmatpush1.msra.mxu0 0.0
    %1744 = vmatprep.subr.mxu0 0.0
    %1745 = vmatpush1.msra.mxu0 %v162
    %1746 = vmatprep.subr.mxu0 0.0
    %1747 = vmatpush1.msra.mxu0 %v161
    %1748 = vmatprep.subr.mxu0 0.0
    %1749 = vmatpush1.msra.mxu0 %v160
    %1750 = vmatprep.subr.mxu0 0.0
    %1751 = vmatpush1.msra.mxu0 %v159
    %1752 = vmatprep.subr.mxu0 0.0
    %1753 = vmatpush2.msra.mxu0 0.0
    %1754 = vmatprep.subr.mxu0 0.0
    %1755 = vmatpush2.msra.mxu0 0.0
    %1756 = vmatprep.subr.mxu0 0.0
    %1757 = vmatpush2.msra.mxu0 0.0
    %1758 = vmatprep.subr.mxu0 0.0
    %1759 = vmatpush2.msra.mxu0 0.0
    %1760 = vmatprep.subr.mxu0 0.0
    %1761 = vmatpush2.msra.mxu0 0.0
    %1762 = vmatprep.subr.mxu0 0.0
    %1763 = vmatpush2.msra.mxu0 0.0
    %1764 = vmatprep.subr.mxu0 0.0
    %1765 = vmatpush2.msra.mxu0 0.0
    %1766 = vmatprep.subr.mxu0 0.0
    %1767 = vmatpush2.msra.mxu0 0.0
    %1768 = vmatprep.subr.mxu0 0.0
    %1769 = vmatpush2.msra.mxu0 0.0
    %1770 = vmatprep.subr.mxu0 0.0
    %1771 = vmatpush2.msra.mxu0 0.0
    %1772 = vmatprep.subr.mxu0 0.0
    %1773 = vmatpush2.msra.mxu0 0.0
    %1774 = vmatprep.subr.mxu0 0.0
    %1775 = vmatpush2.msra.mxu0 0.0
    %1776 = vmatprep.subr.mxu0 0.0
    %1777 = vmatpush2.msra.mxu0 0.0
    %1778 = vmatprep.subr.mxu0 0.0
    %1779 = vmatpush2.msra.mxu0 0.0
    %1780 = vmatprep.subr.mxu0 0.0
    %1781 = vmatpush2.msra.mxu0 0.0
    %1782 = vmatprep.subr.mxu0 0.0
    %1783 = vmatpush2.msra.mxu0 0.0
    %1784 = vmatprep.mubr.f32.mxu0 0.0
    %1785 = vmatmul.mubr.f32.gmra.mxu0 %v1718
    %v1786 = vpop.f32.mrf.mxu0
    %v1787 = vadd.f32 0.0, %v1786
    %v1788 = vpop.f32.mrf.mxu0
    %1789 = vdwg.mxu0
    %v1790 = vadd.f32 %v147, %v1787
    %v1791 = vxor.u32 %v1713, 2147483648
    %v1792 = vmul.f32 %v1791, 1.442695
    %v1793 = vpow.pop %v1792
    %v1794 = vadd.f32 %v1793, 1.0
    %v1795 = vrcp.pop %v1794
    %v1796 = vmul.f32 1.0, %v1795
    %v1797 = vtanh.pop %v1713
    %v1799 = vrot.slane %v1600, 6
    %v1801 = vmul.f32 %v1796, %v1799
    %1803 = vrot.lane.b32.xlu0 %v1797, 64
    %v1804 = vpop.permute.xlu0 %1803
    %v1806 = vmul.f32 %v1796, %v1804
    %1808 = vrot.lane.b32.xlu0 %v1806, 32
    %v1809 = vpop.permute.xlu0 %1808
    %v1811 = vadd.f32 %v1801, %v1809
    %v1812 = vtanh.pop %v1811
    %1814 = vrot.lane.b32.xlu0 %v1812, 64
    %v1815 = vpop.permute.xlu0 %1814
    %v1817 = vmul.f32 %v1796, %v1815
    %v1818 = vxor.u32 %v1790, 2147483648
    %v1819 = vmul.f32 %v1818, 1.442695
    %v1820 = vpow.pop %v1819
    %v1821 = vadd.f32 %v1820, 1.0
    %v1822 = vrcp.pop %v1821
    %v1823 = vmul.f32 1.0, %v1822
    %v1824 = vtanh.pop %v1790
    %v1826 = vrot.slane %v1627, 2
    %v1828 = vmul.f32 %v1823, %v1826
    %1830 = vrot.lane.b32.xlu0 %v1824, 64
    %v1831 = vpop.permute.xlu0 %1830
    %v1833 = vmul.f32 %v1823, %v1831
    %1835 = vrot.lane.b32.xlu0 %v1833, 32
    %v1836 = vpop.permute.xlu0 %1835
    %v1838 = vadd.f32 %v1828, %v1836
    %v1839 = vtanh.pop %v1838
    %1841 = vrot.lane.b32.xlu0 %v1839, 64
    %v1842 = vpop.permute.xlu0 %1841
    %v1844 = vmul.f32 %v1823, %v1842
    %v1845 = vrot.slane %v544, 1
    %v1847 = vrot.slane %v758, 2
    %v1849 = vrot.slane %v969, 3
    %v1851 = vrot.slane %v1179, 4
    %v1853 = vrot.slane %v1392, 5
    %v1855 = vrot.slane %v1606, 6
    %v1858 = vrot.slane %v1817, 7
    %vm1860 = vcmask 1040384
    %v1861 = vsel %vm1860, %v334, %v1845
    %vm1862 = vcmask 1041408
    %v1863 = vsel %vm1862, %v1861, %v1847
    %vm1864 = vcmask 1042432
    %v1865 = vsel %vm1864, %v1863, %v1849
    %vm1866 = vcmask 1043456
    %v1867 = vsel %vm1866, %v1865, %v1851
    %vm1868 = vcmask 1044480
    %v1869 = vsel %vm1868, %v1867, %v1853
    %vm1870 = vcmask 1045504
    %v1871 = vsel %vm1870, %v1869, %v1855
    %vm1872 = vcmask 1046528
    %v1873 = vsel %vm1872, %v1871, %v1858
    %v1874 = vrot.slane %v1633, 1
    %v1876 = vrot.slane %v1419, 2
    %v1878 = vrot.slane %v1206, 3
    %v1880 = vrot.slane %v996, 4
    %v1882 = vrot.slane %v785, 5
    %v1884 = vrot.slane %v571, 6
    %v1886 = vrot.slane %v358, 7
    %v1888 = vsel %vm1860, %v1844, %v1874
    %v1889 = vsel %vm1862, %v1888, %v1876
    %v1890 = vsel %vm1864, %v1889, %v1878
    %v1891 = vsel %vm1866, %v1890, %v1880
    %v1892 = vsel %vm1868, %v1891, %v1882
    %v1893 = vsel %vm1870, %v1892, %v1884
    %v1894 = vsel %vm1872, %v1893, %v1886
    %1896 = vrot.lane.b32.xlu0 %v1873, 32
    %v1897 = vpop.permute.xlu0 %1896
    %1900 = vrot.lane.b32.xlu0 %v1894, 64
    %v1901 = vpop.permute.xlu0 %1900
    %v1903 = vsel %vm71, %v1897, %v1901
    %v1904 = vrot.slane %v334, 1
    %v1907 = vrot.slane %v758, 3
    %v1909 = vrot.slane %v969, 4
    %v1911 = vrot.slane %v1179, 5
    %v1913 = vrot.slane %v1392, 6
    %v1915 = vrot.slane %v1606, 7
    %v1917 = vsel %vm1860, %v1904, %v573
    %v1918 = vsel %vm1862, %v1917, %v1907
    %v1919 = vsel %vm1864, %v1918, %v1909
    %v1920 = vsel %vm1866, %v1919, %v1911
    %v1921 = vsel %vm1868, %v1920, %v1913
    %v1922 = vsel %vm1870, %v1921, %v1915
    %v1923 = vsel %vm1872, %v1922, %v1817
    %v1925 = vrot.slane %v1844, 1
    %v1928 = vrot.slane %v1419, 3
    %v1930 = vrot.slane %v1206, 4
    %v1932 = vrot.slane %v996, 5
    %v1934 = vrot.slane %v785, 6
    %v1936 = vrot.slane %v571, 7
    %v1938 = vsel %vm1860, %v1925, %v1715
    %v1939 = vsel %vm1862, %v1938, %v1928
    %v1940 = vsel %vm1864, %v1939, %v1930
    %v1941 = vsel %vm1866, %v1940, %v1932
    %v1942 = vsel %vm1868, %v1941, %v1934
    %v1943 = vsel %vm1870, %v1942, %v1936
    %v1944 = vsel %vm1872, %v1943, %v358
    %1946 = vrot.lane.b32.xlu0 %v1923, 32
    %v1947 = vpop.permute.xlu0 %1946
    %1950 = vrot.lane.b32.xlu0 %v1944, 64
    %v1951 = vpop.permute.xlu0 %1950
    %v1953 = vsel %vm71, %v1947, %v1951
    %v1954 = vld [vmem:[%s5] sm:$0xff]
    %v1955 = vld [vmem:[%s5 + $0x8] sm:$0xff]
    %v1956 = vld [vmem:[%s5 + $0x10] sm:$0xff]
    %v1957 = vld [vmem:[%s5 + $0x18] sm:$0xff]
    %v1958 = vld [vmem:[%s5 + $0x20] sm:$0xff]
    %v1959 = vld [vmem:[%s5 + $0x28] sm:$0xff]
    %v1960 = vld [vmem:[%s5 + $0x30] sm:$0xff]
    %v1961 = vld [vmem:[%s5 + $0x38] sm:$0xff]
    %v1962 = vld [vmem:[%s5 + $0x40] sm:$0xff]
    %v1963 = vld [vmem:[%s5 + $0x48] sm:$0xff]
    %v1964 = vld [vmem:[%s5 + $0x50] sm:$0xff]
    %v1965 = vld [vmem:[%s5 + $0x58] sm:$0xff]
    %v1966 = vld [vmem:[%s5 + $0x60] sm:$0xff]
    %v1967 = vld [vmem:[%s5 + $0x68] sm:$0xff]
    %v1968 = vld [vmem:[%s5 + $0x70] sm:$0xff]
    %v1969 = vld [vmem:[%s5 + $0x78] sm:$0xff]
    %v1970 = vld [vmem:[%s6] sm:$0x3]
    %v1972 = vlaneseq
    %v1973 = vshrl.u32 %v1972, 7
    %v1974 = vsub.s32 0, %v1973
    %v1975 = vrot.slane %v1970, %v1974
    %v1976 = vlaneseq
    %v1977 = vshrl.u32 %v1976, 7
    %v1978 = vsub.s32 1, %v1977
    %v1979 = vrot.slane %v1970, %v1978
    %vm1982 = vcmask 523264
    %v1984 = vsel %vm1982, %v1903, 0
    %v1987 = vsel %vm1982, %v1953, 0
    %1989 = vmatprep.subr.mxu0 0.0
    %1990 = vmatpush1.msra.mxu0 0.0
    %1991 = vmatprep.subr.mxu0 0.0
    %1992 = vmatpush1.msra.mxu0 0.0
    %1993 = vmatprep.subr.mxu0 0.0
    %1994 = vmatpush1.msra.mxu0 0.0
    %1995 = vmatprep.subr.mxu0 0.0
    %1996 = vmatpush1.msra.mxu0 0.0
    %1997 = vmatprep.subr.mxu0 0.0
    %1998 = vmatpush1.msra.mxu0 0.0
    %1999 = vmatprep.subr.mxu0 0.0
    %2000 = vmatpush1.msra.mxu0 0.0
    %2001 = vmatprep.subr.mxu0 0.0
    %2002 = vmatpush1.msra.mxu0 0.0
    %2003 = vmatprep.subr.mxu0 0.0
    %2004 = vmatpush1.msra.mxu0 0.0
    %2005 = vmatprep.subr.mxu0 %v1969
    %2006 = vmatpush1.msra.mxu0 %v1968
    %2007 = vmatprep.subr.mxu0 %v1967
    %2008 = vmatpush1.msra.mxu0 %v1966
    %2009 = vmatprep.subr.mxu0 %v1965
    %2010 = vmatpush1.msra.mxu0 %v1964
    %2011 = vmatprep.subr.mxu0 %v1963
    %2012 = vmatpush1.msra.mxu0 %v1962
    %2013 = vmatprep.subr.mxu0 %v1961
    %2014 = vmatpush1.msra.mxu0 %v1960
    %2015 = vmatprep.subr.mxu0 %v1959
    %2016 = vmatpush1.msra.mxu0 %v1958
    %2017 = vmatprep.subr.mxu0 %v1957
    %2018 = vmatpush1.msra.mxu0 %v1956
    %2019 = vmatprep.subr.mxu0 %v1955
    %2020 = vmatpush1.msra.mxu0 %v1954
    %2021 = vmatprep.subr.mxu0 0.0
    %2022 = vmatpush2.msra.mxu0 0.0
    %2023 = vmatprep.subr.mxu0 0.0
    %2024 = vmatpush2.msra.mxu0 0.0
    %2025 = vmatprep.subr.mxu0 0.0
    %2026 = vmatpush2.msra.mxu0 0.0
    %2027 = vmatprep.subr.mxu0 0.0
    %2028 = vmatpush2.msra.mxu0 0.0
    %2029 = vmatprep.subr.mxu0 0.0
    %2030 = vmatpush2.msra.mxu0 0.0
    %2031 = vmatprep.subr.mxu0 0.0
    %2032 = vmatpush2.msra.mxu0 0.0
    %2033 = vmatprep.subr.mxu0 0.0
    %2034 = vmatpush2.msra.mxu0 0.0
    %2035 = vmatprep.subr.mxu0 0.0
    %2036 = vmatpush2.msra.mxu0 0.0
    %2037 = vmatprep.subr.mxu0 0.0
    %2038 = vmatpush2.msra.mxu0 0.0
    %2039 = vmatprep.subr.mxu0 0.0
    %2040 = vmatpush2.msra.mxu0 0.0
    %2041 = vmatprep.subr.mxu0 0.0
    %2042 = vmatpush2.msra.mxu0 0.0
    %2043 = vmatprep.subr.mxu0 0.0
    %2044 = vmatpush2.msra.mxu0 0.0
    %2045 = vmatprep.subr.mxu0 0.0
    %2046 = vmatpush2.msra.mxu0 0.0
    %2047 = vmatprep.subr.mxu0 0.0
    %2048 = vmatpush2.msra.mxu0 0.0
    %2049 = vmatprep.subr.mxu0 0.0
    %2050 = vmatpush2.msra.mxu0 0.0
    %2051 = vmatprep.subr.mxu0 0.0
    %2052 = vmatpush2.msra.mxu0 0.0
    %2053 = vmatprep.mubr.f32.mxu0 0.0
    %2054 = vmatmul.mubr.f32.gmra.mxu0 %v1984
    %v2055 = vpop.f32.mrf.mxu0
    %v2056 = vadd.f32 %v1975, %v2055
    %v2057 = vpop.f32.mrf.mxu0
    %v2058 = vadd.f32 %v1979, %v2057
    %2059 = vmatprep.mubr.f32.mxu0 0.0
    %2060 = vmatmul.mubr.f32.gmra.mxu0 %v1987
    %v2061 = vpop.f32.mrf.mxu0
    %v2062 = vadd.f32 %v1975, %v2061
    %v2063 = vpop.f32.mrf.mxu0
    %v2064 = vadd.f32 %v1979, %v2063
    %2065 = vdwg.mxu0
    %2067 = vrot.lane.b32.xlu0 %v2056, 112
    %v2068 = vpop.permute.xlu0 %2067
    %2070 = vrot.lane.b32.xlu0 %v2056, 96
    %v2071 = vpop.permute.xlu0 %2070
    %2073 = vrot.lane.b32.xlu0 %v2056, 80
    %v2074 = vpop.permute.xlu0 %2073
    %v2076 = vcombine.low %v2056, %v2071
    %v2077 = vcombine.high %v2056, %v2071
    %v2079 = vunpack.c.l.s4 1983009808
    %v2080 = vunpack.c.0.s8 %v2079
    %v2081 = vlaneseq
    %v2082 = vshrl.u32 %v2081, 7
    %v2083 = vsub.s32 %v2080, %v2082
    %v2084 = vrot.slane %v2076, %v2083
    %v2086 = vunpack.c.l.s4 1983009808
    %v2087 = vunpack.c.0.s8 %v2086
    %v2088 = vlaneseq
    %v2089 = vshrl.u32 %v2088, 7
    %v2090 = vsub.s32 %v2087, %v2089
    %v2091 = vrot.slane %v2077, %v2090
    %v2092 = vcombine.low %v2068, %v2074
    %v2093 = vcombine.high %v2068, %v2074
    %v2095 = vunpack.c.l.s4 1983009808
    %v2096 = vunpack.c.0.s8 %v2095
    %v2097 = vlaneseq
    %v2098 = vshrl.u32 %v2097, 7
    %v2099 = vsub.s32 %v2096, %v2098
    %v2100 = vrot.slane %v2092, %v2099
    %v2102 = vunpack.c.l.s4 1983009808
    %v2103 = vunpack.c.0.s8 %v2102
    %v2104 = vlaneseq
    %v2105 = vshrl.u32 %v2104, 7
    %v2106 = vsub.s32 %v2103, %v2105
    %v2107 = vrot.slane %v2093, %v2106
    %v2108 = vcombine.low %v2084, %v2100
    %v2109 = vcombine.high %v2084, %v2100
    %v2111 = vunpack.c.l.s4 1934713408
    %v2112 = vunpack.c.0.s8 %v2111
    %v2113 = vlaneseq
    %v2114 = vshrl.u32 %v2113, 7
    %v2115 = vsub.s32 %v2112, %v2114
    %v2116 = vrot.slane %v2108, %v2115
    %v2118 = vunpack.c.l.s4 1934713408
    %v2119 = vunpack.c.0.s8 %v2118
    %v2120 = vlaneseq
    %v2121 = vshrl.u32 %v2120, 7
    %v2122 = vsub.s32 %v2119, %v2121
    %v2123 = vrot.slane %v2109, %v2122
    %v2124 = vcombine.low %v2091, %v2107
    %v2125 = vcombine.high %v2091, %v2107
    %v2127 = vunpack.c.l.s4 1934713408
    %v2128 = vunpack.c.0.s8 %v2127
    %v2129 = vlaneseq
    %v2130 = vshrl.u32 %v2129, 7
    %v2131 = vsub.s32 %v2128, %v2130
    %v2132 = vrot.slane %v2124, %v2131
    %v2134 = vunpack.c.l.s4 1934713408
    %v2135 = vunpack.c.0.s8 %v2134
    %v2136 = vlaneseq
    %v2137 = vshrl.u32 %v2136, 7
    %v2138 = vsub.s32 %v2135, %v2137
    %v2139 = vrot.slane %v2125, %v2138
    %v2140 = vcombine.high %v2116, 0.0
    %v2141 = vcombine.high %v2123, 0.0
    %v2142 = vcombine.high %v2132, 0.0
    %v2143 = vcombine.high %v2139, 0.0
    %v2144 = vcombine.low %v2116, %v2123
    %v2146 = vunpack.c.l.s4 1983009808
    %v2147 = vunpack.c.0.s8 %v2146
    %v2148 = vlaneseq
    %v2149 = vshrl.u32 %v2148, 7
    %v2150 = vsub.s32 %v2147, %v2149
    %v2151 = vrot.slane %v2144, %v2150
    %v2152 = vcombine.low %v2140, %v2141
    %v2154 = vunpack.c.l.s4 1983009808
    %v2155 = vunpack.c.0.s8 %v2154
    %v2156 = vlaneseq
    %v2157 = vshrl.u32 %v2156, 7
    %v2158 = vsub.s32 %v2155, %v2157
    %v2159 = vrot.slane %v2152, %v2158
    %v2160 = vcombine.low %v2132, %v2139
    %v2162 = vunpack.c.l.s4 1983009808
    %v2163 = vunpack.c.0.s8 %v2162
    %v2164 = vlaneseq
    %v2165 = vshrl.u32 %v2164, 7
    %v2166 = vsub.s32 %v2163, %v2165
    %v2167 = vrot.slane %v2160, %v2166
    %v2168 = vcombine.low %v2142, %v2143
    %v2170 = vunpack.c.l.s4 1983009808
    %v2171 = vunpack.c.0.s8 %v2170
    %v2172 = vlaneseq
    %v2173 = vshrl.u32 %v2172, 7
    %v2174 = vsub.s32 %v2171, %v2173
    %v2175 = vrot.slane %v2168, %v2174
    %v2176 = vcombine.low %v2151, %v2159
    %v2177 = vcombine.high %v2151, %v2159
    %v2179 = vunpack.c.l.s4 1934713408
    %v2180 = vunpack.c.0.s8 %v2179
    %v2181 = vlaneseq
    %v2182 = vshrl.u32 %v2181, 7
    %v2183 = vsub.s32 %v2180, %v2182
    %v2184 = vrot.slane %v2176, %v2183
    %v2186 = vunpack.c.l.s4 1934713408
    %v2187 = vunpack.c.0.s8 %v2186
    %v2188 = vlaneseq
    %v2189 = vshrl.u32 %v2188, 7
    %v2190 = vsub.s32 %v2187, %v2189
    %v2191 = vrot.slane %v2177, %v2190
    %v2192 = vcombine.low %v2167, %v2175
    %v2193 = vcombine.high %v2167, %v2175
    %v2195 = vunpack.c.l.s4 1934713408
    %v2196 = vunpack.c.0.s8 %v2195
    %v2197 = vlaneseq
    %v2198 = vshrl.u32 %v2197, 7
    %v2199 = vsub.s32 %v2196, %v2198
    %v2200 = vrot.slane %v2192, %v2199
    %v2202 = vunpack.c.l.s4 1934713408
    %v2203 = vunpack.c.0.s8 %v2202
    %v2204 = vlaneseq
    %v2205 = vshrl.u32 %v2204, 7
    %v2206 = vsub.s32 %v2203, %v2205
    %v2207 = vrot.slane %v2193, %v2206
    %v2208 = vcombine.low %v2184, %v2200
    %v2209 = vcombine.high %v2184, %v2200
    %v2210 = vcombine.low %v2191, %v2207
    %v2211 = vcombine.high %v2191, %v2207
    %2212 = vrot.lane.b32.xlu0 %v2056, 64
    %v2213 = vpop.permute.xlu0 %2212
    %2214 = vrot.lane.b32.xlu0 %v2068, 64
    %v2215 = vpop.permute.xlu0 %2214
    %2216 = vrot.lane.b32.xlu0 %v2071, 64
    %v2217 = vpop.permute.xlu0 %2216
    %2218 = vrot.lane.b32.xlu0 %v2074, 64
    %v2219 = vpop.permute.xlu0 %2218
    %v2224 = vcombine.low %v2213, %v2217
    %v2225 = vcombine.high %v2213, %v2217
    %v2227 = vunpack.c.l.s4 1983009808
    %v2228 = vunpack.c.0.s8 %v2227
    %v2229 = vlaneseq
    %v2230 = vshrl.u32 %v2229, 7
    %v2231 = vsub.s32 %v2228, %v2230
    %v2232 = vrot.slane %v2224, %v2231
    %v2234 = vunpack.c.l.s4 1983009808
    %v2235 = vunpack.c.0.s8 %v2234
    %v2236 = vlaneseq
    %v2237 = vshrl.u32 %v2236, 7
    %v2238 = vsub.s32 %v2235, %v2237
    %v2239 = vrot.slane %v2225, %v2238
    %v2240 = vcombine.low %v2215, %v2219
    %v2241 = vcombine.high %v2215, %v2219
    %v2243 = vunpack.c.l.s4 1983009808
    %v2244 = vunpack.c.0.s8 %v2243
    %v2245 = vlaneseq
    %v2246 = vshrl.u32 %v2245, 7
    %v2247 = vsub.s32 %v2244, %v2246
    %v2248 = vrot.slane %v2240, %v2247
    %v2250 = vunpack.c.l.s4 1983009808
    %v2251 = vunpack.c.0.s8 %v2250
    %v2252 = vlaneseq
    %v2253 = vshrl.u32 %v2252, 7
    %v2254 = vsub.s32 %v2251, %v2253
    %v2255 = vrot.slane %v2241, %v2254
    %v2256 = vcombine.low %v2232, %v2248
    %v2257 = vcombine.high %v2232, %v2248
    %v2259 = vunpack.c.l.s4 1934713408
    %v2260 = vunpack.c.0.s8 %v2259
    %v2261 = vlaneseq
    %v2262 = vshrl.u32 %v2261, 7
    %v2263 = vsub.s32 %v2260, %v2262
    %v2264 = vrot.slane %v2256, %v2263
    %v2266 = vunpack.c.l.s4 1934713408
    %v2267 = vunpack.c.0.s8 %v2266
    %v2268 = vlaneseq
    %v2269 = vshrl.u32 %v2268, 7
    %v2270 = vsub.s32 %v2267, %v2269
    %v2271 = vrot.slane %v2257, %v2270
    %v2272 = vcombine.low %v2239, %v2255
    %v2273 = vcombine.high %v2239, %v2255
    %v2275 = vunpack.c.l.s4 1934713408
    %v2276 = vunpack.c.0.s8 %v2275
    %v2277 = vlaneseq
    %v2278 = vshrl.u32 %v2277, 7
    %v2279 = vsub.s32 %v2276, %v2278
    %v2280 = vrot.slane %v2272, %v2279
    %v2282 = vunpack.c.l.s4 1934713408
    %v2283 = vunpack.c.0.s8 %v2282
    %v2284 = vlaneseq
    %v2285 = vshrl.u32 %v2284, 7
    %v2286 = vsub.s32 %v2283, %v2285
    %v2287 = vrot.slane %v2273, %v2286
    %v2288 = vcombine.high %v2264, 0.0
    %v2289 = vcombine.high %v2271, 0.0
    %v2290 = vcombine.high %v2280, 0.0
    %v2291 = vcombine.high %v2287, 0.0
    %v2292 = vcombine.low %v2264, %v2271
    %v2294 = vunpack.c.l.s4 1983009808
    %v2295 = vunpack.c.0.s8 %v2294
    %v2296 = vlaneseq
    %v2297 = vshrl.u32 %v2296, 7
    %v2298 = vsub.s32 %v2295, %v2297
    %v2299 = vrot.slane %v2292, %v2298
    %v2300 = vcombine.low %v2288, %v2289
    %v2302 = vunpack.c.l.s4 1983009808
    %v2303 = vunpack.c.0.s8 %v2302
    %v2304 = vlaneseq
    %v2305 = vshrl.u32 %v2304, 7
    %v2306 = vsub.s32 %v2303, %v2305
    %v2307 = vrot.slane %v2300, %v2306
    %v2308 = vcombine.low %v2280, %v2287
    %v2310 = vunpack.c.l.s4 1983009808
    %v2311 = vunpack.c.0.s8 %v2310
    %v2312 = vlaneseq
    %v2313 = vshrl.u32 %v2312, 7
    %v2314 = vsub.s32 %v2311, %v2313
    %v2315 = vrot.slane %v2308, %v2314
    %v2316 = vcombine.low %v2290, %v2291
    %v2318 = vunpack.c.l.s4 1983009808
    %v2319 = vunpack.c.0.s8 %v2318
    %v2320 = vlaneseq
    %v2321 = vshrl.u32 %v2320, 7
    %v2322 = vsub.s32 %v2319, %v2321
    %v2323 = vrot.slane %v2316, %v2322
    %v2324 = vcombine.low %v2299, %v2307
    %v2325 = vcombine.high %v2299, %v2307
    %v2327 = vunpack.c.l.s4 1934713408
    %v2328 = vunpack.c.0.s8 %v2327
    %v2329 = vlaneseq
    %v2330 = vshrl.u32 %v2329, 7
    %v2331 = vsub.s32 %v2328, %v2330
    %v2332 = vrot.slane %v2324, %v2331
    %v2334 = vunpack.c.l.s4 1934713408
    %v2335 = vunpack.c.0.s8 %v2334
    %v2336 = vlaneseq
    %v2337 = vshrl.u32 %v2336, 7
    %v2338 = vsub.s32 %v2335, %v2337
    %v2339 = vrot.slane %v2325, %v2338
    %v2340 = vcombine.low %v2315, %v2323
    %v2341 = vcombine.high %v2315, %v2323
    %v2343 = vunpack.c.l.s4 1934713408
    %v2344 = vunpack.c.0.s8 %v2343
    %v2345 = vlaneseq
    %v2346 = vshrl.u32 %v2345, 7
    %v2347 = vsub.s32 %v2344, %v2346
    %v2348 = vrot.slane %v2340, %v2347
    %v2350 = vunpack.c.l.s4 1934713408
    %v2351 = vunpack.c.0.s8 %v2350
    %v2352 = vlaneseq
    %v2353 = vshrl.u32 %v2352, 7
    %v2354 = vsub.s32 %v2351, %v2353
    %v2355 = vrot.slane %v2341, %v2354
    %v2356 = vcombine.low %v2332, %v2348
    %v2357 = vcombine.high %v2332, %v2348
    %v2358 = vcombine.low %v2339, %v2355
    %v2359 = vcombine.high %v2339, %v2355
    %2361 = vrot.lane.b32.xlu0 %v2058, 112
    %v2362 = vpop.permute.xlu0 %2361
    %2364 = vrot.lane.b32.xlu0 %v2058, 96
    %v2365 = vpop.permute.xlu0 %2364
    %2367 = vrot.lane.b32.xlu0 %v2058, 80
    %v2368 = vpop.permute.xlu0 %2367
    %v2370 = vcombine.low %v2058, %v2365
    %v2371 = vcombine.high %v2058, %v2365
    %v2373 = vunpack.c.l.s4 1983009808
    %v2374 = vunpack.c.0.s8 %v2373
    %v2375 = vlaneseq
    %v2376 = vshrl.u32 %v2375, 7
    %v2377 = vsub.s32 %v2374, %v2376
    %v2378 = vrot.slane %v2370, %v2377
    %v2380 = vunpack.c.l.s4 1983009808
    %v2381 = vunpack.c.0.s8 %v2380
    %v2382 = vlaneseq
    %v2383 = vshrl.u32 %v2382, 7
    %v2384 = vsub.s32 %v2381, %v2383
    %v2385 = vrot.slane %v2371, %v2384
    %v2386 = vcombine.low %v2362, %v2368
    %v2387 = vcombine.high %v2362, %v2368
    %v2389 = vunpack.c.l.s4 1983009808
    %v2390 = vunpack.c.0.s8 %v2389
    %v2391 = vlaneseq
    %v2392 = vshrl.u32 %v2391, 7
    %v2393 = vsub.s32 %v2390, %v2392
    %v2394 = vrot.slane %v2386, %v2393
    %v2396 = vunpack.c.l.s4 1983009808
    %v2397 = vunpack.c.0.s8 %v2396
    %v2398 = vlaneseq
    %v2399 = vshrl.u32 %v2398, 7
    %v2400 = vsub.s32 %v2397, %v2399
    %v2401 = vrot.slane %v2387, %v2400
    %v2402 = vcombine.low %v2378, %v2394
    %v2403 = vcombine.high %v2378, %v2394
    %v2405 = vunpack.c.l.s4 1934713408
    %v2406 = vunpack.c.0.s8 %v2405
    %v2407 = vlaneseq
    %v2408 = vshrl.u32 %v2407, 7
    %v2409 = vsub.s32 %v2406, %v2408
    %v2410 = vrot.slane %v2402, %v2409
    %v2412 = vunpack.c.l.s4 1934713408
    %v2413 = vunpack.c.0.s8 %v2412
    %v2414 = vlaneseq
    %v2415 = vshrl.u32 %v2414, 7
    %v2416 = vsub.s32 %v2413, %v2415
    %v2417 = vrot.slane %v2403, %v2416
    %v2418 = vcombine.low %v2385, %v2401
    %v2419 = vcombine.high %v2385, %v2401
    %v2421 = vunpack.c.l.s4 1934713408
    %v2422 = vunpack.c.0.s8 %v2421
    %v2423 = vlaneseq
    %v2424 = vshrl.u32 %v2423, 7
    %v2425 = vsub.s32 %v2422, %v2424
    %v2426 = vrot.slane %v2418, %v2425
    %v2428 = vunpack.c.l.s4 1934713408
    %v2429 = vunpack.c.0.s8 %v2428
    %v2430 = vlaneseq
    %v2431 = vshrl.u32 %v2430, 7
    %v2432 = vsub.s32 %v2429, %v2431
    %v2433 = vrot.slane %v2419, %v2432
    %v2434 = vcombine.high %v2410, 0.0
    %v2435 = vcombine.high %v2417, 0.0
    %v2436 = vcombine.high %v2426, 0.0
    %v2437 = vcombine.high %v2433, 0.0
    %v2438 = vcombine.low %v2410, %v2417
    %v2440 = vunpack.c.l.s4 1983009808
    %v2441 = vunpack.c.0.s8 %v2440
    %v2442 = vlaneseq
    %v2443 = vshrl.u32 %v2442, 7
    %v2444 = vsub.s32 %v2441, %v2443
    %v2445 = vrot.slane %v2438, %v2444
    %v2446 = vcombine.low %v2434, %v2435
    %v2448 = vunpack.c.l.s4 1983009808
    %v2449 = vunpack.c.0.s8 %v2448
    %v2450 = vlaneseq
    %v2451 = vshrl.u32 %v2450, 7
    %v2452 = vsub.s32 %v2449, %v2451
    %v2453 = vrot.slane %v2446, %v2452
    %v2454 = vcombine.low %v2426, %v2433
    %v2456 = vunpack.c.l.s4 1983009808
    %v2457 = vunpack.c.0.s8 %v2456
    %v2458 = vlaneseq
    %v2459 = vshrl.u32 %v2458, 7
    %v2460 = vsub.s32 %v2457, %v2459
    %v2461 = vrot.slane %v2454, %v2460
    %v2462 = vcombine.low %v2436, %v2437
    %v2464 = vunpack.c.l.s4 1983009808
    %v2465 = vunpack.c.0.s8 %v2464
    %v2466 = vlaneseq
    %v2467 = vshrl.u32 %v2466, 7
    %v2468 = vsub.s32 %v2465, %v2467
    %v2469 = vrot.slane %v2462, %v2468
    %v2470 = vcombine.low %v2445, %v2453
    %v2471 = vcombine.high %v2445, %v2453
    %v2473 = vunpack.c.l.s4 1934713408
    %v2474 = vunpack.c.0.s8 %v2473
    %v2475 = vlaneseq
    %v2476 = vshrl.u32 %v2475, 7
    %v2477 = vsub.s32 %v2474, %v2476
    %v2478 = vrot.slane %v2470, %v2477
    %v2480 = vunpack.c.l.s4 1934713408
    %v2481 = vunpack.c.0.s8 %v2480
    %v2482 = vlaneseq
    %v2483 = vshrl.u32 %v2482, 7
    %v2484 = vsub.s32 %v2481, %v2483
    %v2485 = vrot.slane %v2471, %v2484
    %v2486 = vcombine.low %v2461, %v2469
    %v2487 = vcombine.high %v2461, %v2469
    %v2489 = vunpack.c.l.s4 1934713408
    %v2490 = vunpack.c.0.s8 %v2489
    %v2491 = vlaneseq
    %v2492 = vshrl.u32 %v2491, 7
    %v2493 = vsub.s32 %v2490, %v2492
    %v2494 = vrot.slane %v2486, %v2493
    %v2496 = vunpack.c.l.s4 1934713408
    %v2497 = vunpack.c.0.s8 %v2496
    %v2498 = vlaneseq
    %v2499 = vshrl.u32 %v2498, 7
    %v2500 = vsub.s32 %v2497, %v2499
    %v2501 = vrot.slane %v2487, %v2500
    %v2502 = vcombine.low %v2478, %v2494
    %v2503 = vcombine.high %v2478, %v2494
    %v2504 = vcombine.low %v2485, %v2501
    %v2505 = vcombine.high %v2485, %v2501
    %vm2506 = vcmask 130048
    %v2508 = vsel %vm2506, %v2208, 0
    %v2511 = vsel %vm2506, %v2356, 0
    %2513 = vmatprep.subr.mxu0 0.0
    %2514 = vmatpush1.xpose.msra.mxu0 0.0
    %2515 = vmatprep.subr.mxu0 0.0
    %2516 = vmatpush1.xpose.msra.mxu0 0.0
    %2517 = vmatprep.subr.mxu0 0.0
    %2518 = vmatpush1.xpose.msra.mxu0 0.0
    %2519 = vmatprep.subr.mxu0 0.0
    %2520 = vmatpush1.xpose.msra.mxu0 0.0
    %2521 = vmatprep.subr.mxu0 0.0
    %2522 = vmatpush1.xpose.msra.mxu0 0.0
    %2523 = vmatprep.subr.mxu0 0.0
    %2524 = vmatpush1.xpose.msra.mxu0 0.0
    %2525 = vmatprep.subr.mxu0 0.0
    %2526 = vmatpush1.xpose.msra.mxu0 0.0
    %2527 = vmatprep.subr.mxu0 0.0
    %2528 = vmatpush1.xpose.msra.mxu0 0.0
    %2529 = vmatprep.subr.mxu0 0.0
    %2530 = vmatpush1.xpose.msra.mxu0 0.0
    %2531 = vmatprep.subr.mxu0 0.0
    %2532 = vmatpush1.xpose.msra.mxu0 0.0
    %2533 = vmatprep.subr.mxu0 0.0
    %2534 = vmatpush1.xpose.msra.mxu0 0.0
    %2535 = vmatprep.subr.mxu0 0.0
    %2536 = vmatpush1.xpose.msra.mxu0 0.0
    %2537 = vmatprep.subr.mxu0 0.0
    %2538 = vmatpush1.xpose.msra.mxu0 0.0
    %2539 = vmatprep.subr.mxu0 0.0
    %2540 = vmatpush1.xpose.msra.mxu0 0.0
    %2541 = vmatprep.subr.mxu0 0.0
    %2542 = vmatpush1.xpose.msra.mxu0 0.0
    %2543 = vmatprep.subr.mxu0 0.0
    %2544 = vmatpush1.xpose.msra.mxu0 %v2511
    %2545 = vmatprep.subr.mxu0 0.0
    %2546 = vmatpush2.xpose.msra.mxu0 0.0
    %2547 = vmatprep.subr.mxu0 0.0
    %2548 = vmatpush2.xpose.msra.mxu0 0.0
    %2549 = vmatprep.subr.mxu0 0.0
    %2550 = vmatpush2.xpose.msra.mxu0 0.0
    %2551 = vmatprep.subr.mxu0 0.0
    %2552 = vmatpush2.xpose.msra.mxu0 0.0
    %2553 = vmatprep.subr.mxu0 0.0
    %2554 = vmatpush2.xpose.msra.mxu0 0.0
    %2555 = vmatprep.subr.mxu0 0.0
    %2556 = vmatpush2.xpose.msra.mxu0 0.0
    %2557 = vmatprep.subr.mxu0 0.0
    %2558 = vmatpush2.xpose.msra.mxu0 0.0
    %2559 = vmatprep.subr.mxu0 0.0
    %2560 = vmatpush2.xpose.msra.mxu0 0.0
    %2561 = vmatprep.subr.mxu0 0.0
    %2562 = vmatpush2.xpose.msra.mxu0 0.0
    %2563 = vmatprep.subr.mxu0 0.0
    %2564 = vmatpush2.xpose.msra.mxu0 0.0
    %2565 = vmatprep.subr.mxu0 0.0
    %2566 = vmatpush2.xpose.msra.mxu0 0.0
    %2567 = vmatprep.subr.mxu0 0.0
    %2568 = vmatpush2.xpose.msra.mxu0 0.0
    %2569 = vmatprep.subr.mxu0 0.0
    %2570 = vmatpush2.xpose.msra.mxu0 0.0
    %2571 = vmatprep.subr.mxu0 0.0
    %2572 = vmatpush2.xpose.msra.mxu0 0.0
    %2573 = vmatprep.subr.mxu0 0.0
    %2574 = vmatpush2.xpose.msra.mxu0 0.0
    %2575 = vmatprep.subr.mxu0 0.0
    %2576 = vmatpush2.xpose.msra.mxu0 0.0
    %2577 = vmatprep.mubr.f32.mxu0 0.0
    %2578 = vmatmul.mubr.f32.gmra.mxu0 %v2508
    %v2579 = vpop.f32.mrf.mxu0
    %v2580 = vadd.f32 0.0, %v2579
    %v2581 = vpop.f32.mrf.mxu0
    %2582 = vdwg.mxu0
    %v2584 = vsel %vm2506, %v2209, 0
    %v2587 = vsel %vm2506, %v2357, 0
    %2589 = vmatprep.subr.mxu0 0.0
    %2590 = vmatpush1.xpose.msra.mxu0 0.0
    %2591 = vmatprep.subr.mxu0 0.0
    %2592 = vmatpush1.xpose.msra.mxu0 0.0
    %2593 = vmatprep.subr.mxu0 0.0
    %2594 = vmatpush1.xpose.msra.mxu0 0.0
    %2595 = vmatprep.subr.mxu0 0.0
    %2596 = vmatpush1.xpose.msra.mxu0 0.0
    %2597 = vmatprep.subr.mxu0 0.0
    %2598 = vmatpush1.xpose.msra.mxu0 0.0
    %2599 = vmatprep.subr.mxu0 0.0
    %2600 = vmatpush1.xpose.msra.mxu0 0.0
    %2601 = vmatprep.subr.mxu0 0.0
    %2602 = vmatpush1.xpose.msra.mxu0 0.0
    %2603 = vmatprep.subr.mxu0 0.0
    %2604 = vmatpush1.xpose.msra.mxu0 0.0
    %2605 = vmatprep.subr.mxu0 0.0
    %2606 = vmatpush1.xpose.msra.mxu0 0.0
    %2607 = vmatprep.subr.mxu0 0.0
    %2608 = vmatpush1.xpose.msra.mxu0 0.0
    %2609 = vmatprep.subr.mxu0 0.0
    %2610 = vmatpush1.xpose.msra.mxu0 0.0
    %2611 = vmatprep.subr.mxu0 0.0
    %2612 = vmatpush1.xpose.msra.mxu0 0.0
    %2613 = vmatprep.subr.mxu0 0.0
    %2614 = vmatpush1.xpose.msra.mxu0 0.0
    %2615 = vmatprep.subr.mxu0 0.0
    %2616 = vmatpush1.xpose.msra.mxu0 0.0
    %2617 = vmatprep.subr.mxu0 0.0
    %2618 = vmatpush1.xpose.msra.mxu0 0.0
    %2619 = vmatprep.subr.mxu0 0.0
    %2620 = vmatpush1.xpose.msra.mxu0 %v2587
    %2621 = vmatprep.subr.mxu0 0.0
    %2622 = vmatpush2.xpose.msra.mxu0 0.0
    %2623 = vmatprep.subr.mxu0 0.0
    %2624 = vmatpush2.xpose.msra.mxu0 0.0
    %2625 = vmatprep.subr.mxu0 0.0
    %2626 = vmatpush2.xpose.msra.mxu0 0.0
    %2627 = vmatprep.subr.mxu0 0.0
    %2628 = vmatpush2.xpose.msra.mxu0 0.0
    %2629 = vmatprep.subr.mxu0 0.0
    %2630 = vmatpush2.xpose.msra.mxu0 0.0
    %2631 = vmatprep.subr.mxu0 0.0
    %2632 = vmatpush2.xpose.msra.mxu0 0.0
    %2633 = vmatprep.subr.mxu0 0.0
    %2634 = vmatpush2.xpose.msra.mxu0 0.0
    %2635 = vmatprep.subr.mxu0 0.0
    %2636 = vmatpush2.xpose.msra.mxu0 0.0
    %2637 = vmatprep.subr.mxu0 0.0
    %2638 = vmatpush2.xpose.msra.mxu0 0.0
    %2639 = vmatprep.subr.mxu0 0.0
    %2640 = vmatpush2.xpose.msra.mxu0 0.0
    %2641 = vmatprep.subr.mxu0 0.0
    %2642 = vmatpush2.xpose.msra.mxu0 0.0
    %2643 = vmatprep.subr.mxu0 0.0
    %2644 = vmatpush2.xpose.msra.mxu0 0.0
    %2645 = vmatprep.subr.mxu0 0.0
    %2646 = vmatpush2.xpose.msra.mxu0 0.0
    %2647 = vmatprep.subr.mxu0 0.0
    %2648 = vmatpush2.xpose.msra.mxu0 0.0
    %2649 = vmatprep.subr.mxu0 0.0
    %2650 = vmatpush2.xpose.msra.mxu0 0.0
    %2651 = vmatprep.subr.mxu0 0.0
    %2652 = vmatpush2.xpose.msra.mxu0 0.0
    %2653 = vmatprep.mubr.f32.mxu0 0.0
    %2654 = vmatmul.mubr.f32.gmra.mxu0 %v2584
    %v2655 = vpop.f32.mrf.mxu0
    %v2656 = vadd.f32 0.0, %v2655
    %v2657 = vpop.f32.mrf.mxu0
    %2658 = vdwg.mxu0
    %v2660 = vsel %vm2506, %v2210, 0
    %v2663 = vsel %vm2506, %v2358, 0
    %2665 = vmatprep.subr.mxu0 0.0
    %2666 = vmatpush1.xpose.msra.mxu0 0.0
    %2667 = vmatprep.subr.mxu0 0.0
    %2668 = vmatpush1.xpose.msra.mxu0 0.0
    %2669 = vmatprep.subr.mxu0 0.0
    %2670 = vmatpush1.xpose.msra.mxu0 0.0
    %2671 = vmatprep.subr.mxu0 0.0
    %2672 = vmatpush1.xpose.msra.mxu0 0.0
    %2673 = vmatprep.subr.mxu0 0.0
    %2674 = vmatpush1.xpose.msra.mxu0 0.0
    %2675 = vmatprep.subr.mxu0 0.0
    %2676 = vmatpush1.xpose.msra.mxu0 0.0
    %2677 = vmatprep.subr.mxu0 0.0
    %2678 = vmatpush1.xpose.msra.mxu0 0.0
    %2679 = vmatprep.subr.mxu0 0.0
    %2680 = vmatpush1.xpose.msra.mxu0 0.0
    %2681 = vmatprep.subr.mxu0 0.0
    %2682 = vmatpush1.xpose.msra.mxu0 0.0
    %2683 = vmatprep.subr.mxu0 0.0
    %2684 = vmatpush1.xpose.msra.mxu0 0.0
    %2685 = vmatprep.subr.mxu0 0.0
    %2686 = vmatpush1.xpose.msra.mxu0 0.0
    %2687 = vmatprep.subr.mxu0 0.0
    %2688 = vmatpush1.xpose.msra.mxu0 0.0
    %2689 = vmatprep.subr.mxu0 0.0
    %2690 = vmatpush1.xpose.msra.mxu0 0.0
    %2691 = vmatprep.subr.mxu0 0.0
    %2692 = vmatpush1.xpose.msra.mxu0 0.0
    %2693 = vmatprep.subr.mxu0 0.0
    %2694 = vmatpush1.xpose.msra.mxu0 0.0
    %2695 = vmatprep.subr.mxu0 0.0
    %2696 = vmatpush1.xpose.msra.mxu0 %v2663
    %2697 = vmatprep.subr.mxu0 0.0
    %2698 = vmatpush2.xpose.msra.mxu0 0.0
    %2699 = vmatprep.subr.mxu0 0.0
    %2700 = vmatpush2.xpose.msra.mxu0 0.0
    %2701 = vmatprep.subr.mxu0 0.0
    %2702 = vmatpush2.xpose.msra.mxu0 0.0
    %2703 = vmatprep.subr.mxu0 0.0
    %2704 = vmatpush2.xpose.msra.mxu0 0.0
    %2705 = vmatprep.subr.mxu0 0.0
    %2706 = vmatpush2.xpose.msra.mxu0 0.0
    %2707 = vmatprep.subr.mxu0 0.0
    %2708 = vmatpush2.xpose.msra.mxu0 0.0
    %2709 = vmatprep.subr.mxu0 0.0
    %2710 = vmatpush2.xpose.msra.mxu0 0.0
    %2711 = vmatprep.subr.mxu0 0.0
    %2712 = vmatpush2.xpose.msra.mxu0 0.0
    %2713 = vmatprep.subr.mxu0 0.0
    %2714 = vmatpush2.xpose.msra.mxu0 0.0
    %2715 = vmatprep.subr.mxu0 0.0
    %2716 = vmatpush2.xpose.msra.mxu0 0.0
    %2717 = vmatprep.subr.mxu0 0.0
    %2718 = vmatpush2.xpose.msra.mxu0 0.0
    %2719 = vmatprep.subr.mxu0 0.0
    %2720 = vmatpush2.xpose.msra.mxu0 0.0
    %2721 = vmatprep.subr.mxu0 0.0
    %2722 = vmatpush2.xpose.msra.mxu0 0.0
    %2723 = vmatprep.subr.mxu0 0.0
    %2724 = vmatpush2.xpose.msra.mxu0 0.0
    %2725 = vmatprep.subr.mxu0 0.0
    %2726 = vmatpush2.xpose.msra.mxu0 0.0
    %2727 = vmatprep.subr.mxu0 0.0
    %2728 = vmatpush2.xpose.msra.mxu0 0.0
    %2729 = vmatprep.mubr.f32.mxu0 0.0
    %2730 = vmatmul.mubr.f32.gmra.mxu0 %v2660
    %v2731 = vpop.f32.mrf.mxu0
    %v2732 = vadd.f32 0.0, %v2731
    %v2733 = vpop.f32.mrf.mxu0
    %2734 = vdwg.mxu0
    %v2736 = vsel %vm2506, %v2211, 0
    %v2739 = vsel %vm2506, %v2359, 0
    %2741 = vmatprep.subr.mxu0 0.0
    %2742 = vmatpush1.xpose.msra.mxu0 0.0
    %2743 = vmatprep.subr.mxu0 0.0
    %2744 = vmatpush1.xpose.msra.mxu0 0.0
    %2745 = vmatprep.subr.mxu0 0.0
    %2746 = vmatpush1.xpose.msra.mxu0 0.0
    %2747 = vmatprep.subr.mxu0 0.0
    %2748 = vmatpush1.xpose.msra.mxu0 0.0
    %2749 = vmatprep.subr.mxu0 0.0
    %2750 = vmatpush1.xpose.msra.mxu0 0.0
    %2751 = vmatprep.subr.mxu0 0.0
    %2752 = vmatpush1.xpose.msra.mxu0 0.0
    %2753 = vmatprep.subr.mxu0 0.0
    %2754 = vmatpush1.xpose.msra.mxu0 0.0
    %2755 = vmatprep.subr.mxu0 0.0
    %2756 = vmatpush1.xpose.msra.mxu0 0.0
    %2757 = vmatprep.subr.mxu0 0.0
    %2758 = vmatpush1.xpose.msra.mxu0 0.0
    %2759 = vmatprep.subr.mxu0 0.0
    %2760 = vmatpush1.xpose.msra.mxu0 0.0
    %2761 = vmatprep.subr.mxu0 0.0
    %2762 = vmatpush1.xpose.msra.mxu0 0.0
    %2763 = vmatprep.subr.mxu0 0.0
    %2764 = vmatpush1.xpose.msra.mxu0 0.0
    %2765 = vmatprep.subr.mxu0 0.0
    %2766 = vmatpush1.xpose.msra.mxu0 0.0
    %2767 = vmatprep.subr.mxu0 0.0
    %2768 = vmatpush1.xpose.msra.mxu0 0.0
    %2769 = vmatprep.subr.mxu0 0.0
    %2770 = vmatpush1.xpose.msra.mxu0 0.0
    %2771 = vmatprep.subr.mxu0 0.0
    %2772 = vmatpush1.xpose.msra.mxu0 %v2739
    %2773 = vmatprep.subr.mxu0 0.0
    %2774 = vmatpush2.xpose.msra.mxu0 0.0
    %2775 = vmatprep.subr.mxu0 0.0
    %2776 = vmatpush2.xpose.msra.mxu0 0.0
    %2777 = vmatprep.subr.mxu0 0.0
    %2778 = vmatpush2.xpose.msra.mxu0 0.0
    %2779 = vmatprep.subr.mxu0 0.0
    %2780 = vmatpush2.xpose.msra.mxu0 0.0
    %2781 = vmatprep.subr.mxu0 0.0
    %2782 = vmatpush2.xpose.msra.mxu0 0.0
    %2783 = vmatprep.subr.mxu0 0.0
    %2784 = vmatpush2.xpose.msra.mxu0 0.0
    %2785 = vmatprep.subr.mxu0 0.0
    %2786 = vmatpush2.xpose.msra.mxu0 0.0
    %2787 = vmatprep.subr.mxu0 0.0
    %2788 = vmatpush2.xpose.msra.mxu0 0.0
    %2789 = vmatprep.subr.mxu0 0.0
    %2790 = vmatpush2.xpose.msra.mxu0 0.0
    %2791 = vmatprep.subr.mxu0 0.0
    %2792 = vmatpush2.xpose.msra.mxu0 0.0
    %2793 = vmatprep.subr.mxu0 0.0
    %2794 = vmatpush2.xpose.msra.mxu0 0.0
    %2795 = vmatprep.subr.mxu0 0.0
    %2796 = vmatpush2.xpose.msra.mxu0 0.0
    %2797 = vmatprep.subr.mxu0 0.0
    %2798 = vmatpush2.xpose.msra.mxu0 0.0
    %2799 = vmatprep.subr.mxu0 0.0
    %2800 = vmatpush2.xpose.msra.mxu0 0.0
    %2801 = vmatprep.subr.mxu0 0.0
    %2802 = vmatpush2.xpose.msra.mxu0 0.0
    %2803 = vmatprep.subr.mxu0 0.0
    %2804 = vmatpush2.xpose.msra.mxu0 0.0
    %2805 = vmatprep.mubr.f32.mxu0 0.0
    %2806 = vmatmul.mubr.f32.gmra.mxu0 %v2736
    %v2807 = vpop.f32.mrf.mxu0
    %v2808 = vadd.f32 0.0, %v2807
    %v2809 = vpop.f32.mrf.mxu0
    %2810 = vdwg.mxu0
    %v2811 = vmul.f32 %v2580, 0.25
    %v2812 = vmul.f32 %v2656, 0.25
    %v2813 = vmul.f32 %v2732, 0.25
    %v2814 = vmul.f32 %v2808, 0.25
    %vm2815 = vcmask 64512
    %v2816 = vsel %vm2815, %v2811, -inf
    %2817 = vmax.xlane.f32.xlu0 %v2816
    %v2818 = vpop.xlane.xlu0 %2817
    %v2819 = vsel %vm2815, %v2812, -inf
    %2820 = vmax.xlane.f32.xlu0 %v2819
    %v2821 = vpop.xlane.xlu0 %2820
    %v2822 = vsel %vm2815, %v2813, -inf
    %2823 = vmax.xlane.f32.xlu0 %v2822
    %v2824 = vpop.xlane.xlu0 %2823
    %v2825 = vsel %vm2815, %v2814, -inf
    %2826 = vmax.xlane.f32.xlu0 %v2825
    %v2827 = vpop.xlane.xlu0 %2826
    %v2828 = vsub.f32 %v2811, %v2818
    %v2829 = vsub.f32 %v2812, %v2821
    %v2830 = vsub.f32 %v2813, %v2824
    %v2831 = vsub.f32 %v2814, %v2827
    %v2832 = vmul.f32 %v2828, 1.442695
    %v2833 = vpow.pop %v2832
    %v2834 = vmul.f32 %v2829, 1.442695
    %v2835 = vpow.pop %v2834
    %v2836 = vmul.f32 %v2830, 1.442695
    %v2837 = vpow.pop %v2836
    %v2838 = vmul.f32 %v2831, 1.442695
    %v2839 = vpow.pop %v2838
    %v2840 = vsel %vm2815, %v2833, 0.0
    %2841 = vadd.xlane.f32.xlu0 %v2840
    %v2842 = vpop.xlane.xlu0 %2841
    %v2843 = vsel %vm2815, %v2835, 0.0
    %2844 = vadd.xlane.f32.xlu0 %v2843
    %v2845 = vpop.xlane.xlu0 %2844
    %v2846 = vsel %vm2815, %v2837, 0.0
    %2847 = vadd.xlane.f32.xlu0 %v2846
    %v2848 = vpop.xlane.xlu0 %2847
    %v2849 = vsel %vm2815, %v2839, 0.0
    %2850 = vadd.xlane.f32.xlu0 %v2849
    %v2851 = vpop.xlane.xlu0 %2850
    %v2852 = vrcp.pop %v2842
    %v2853 = vmul.f32 %v2833, %v2852
    %v2854 = vrcp.pop %v2845
    %v2855 = vmul.f32 %v2835, %v2854
    %v2856 = vrcp.pop %v2848
    %v2857 = vmul.f32 %v2837, %v2856
    %v2858 = vrcp.pop %v2851
    %v2859 = vmul.f32 %v2839, %v2858
    %2860 = vst.msk [vmem:[#allocation6] sm:$0xff] %vm2815, %v2853
    %2861 = vst.msk [vmem:[#allocation6 + $0x8] sm:$0xff] %vm2815, %v2855
    %2862 = vst.msk [vmem:[#allocation6 + $0x10] sm:$0xff] %vm2815, %v2857
    %2863 = vst.msk [vmem:[#allocation6 + $0x18] sm:$0xff] %vm2815, %v2859
    %v2865 = vsel %vm2815, %v2853, 0
    %2867 = vmatprep.subr.mxu0 0.0
    %2868 = vmatpush1.msra.mxu0 0.0
    %2869 = vmatprep.subr.mxu0 0.0
    %2870 = vmatpush1.msra.mxu0 0.0
    %2871 = vmatprep.subr.mxu0 0.0
    %2872 = vmatpush1.msra.mxu0 0.0
    %2873 = vmatprep.subr.mxu0 0.0
    %2874 = vmatpush1.msra.mxu0 0.0
    %2875 = vmatprep.subr.mxu0 0.0
    %2876 = vmatpush1.msra.mxu0 0.0
    %2877 = vmatprep.subr.mxu0 0.0
    %2878 = vmatpush1.msra.mxu0 0.0
    %2879 = vmatprep.subr.mxu0 0.0
    %2880 = vmatpush1.msra.mxu0 0.0
    %2881 = vmatprep.subr.mxu0 0.0
    %2882 = vmatpush1.msra.mxu0 0.0
    %2883 = vmatprep.subr.mxu0 0.0
    %2884 = vmatpush1.msra.mxu0 0.0
    %2885 = vmatprep.subr.mxu0 0.0
    %2886 = vmatpush1.msra.mxu0 0.0
    %2887 = vmatprep.subr.mxu0 0.0
    %2888 = vmatpush1.msra.mxu0 0.0
    %2889 = vmatprep.subr.mxu0 0.0
    %2890 = vmatpush1.msra.mxu0 0.0
    %2891 = vmatprep.subr.mxu0 0.0
    %2892 = vmatpush1.msra.mxu0 0.0
    %2893 = vmatprep.subr.mxu0 0.0
    %2894 = vmatpush1.msra.mxu0 0.0
    %2895 = vmatprep.subr.mxu0 0.0
    %2896 = vmatpush1.msra.mxu0 0.0
    %2897 = vmatprep.subr.mxu0 0.0
    %2898 = vmatpush1.msra.mxu0 %v2502
    %2899 = vmatprep.subr.mxu0 0.0
    %2900 = vmatpush2.msra.mxu0 0.0
    %2901 = vmatprep.subr.mxu0 0.0
    %2902 = vmatpush2.msra.mxu0 0.0
    %2903 = vmatprep.subr.mxu0 0.0
    %2904 = vmatpush2.msra.mxu0 0.0
    %2905 = vmatprep.subr.mxu0 0.0
    %2906 = vmatpush2.msra.mxu0 0.0
    %2907 = vmatprep.subr.mxu0 0.0
    %2908 = vmatpush2.msra.mxu0 0.0
    %2909 = vmatprep.subr.mxu0 0.0
    %2910 = vmatpush2.msra.mxu0 0.0
    %2911 = vmatprep.subr.mxu0 0.0
    %2912 = vmatpush2.msra.mxu0 0.0
    %2913 = vmatprep.subr.mxu0 0.0
    %2914 = vmatpush2.msra.mxu0 0.0
    %2915 = vmatprep.subr.mxu0 0.0
    %2916 = vmatpush2.msra.mxu0 0.0
    %2917 = vmatprep.subr.mxu0 0.0
    %2918 = vmatpush2.msra.mxu0 0.0
    %2919 = vmatprep.subr.mxu0 0.0
    %2920 = vmatpush2.msra.mxu0 0.0
    %2921 = vmatprep.subr.mxu0 0.0
    %2922 = vmatpush2.msra.mxu0 0.0
    %2923 = vmatprep.subr.mxu0 0.0
    %2924 = vmatpush2.msra.mxu0 0.0
    %2925 = vmatprep.subr.mxu0 0.0
    %2926 = vmatpush2.msra.mxu0 0.0
    %2927 = vmatprep.subr.mxu0 0.0
    %2928 = vmatpush2.msra.mxu0 0.0
    %2929 = vmatprep.subr.mxu0 0.0
    %2930 = vmatpush2.msra.mxu0 0.0
    %2931 = vmatprep.mubr.f32.mxu0 0.0
    %2932 = vmatmul.mubr.f32.gmra.mxu0 %v2865
    %v2933 = vpop.f32.mrf.mxu0
    %v2934 = vadd.f32 0.0, %v2933
    %v2935 = vpop.f32.mrf.mxu0
    %2936 = vdwg.mxu0
    %v2938 = vsel %vm2815, %v2855, 0
    %2940 = vmatprep.subr.mxu0 0.0
    %2941 = vmatpush1.msra.mxu0 0.0
    %2942 = vmatprep.subr.mxu0 0.0
    %2943 = vmatpush1.msra.mxu0 0.0
    %2944 = vmatprep.subr.mxu0 0.0
    %2945 = vmatpush1.msra.mxu0 0.0
    %2946 = vmatprep.subr.mxu0 0.0
    %2947 = vmatpush1.msra.mxu0 0.0
    %2948 = vmatprep.subr.mxu0 0.0
    %2949 = vmatpush1.msra.mxu0 0.0
    %2950 = vmatprep.subr.mxu0 0.0
    %2951 = vmatpush1.msra.mxu0 0.0
    %2952 = vmatprep.subr.mxu0 0.0
    %2953 = vmatpush1.msra.mxu0 0.0
    %2954 = vmatprep.subr.mxu0 0.0
    %2955 = vmatpush1.msra.mxu0 0.0
    %2956 = vmatprep.subr.mxu0 0.0
    %2957 = vmatpush1.msra.mxu0 0.0
    %2958 = vmatprep.subr.mxu0 0.0
    %2959 = vmatpush1.msra.mxu0 0.0
    %2960 = vmatprep.subr.mxu0 0.0
    %2961 = vmatpush1.msra.mxu0 0.0
    %2962 = vmatprep.subr.mxu0 0.0
    %2963 = vmatpush1.msra.mxu0 0.0
    %2964 = vmatprep.subr.mxu0 0.0
    %2965 = vmatpush1.msra.mxu0 0.0
    %2966 = vmatprep.subr.mxu0 0.0
    %2967 = vmatpush1.msra.mxu0 0.0
    %2968 = vmatprep.subr.mxu0 0.0
    %2969 = vmatpush1.msra.mxu0 0.0
    %2970 = vmatprep.subr.mxu0 0.0
    %2971 = vmatpush1.msra.mxu0 %v2503
    %2972 = vmatprep.subr.mxu0 0.0
    %2973 = vmatpush2.msra.mxu0 0.0
    %2974 = vmatprep.subr.mxu0 0.0
    %2975 = vmatpush2.msra.mxu0 0.0
    %2976 = vmatprep.subr.mxu0 0.0
    %2977 = vmatpush2.msra.mxu0 0.0
    %2978 = vmatprep.subr.mxu0 0.0
    %2979 = vmatpush2.msra.mxu0 0.0
    %2980 = vmatprep.subr.mxu0 0.0
    %2981 = vmatpush2.msra.mxu0 0.0
    %2982 = vmatprep.subr.mxu0 0.0
    %2983 = vmatpush2.msra.mxu0 0.0
    %2984 = vmatprep.subr.mxu0 0.0
    %2985 = vmatpush2.msra.mxu0 0.0
    %2986 = vmatprep.subr.mxu0 0.0
    %2987 = vmatpush2.msra.mxu0 0.0
    %2988 = vmatprep.subr.mxu0 0.0
    %2989 = vmatpush2.msra.mxu0 0.0
    %2990 = vmatprep.subr.mxu0 0.0
    %2991 = vmatpush2.msra.mxu0 0.0
    %2992 = vmatprep.subr.mxu0 0.0
    %2993 = vmatpush2.msra.mxu0 0.0
    %2994 = vmatprep.subr.mxu0 0.0
    %2995 = vmatpush2.msra.mxu0 0.0
    %2996 = vmatprep.subr.mxu0 0.0
    %2997 = vmatpush2.msra.mxu0 0.0
    %2998 = vmatprep.subr.mxu0 0.0
    %2999 = vmatpush2.msra.mxu0 0.0
    %3000 = vmatprep.subr.mxu0 0.0
    %3001 = vmatpush2.msra.mxu0 0.0
    %3002 = vmatprep.subr.mxu0 0.0
    %3003 = vmatpush2.msra.mxu0 0.0
    %3004 = vmatprep.mubr.f32.mxu0 0.0
    %3005 = vmatmul.mubr.f32.gmra.mxu0 %v2938
    %v3006 = vpop.f32.mrf.mxu0
    %v3007 = vadd.f32 0.0, %v3006
    %v3008 = vpop.f32.mrf.mxu0
    %3009 = vdwg.mxu0
    %v3011 = vsel %vm2815, %v2857, 0
    %3013 = vmatprep.subr.mxu0 0.0
    %3014 = vmatpush1.msra.mxu0 0.0
    %3015 = vmatprep.subr.mxu0 0.0
    %3016 = vmatpush1.msra.mxu0 0.0
    %3017 = vmatprep.subr.mxu0 0.0
    %3018 = vmatpush1.msra.mxu0 0.0
    %3019 = vmatprep.subr.mxu0 0.0
    %3020 = vmatpush1.msra.mxu0 0.0
    %3021 = vmatprep.subr.mxu0 0.0
    %3022 = vmatpush1.msra.mxu0 0.0
    %3023 = vmatprep.subr.mxu0 0.0
    %3024 = vmatpush1.msra.mxu0 0.0
    %3025 = vmatprep.subr.mxu0 0.0
    %3026 = vmatpush1.msra.mxu0 0.0
    %3027 = vmatprep.subr.mxu0 0.0
    %3028 = vmatpush1.msra.mxu0 0.0
    %3029 = vmatprep.subr.mxu0 0.0
    %3030 = vmatpush1.msra.mxu0 0.0
    %3031 = vmatprep.subr.mxu0 0.0
    %3032 = vmatpush1.msra.mxu0 0.0
    %3033 = vmatprep.subr.mxu0 0.0
    %3034 = vmatpush1.msra.mxu0 0.0
    %3035 = vmatprep.subr.mxu0 0.0
    %3036 = vmatpush1.msra.mxu0 0.0
    %3037 = vmatprep.subr.mxu0 0.0
    %3038 = vmatpush1.msra.mxu0 0.0
    %3039 = vmatprep.subr.mxu0 0.0
    %3040 = vmatpush1.msra.mxu0 0.0
    %3041 = vmatprep.subr.mxu0 0.0
    %3042 = vmatpush1.msra.mxu0 0.0
    %3043 = vmatprep.subr.mxu0 0.0
    %3044 = vmatpush1.msra.mxu0 %v2504
    %3045 = vmatprep.subr.mxu0 0.0
    %3046 = vmatpush2.msra.mxu0 0.0
    %3047 = vmatprep.subr.mxu0 0.0
    %3048 = vmatpush2.msra.mxu0 0.0
    %3049 = vmatprep.subr.mxu0 0.0
    %3050 = vmatpush2.msra.mxu0 0.0
    %3051 = vmatprep.subr.mxu0 0.0
    %3052 = vmatpush2.msra.mxu0 0.0
    %3053 = vmatprep.subr.mxu0 0.0
    %3054 = vmatpush2.msra.mxu0 0.0
    %3055 = vmatprep.subr.mxu0 0.0
    %3056 = vmatpush2.msra.mxu0 0.0
    %3057 = vmatprep.subr.mxu0 0.0
    %3058 = vmatpush2.msra.mxu0 0.0
    %3059 = vmatprep.subr.mxu0 0.0
    %3060 = vmatpush2.msra.mxu0 0.0
    %3061 = vmatprep.subr.mxu0 0.0
    %3062 = vmatpush2.msra.mxu0 0.0
    %3063 = vmatprep.subr.mxu0 0.0
    %3064 = vmatpush2.msra.mxu0 0.0
    %3065 = vmatprep.subr.mxu0 0.0
    %3066 = vmatpush2.msra.mxu0 0.0
    %3067 = vmatprep.subr.mxu0 0.0
    %3068 = vmatpush2.msra.mxu0 0.0
    %3069 = vmatprep.subr.mxu0 0.0
    %3070 = vmatpush2.msra.mxu0 0.0
    %3071 = vmatprep.subr.mxu0 0.0
    %3072 = vmatpush2.msra.mxu0 0.0
    %3073 = vmatprep.subr.mxu0 0.0
    %3074 = vmatpush2.msra.mxu0 0.0
    %3075 = vmatprep.subr.mxu0 0.0
    %3076 = vmatpush2.msra.mxu0 0.0
    %3077 = vmatprep.mubr.f32.mxu0 0.0
    %3078 = vmatmul.mubr.f32.gmra.mxu0 %v3011
    %v3079 = vpop.f32.mrf.mxu0
    %v3080 = vadd.f32 0.0, %v3079
    %v3081 = vpop.f32.mrf.mxu0
    %3082 = vdwg.mxu0
    %v3084 = vsel %vm2815, %v2859, 0
    %3086 = vmatprep.subr.mxu0 0.0
    %3087 = vmatpush1.msra.mxu0 0.0
    %3088 = vmatprep.subr.mxu0 0.0
    %3089 = vmatpush1.msra.mxu0 0.0
    %3090 = vmatprep.subr.mxu0 0.0
    %3091 = vmatpush1.msra.mxu0 0.0
    %3092 = vmatprep.subr.mxu0 0.0
    %3093 = vmatpush1.msra.mxu0 0.0
    %3094 = vmatprep.subr.mxu0 0.0
    %3095 = vmatpush1.msra.mxu0 0.0
    %3096 = vmatprep.subr.mxu0 0.0
    %3097 = vmatpush1.msra.mxu0 0.0
    %3098 = vmatprep.subr.mxu0 0.0
    %3099 = vmatpush1.msra.mxu0 0.0
    %3100 = vmatprep.subr.mxu0 0.0
    %3101 = vmatpush1.msra.mxu0 0.0
    %3102 = vmatprep.subr.mxu0 0.0
    %3103 = vmatpush1.msra.mxu0 0.0
    %3104 = vmatprep.subr.mxu0 0.0
    %3105 = vmatpush1.msra.mxu0 0.0
    %3106 = vmatprep.subr.mxu0 0.0
    %3107 = vmatpush1.msra.mxu0 0.0
    %3108 = vmatprep.subr.mxu0 0.0
    %3109 = vmatpush1.msra.mxu0 0.0
    %3110 = vmatprep.subr.mxu0 0.0
    %3111 = vmatpush1.msra.mxu0 0.0
    %3112 = vmatprep.subr.mxu0 0.0
    %3113 = vmatpush1.msra.mxu0 0.0
    %3114 = vmatprep.subr.mxu0 0.0
    %3115 = vmatpush1.msra.mxu0 0.0
    %3116 = vmatprep.subr.mxu0 0.0
    %3117 = vmatpush1.msra.mxu0 %v2505
    %3118 = vmatprep.subr.mxu0 0.0
    %3119 = vmatpush2.msra.mxu0 0.0
    %3120 = vmatprep.subr.mxu0 0.0
    %3121 = vmatpush2.msra.mxu0 0.0
    %3122 = vmatprep.subr.mxu0 0.0
    %3123 = vmatpush2.msra.mxu0 0.0
    %3124 = vmatprep.subr.mxu0 0.0
    %3125 = vmatpush2.msra.mxu0 0.0
    %3126 = vmatprep.subr.mxu0 0.0
    %3127 = vmatpush2.msra.mxu0 0.0
    %3128 = vmatprep.subr.mxu0 0.0
    %3129 = vmatpush2.msra.mxu0 0.0
    %3130 = vmatprep.subr.mxu0 0.0
    %3131 = vmatpush2.msra.mxu0 0.0
    %3132 = vmatprep.subr.mxu0 0.0
    %3133 = vmatpush2.msra.mxu0 0.0
    %3134 = vmatprep.subr.mxu0 0.0
    %3135 = vmatpush2.msra.mxu0 0.0
    %3136 = vmatprep.subr.mxu0 0.0
    %3137 = vmatpush2.msra.mxu0 0.0
    %3138 = vmatprep.subr.mxu0 0.0
    %3139 = vmatpush2.msra.mxu0 0.0
    %3140 = vmatprep.subr.mxu0 0.0
    %3141 = vmatpush2.msra.mxu0 0.0
    %3142 = vmatprep.subr.mxu0 0.0
    %3143 = vmatpush2.msra.mxu0 0.0
    %3144 = vmatprep.subr.mxu0 0.0
    %3145 = vmatpush2.msra.mxu0 0.0
    %3146 = vmatprep.subr.mxu0 0.0
    %3147 = vmatpush2.msra.mxu0 0.0
    %3148 = vmatprep.subr.mxu0 0.0
    %3149 = vmatpush2.msra.mxu0 0.0
    %3150 = vmatprep.mubr.f32.mxu0 0.0
    %3151 = vmatmul.mubr.f32.gmra.mxu0 %v3084
    %v3152 = vpop.f32.mrf.mxu0
    %v3153 = vadd.f32 0.0, %v3152
    %v3154 = vpop.f32.mrf.mxu0
    %3155 = vdwg.mxu0
    %v3156 = vcombine.low %v2934, %v3080
    %v3157 = vcombine.high %v2934, %v3080
    %v3159 = vunpack.c.l.s4 1983009808
    %v3160 = vunpack.c.0.s8 %v3159
    %v3161 = vlaneseq
    %v3162 = vshrl.u32 %v3161, 7
    %v3163 = vsub.s32 %v3160, %v3162
    %v3164 = vrot.slane %v3156, %v3163
    %v3166 = vunpack.c.l.s4 1983009808
    %v3167 = vunpack.c.0.s8 %v3166
    %v3168 = vlaneseq
    %v3169 = vshrl.u32 %v3168, 7
    %v3170 = vsub.s32 %v3167, %v3169
    %v3171 = vrot.slane %v3157, %v3170
    %v3172 = vcombine.low %v3007, %v3153
    %v3173 = vcombine.high %v3007, %v3153
    %v3175 = vunpack.c.l.s4 1983009808
    %v3176 = vunpack.c.0.s8 %v3175
    %v3177 = vlaneseq
    %v3178 = vshrl.u32 %v3177, 7
    %v3179 = vsub.s32 %v3176, %v3178
    %v3180 = vrot.slane %v3172, %v3179
    %v3182 = vunpack.c.l.s4 1983009808
    %v3183 = vunpack.c.0.s8 %v3182
    %v3184 = vlaneseq
    %v3185 = vshrl.u32 %v3184, 7
    %v3186 = vsub.s32 %v3183, %v3185
    %v3187 = vrot.slane %v3173, %v3186
    %v3188 = vcombine.low %v3164, %v3180
    %v3189 = vcombine.high %v3164, %v3180
    %v3191 = vunpack.c.l.s4 1934713408
    %v3192 = vunpack.c.0.s8 %v3191
    %v3193 = vlaneseq
    %v3194 = vshrl.u32 %v3193, 7
    %v3195 = vsub.s32 %v3192, %v3194
    %v3196 = vrot.slane %v3188, %v3195
    %v3198 = vunpack.c.l.s4 1934713408
    %v3199 = vunpack.c.0.s8 %v3198
    %v3200 = vlaneseq
    %v3201 = vshrl.u32 %v3200, 7
    %v3202 = vsub.s32 %v3199, %v3201
    %v3203 = vrot.slane %v3189, %v3202
    %v3204 = vcombine.low %v3171, %v3187
    %v3205 = vcombine.high %v3171, %v3187
    %v3207 = vunpack.c.l.s4 1934713408
    %v3208 = vunpack.c.0.s8 %v3207
    %v3209 = vlaneseq
    %v3210 = vshrl.u32 %v3209, 7
    %v3211 = vsub.s32 %v3208, %v3210
    %v3212 = vrot.slane %v3204, %v3211
    %v3214 = vunpack.c.l.s4 1934713408
    %v3215 = vunpack.c.0.s8 %v3214
    %v3216 = vlaneseq
    %v3217 = vshrl.u32 %v3216, 7
    %v3218 = vsub.s32 %v3215, %v3217
    %v3219 = vrot.slane %v3205, %v3218
    %v3220 = vcombine.high %v3196, 0.0
    %v3221 = vcombine.high %v3203, 0.0
    %v3222 = vcombine.high %v3212, 0.0
    %v3223 = vcombine.high %v3219, 0.0
    %v3224 = vcombine.low %v3196, %v3203
    %v3226 = vunpack.c.l.s4 1983009808
    %v3227 = vunpack.c.0.s8 %v3226
    %v3228 = vlaneseq
    %v3229 = vshrl.u32 %v3228, 7
    %v3230 = vsub.s32 %v3227, %v3229
    %v3231 = vrot.slane %v3224, %v3230
    %v3232 = vcombine.low %v3220, %v3221
    %v3234 = vunpack.c.l.s4 1983009808
    %v3235 = vunpack.c.0.s8 %v3234
    %v3236 = vlaneseq
    %v3237 = vshrl.u32 %v3236, 7
    %v3238 = vsub.s32 %v3235, %v3237
    %v3239 = vrot.slane %v3232, %v3238
    %v3240 = vcombine.low %v3212, %v3219
    %v3242 = vunpack.c.l.s4 1983009808
    %v3243 = vunpack.c.0.s8 %v3242
    %v3244 = vlaneseq
    %v3245 = vshrl.u32 %v3244, 7
    %v3246 = vsub.s32 %v3243, %v3245
    %v3247 = vrot.slane %v3240, %v3246
    %v3248 = vcombine.low %v3222, %v3223
    %v3250 = vunpack.c.l.s4 1983009808
    %v3251 = vunpack.c.0.s8 %v3250
    %v3252 = vlaneseq
    %v3253 = vshrl.u32 %v3252, 7
    %v3254 = vsub.s32 %v3251, %v3253
    %v3255 = vrot.slane %v3248, %v3254
    %v3256 = vcombine.low %v3231, %v3239
    %v3257 = vcombine.high %v3231, %v3239
    %v3259 = vunpack.c.l.s4 1934713408
    %v3260 = vunpack.c.0.s8 %v3259
    %v3261 = vlaneseq
    %v3262 = vshrl.u32 %v3261, 7
    %v3263 = vsub.s32 %v3260, %v3262
    %v3264 = vrot.slane %v3256, %v3263
    %v3266 = vunpack.c.l.s4 1934713408
    %v3267 = vunpack.c.0.s8 %v3266
    %v3268 = vlaneseq
    %v3269 = vshrl.u32 %v3268, 7
    %v3270 = vsub.s32 %v3267, %v3269
    %v3271 = vrot.slane %v3257, %v3270
    %v3272 = vcombine.low %v3247, %v3255
    %v3273 = vcombine.high %v3247, %v3255
    %v3275 = vunpack.c.l.s4 1934713408
    %v3276 = vunpack.c.0.s8 %v3275
    %v3277 = vlaneseq
    %v3278 = vshrl.u32 %v3277, 7
    %v3279 = vsub.s32 %v3276, %v3278
    %v3280 = vrot.slane %v3272, %v3279
    %v3282 = vunpack.c.l.s4 1934713408
    %v3283 = vunpack.c.0.s8 %v3282
    %v3284 = vlaneseq
    %v3285 = vshrl.u32 %v3284, 7
    %v3286 = vsub.s32 %v3283, %v3285
    %v3287 = vrot.slane %v3273, %v3286
    %v3288 = vcombine.low %v3264, %v3280
    %v3289 = vcombine.high %v3264, %v3280
    %v3290 = vcombine.low %v3271, %v3287
    %v3291 = vcombine.high %v3271, %v3287
    %3293 = vrot.lane.b32.xlu0 %v3289, 16
    %v3294 = vpop.permute.xlu0 %3293
    %3297 = vrot.lane.b32.xlu0 %v3290, 32
    %v3298 = vpop.permute.xlu0 %3297
    %3301 = vrot.lane.b32.xlu0 %v3291, 48
    %v3302 = vpop.permute.xlu0 %3301
    %v3304 = vsel %vm2506, %v3288, %v3294
    %v3305 = vsel %vm71, %v3304, %v3298
    %vm3306 = vcmask 392192
    %v3307 = vsel %vm3306, %v3305, %v3302
    %3309 = vrot.lane.b32.xlu0 %v2062, 112
    %v3310 = vpop.permute.xlu0 %3309
    %3312 = vrot.lane.b32.xlu0 %v2062, 96
    %v3313 = vpop.permute.xlu0 %3312
    %3315 = vrot.lane.b32.xlu0 %v2062, 80
    %v3316 = vpop.permute.xlu0 %3315
    %v3318 = vcombine.low %v2062, %v3313
    %v3319 = vcombine.high %v2062, %v3313
    %v3321 = vunpack.c.l.s4 1983009808
    %v3322 = vunpack.c.0.s8 %v3321
    %v3323 = vlaneseq
    %v3324 = vshrl.u32 %v3323, 7
    %v3325 = vsub.s32 %v3322, %v3324
    %v3326 = vrot.slane %v3318, %v3325
    %v3328 = vunpack.c.l.s4 1983009808
    %v3329 = vunpack.c.0.s8 %v3328
    %v3330 = vlaneseq
    %v3331 = vshrl.u32 %v3330, 7
    %v3332 = vsub.s32 %v3329, %v3331
    %v3333 = vrot.slane %v3319, %v3332
    %v3334 = vcombine.low %v3310, %v3316
    %v3335 = vcombine.high %v3310, %v3316
    %v3337 = vunpack.c.l.s4 1983009808
    %v3338 = vunpack.c.0.s8 %v3337
    %v3339 = vlaneseq
    %v3340 = vshrl.u32 %v3339, 7
    %v3341 = vsub.s32 %v3338, %v3340
    %v3342 = vrot.slane %v3334, %v3341
    %v3344 = vunpack.c.l.s4 1983009808
    %v3345 = vunpack.c.0.s8 %v3344
    %v3346 = vlaneseq
    %v3347 = vshrl.u32 %v3346, 7
    %v3348 = vsub.s32 %v3345, %v3347
    %v3349 = vrot.slane %v3335, %v3348
    %v3350 = vcombine.low %v3326, %v3342
    %v3351 = vcombine.high %v3326, %v3342
    %v3353 = vunpack.c.l.s4 1934713408
    %v3354 = vunpack.c.0.s8 %v3353
    %v3355 = vlaneseq
    %v3356 = vshrl.u32 %v3355, 7
    %v3357 = vsub.s32 %v3354, %v3356
    %v3358 = vrot.slane %v3350, %v3357
    %v3360 = vunpack.c.l.s4 1934713408
    %v3361 = vunpack.c.0.s8 %v3360
    %v3362 = vlaneseq
    %v3363 = vshrl.u32 %v3362, 7
    %v3364 = vsub.s32 %v3361, %v3363
    %v3365 = vrot.slane %v3351, %v3364
    %v3366 = vcombine.low %v3333, %v3349
    %v3367 = vcombine.high %v3333, %v3349
    %v3369 = vunpack.c.l.s4 1934713408
    %v3370 = vunpack.c.0.s8 %v3369
    %v3371 = vlaneseq
    %v3372 = vshrl.u32 %v3371, 7
    %v3373 = vsub.s32 %v3370, %v3372
    %v3374 = vrot.slane %v3366, %v3373
    %v3376 = vunpack.c.l.s4 1934713408
    %v3377 = vunpack.c.0.s8 %v3376
    %v3378 = vlaneseq
    %v3379 = vshrl.u32 %v3378, 7
    %v3380 = vsub.s32 %v3377, %v3379
    %v3381 = vrot.slane %v3367, %v3380
    %v3382 = vcombine.high %v3358, 0.0
    %v3383 = vcombine.high %v3365, 0.0
    %v3384 = vcombine.high %v3374, 0.0
    %v3385 = vcombine.high %v3381, 0.0
    %v3386 = vcombine.low %v3358, %v3365
    %v3388 = vunpack.c.l.s4 1983009808
    %v3389 = vunpack.c.0.s8 %v3388
    %v3390 = vlaneseq
    %v3391 = vshrl.u32 %v3390, 7
    %v3392 = vsub.s32 %v3389, %v3391
    %v3393 = vrot.slane %v3386, %v3392
    %v3394 = vcombine.low %v3382, %v3383
    %v3396 = vunpack.c.l.s4 1983009808
    %v3397 = vunpack.c.0.s8 %v3396
    %v3398 = vlaneseq
    %v3399 = vshrl.u32 %v3398, 7
    %v3400 = vsub.s32 %v3397, %v3399
    %v3401 = vrot.slane %v3394, %v3400
    %v3402 = vcombine.low %v3374, %v3381
    %v3404 = vunpack.c.l.s4 1983009808
    %v3405 = vunpack.c.0.s8 %v3404
    %v3406 = vlaneseq
    %v3407 = vshrl.u32 %v3406, 7
    %v3408 = vsub.s32 %v3405, %v3407
    %v3409 = vrot.slane %v3402, %v3408
    %v3410 = vcombine.low %v3384, %v3385
    %v3412 = vunpack.c.l.s4 1983009808
    %v3413 = vunpack.c.0.s8 %v3412
    %v3414 = vlaneseq
    %v3415 = vshrl.u32 %v3414, 7
    %v3416 = vsub.s32 %v3413, %v3415
    %v3417 = vrot.slane %v3410, %v3416
    %v3418 = vcombine.low %v3393, %v3401
    %v3419 = vcombine.high %v3393, %v3401
    %v3421 = vunpack.c.l.s4 1934713408
    %v3422 = vunpack.c.0.s8 %v3421
    %v3423 = vlaneseq
    %v3424 = vshrl.u32 %v3423, 7
    %v3425 = vsub.s32 %v3422, %v3424
    %v3426 = vrot.slane %v3418, %v3425
    %v3428 = vunpack.c.l.s4 1934713408
    %v3429 = vunpack.c.0.s8 %v3428
    %v3430 = vlaneseq
    %v3431 = vshrl.u32 %v3430, 7
    %v3432 = vsub.s32 %v3429, %v3431
    %v3433 = vrot.slane %v3419, %v3432
    %v3434 = vcombine.low %v3409, %v3417
    %v3435 = vcombine.high %v3409, %v3417
    %v3437 = vunpack.c.l.s4 1934713408
    %v3438 = vunpack.c.0.s8 %v3437
    %v3439 = vlaneseq
    %v3440 = vshrl.u32 %v3439, 7
    %v3441 = vsub.s32 %v3438, %v3440
    %v3442 = vrot.slane %v3434, %v3441
    %v3444 = vunpack.c.l.s4 1934713408
    %v3445 = vunpack.c.0.s8 %v3444
    %v3446 = vlaneseq
    %v3447 = vshrl.u32 %v3446, 7
    %v3448 = vsub.s32 %v3445, %v3447
    %v3449 = vrot.slane %v3435, %v3448
    %v3450 = vcombine.low %v3426, %v3442
    %v3451 = vcombine.high %v3426, %v3442
    %v3452 = vcombine.low %v3433, %v3449
    %v3453 = vcombine.high %v3433, %v3449
    %3454 = vrot.lane.b32.xlu0 %v2062, 64
    %v3455 = vpop.permute.xlu0 %3454
    %3456 = vrot.lane.b32.xlu0 %v3310, 64
    %v3457 = vpop.permute.xlu0 %3456
    %3458 = vrot.lane.b32.xlu0 %v3313, 64
    %v3459 = vpop.permute.xlu0 %3458
    %3460 = vrot.lane.b32.xlu0 %v3316, 64
    %v3461 = vpop.permute.xlu0 %3460
    %v3466 = vcombine.low %v3455, %v3459
    %v3467 = vcombine.high %v3455, %v3459
    %v3469 = vunpack.c.l.s4 1983009808
    %v3470 = vunpack.c.0.s8 %v3469
    %v3471 = vlaneseq
    %v3472 = vshrl.u32 %v3471, 7
    %v3473 = vsub.s32 %v3470, %v3472
    %v3474 = vrot.slane %v3466, %v3473
    %v3476 = vunpack.c.l.s4 1983009808
    %v3477 = vunpack.c.0.s8 %v3476
    %v3478 = vlaneseq
    %v3479 = vshrl.u32 %v3478, 7
    %v3480 = vsub.s32 %v3477, %v3479
    %v3481 = vrot.slane %v3467, %v3480
    %v3482 = vcombine.low %v3457, %v3461
    %v3483 = vcombine.high %v3457, %v3461
    %v3485 = vunpack.c.l.s4 1983009808
    %v3486 = vunpack.c.0.s8 %v3485
    %v3487 = vlaneseq
    %v3488 = vshrl.u32 %v3487, 7
    %v3489 = vsub.s32 %v3486, %v3488
    %v3490 = vrot.slane %v3482, %v3489
    %v3492 = vunpack.c.l.s4 1983009808
    %v3493 = vunpack.c.0.s8 %v3492
    %v3494 = vlaneseq
    %v3495 = vshrl.u32 %v3494, 7
    %v3496 = vsub.s32 %v3493, %v3495
    %v3497 = vrot.slane %v3483, %v3496
    %v3498 = vcombine.low %v3474, %v3490
    %v3499 = vcombine.high %v3474, %v3490
    %v3501 = vunpack.c.l.s4 1934713408
    %v3502 = vunpack.c.0.s8 %v3501
    %v3503 = vlaneseq
    %v3504 = vshrl.u32 %v3503, 7
    %v3505 = vsub.s32 %v3502, %v3504
    %v3506 = vrot.slane %v3498, %v3505
    %v3508 = vunpack.c.l.s4 1934713408
    %v3509 = vunpack.c.0.s8 %v3508
    %v3510 = vlaneseq
    %v3511 = vshrl.u32 %v3510, 7
    %v3512 = vsub.s32 %v3509, %v3511
    %v3513 = vrot.slane %v3499, %v3512
    %v3514 = vcombine.low %v3481, %v3497
    %v3515 = vcombine.high %v3481, %v3497
    %v3517 = vunpack.c.l.s4 1934713408
    %v3518 = vunpack.c.0.s8 %v3517
    %v3519 = vlaneseq
    %v3520 = vshrl.u32 %v3519, 7
    %v3521 = vsub.s32 %v3518, %v3520
    %v3522 = vrot.slane %v3514, %v3521
    %v3524 = vunpack.c.l.s4 1934713408
    %v3525 = vunpack.c.0.s8 %v3524
    %v3526 = vlaneseq
    %v3527 = vshrl.u32 %v3526, 7
    %v3528 = vsub.s32 %v3525, %v3527
    %v3529 = vrot.slane %v3515, %v3528
    %v3530 = vcombine.high %v3506, 0.0
    %v3531 = vcombine.high %v3513, 0.0
    %v3532 = vcombine.high %v3522, 0.0
    %v3533 = vcombine.high %v3529, 0.0
    %v3534 = vcombine.low %v3506, %v3513
    %v3536 = vunpack.c.l.s4 1983009808
    %v3537 = vunpack.c.0.s8 %v3536
    %v3538 = vlaneseq
    %v3539 = vshrl.u32 %v3538, 7
    %v3540 = vsub.s32 %v3537, %v3539
    %v3541 = vrot.slane %v3534, %v3540
    %v3542 = vcombine.low %v3530, %v3531
    %v3544 = vunpack.c.l.s4 1983009808
    %v3545 = vunpack.c.0.s8 %v3544
    %v3546 = vlaneseq
    %v3547 = vshrl.u32 %v3546, 7
    %v3548 = vsub.s32 %v3545, %v3547
    %v3549 = vrot.slane %v3542, %v3548
    %v3550 = vcombine.low %v3522, %v3529
    %v3552 = vunpack.c.l.s4 1983009808
    %v3553 = vunpack.c.0.s8 %v3552
    %v3554 = vlaneseq
    %v3555 = vshrl.u32 %v3554, 7
    %v3556 = vsub.s32 %v3553, %v3555
    %v3557 = vrot.slane %v3550, %v3556
    %v3558 = vcombine.low %v3532, %v3533
    %v3560 = vunpack.c.l.s4 1983009808
    %v3561 = vunpack.c.0.s8 %v3560
    %v3562 = vlaneseq
    %v3563 = vshrl.u32 %v3562, 7
    %v3564 = vsub.s32 %v3561, %v3563
    %v3565 = vrot.slane %v3558, %v3564
    %v3566 = vcombine.low %v3541, %v3549
    %v3567 = vcombine.high %v3541, %v3549
    %v3569 = vunpack.c.l.s4 1934713408
    %v3570 = vunpack.c.0.s8 %v3569
    %v3571 = vlaneseq
    %v3572 = vshrl.u32 %v3571, 7
    %v3573 = vsub.s32 %v3570, %v3572
    %v3574 = vrot.slane %v3566, %v3573
    %v3576 = vunpack.c.l.s4 1934713408
    %v3577 = vunpack.c.0.s8 %v3576
    %v3578 = vlaneseq
    %v3579 = vshrl.u32 %v3578, 7
    %v3580 = vsub.s32 %v3577, %v3579
    %v3581 = vrot.slane %v3567, %v3580
    %v3582 = vcombine.low %v3557, %v3565
    %v3583 = vcombine.high %v3557, %v3565
    %v3585 = vunpack.c.l.s4 1934713408
    %v3586 = vunpack.c.0.s8 %v3585
    %v3587 = vlaneseq
    %v3588 = vshrl.u32 %v3587, 7
    %v3589 = vsub.s32 %v3586, %v3588
    %v3590 = vrot.slane %v3582, %v3589
    %v3592 = vunpack.c.l.s4 1934713408
    %v3593 = vunpack.c.0.s8 %v3592
    %v3594 = vlaneseq
    %v3595 = vshrl.u32 %v3594, 7
    %v3596 = vsub.s32 %v3593, %v3595
    %v3597 = vrot.slane %v3583, %v3596
    %v3598 = vcombine.low %v3574, %v3590
    %v3599 = vcombine.high %v3574, %v3590
    %v3600 = vcombine.low %v3581, %v3597
    %v3601 = vcombine.high %v3581, %v3597
    %3603 = vrot.lane.b32.xlu0 %v2064, 112
    %v3604 = vpop.permute.xlu0 %3603
    %3606 = vrot.lane.b32.xlu0 %v2064, 96
    %v3607 = vpop.permute.xlu0 %3606
    %3609 = vrot.lane.b32.xlu0 %v2064, 80
    %v3610 = vpop.permute.xlu0 %3609
    %v3612 = vcombine.low %v2064, %v3607
    %v3613 = vcombine.high %v2064, %v3607
    %v3615 = vunpack.c.l.s4 1983009808
    %v3616 = vunpack.c.0.s8 %v3615
    %v3617 = vlaneseq
    %v3618 = vshrl.u32 %v3617, 7
    %v3619 = vsub.s32 %v3616, %v3618
    %v3620 = vrot.slane %v3612, %v3619
    %v3622 = vunpack.c.l.s4 1983009808
    %v3623 = vunpack.c.0.s8 %v3622
    %v3624 = vlaneseq
    %v3625 = vshrl.u32 %v3624, 7
    %v3626 = vsub.s32 %v3623, %v3625
    %v3627 = vrot.slane %v3613, %v3626
    %v3628 = vcombine.low %v3604, %v3610
    %v3629 = vcombine.high %v3604, %v3610
    %v3631 = vunpack.c.l.s4 1983009808
    %v3632 = vunpack.c.0.s8 %v3631
    %v3633 = vlaneseq
    %v3634 = vshrl.u32 %v3633, 7
    %v3635 = vsub.s32 %v3632, %v3634
    %v3636 = vrot.slane %v3628, %v3635
    %v3638 = vunpack.c.l.s4 1983009808
    %v3639 = vunpack.c.0.s8 %v3638
    %v3640 = vlaneseq
    %v3641 = vshrl.u32 %v3640, 7
    %v3642 = vsub.s32 %v3639, %v3641
    %v3643 = vrot.slane %v3629, %v3642
    %v3644 = vcombine.low %v3620, %v3636
    %v3645 = vcombine.high %v3620, %v3636
    %v3647 = vunpack.c.l.s4 1934713408
    %v3648 = vunpack.c.0.s8 %v3647
    %v3649 = vlaneseq
    %v3650 = vshrl.u32 %v3649, 7
    %v3651 = vsub.s32 %v3648, %v3650
    %v3652 = vrot.slane %v3644, %v3651
    %v3654 = vunpack.c.l.s4 1934713408
    %v3655 = vunpack.c.0.s8 %v3654
    %v3656 = vlaneseq
    %v3657 = vshrl.u32 %v3656, 7
    %v3658 = vsub.s32 %v3655, %v3657
    %v3659 = vrot.slane %v3645, %v3658
    %v3660 = vcombine.low %v3627, %v3643
    %v3661 = vcombine.high %v3627, %v3643
    %v3663 = vunpack.c.l.s4 1934713408
    %v3664 = vunpack.c.0.s8 %v3663
    %v3665 = vlaneseq
    %v3666 = vshrl.u32 %v3665, 7
    %v3667 = vsub.s32 %v3664, %v3666
    %v3668 = vrot.slane %v3660, %v3667
    %v3670 = vunpack.c.l.s4 1934713408
    %v3671 = vunpack.c.0.s8 %v3670
    %v3672 = vlaneseq
    %v3673 = vshrl.u32 %v3672, 7
    %v3674 = vsub.s32 %v3671, %v3673
    %v3675 = vrot.slane %v3661, %v3674
    %v3676 = vcombine.high %v3652, 0.0
    %v3677 = vcombine.high %v3659, 0.0
    %v3678 = vcombine.high %v3668, 0.0
    %v3679 = vcombine.high %v3675, 0.0
    %v3680 = vcombine.low %v3652, %v3659
    %v3682 = vunpack.c.l.s4 1983009808
    %v3683 = vunpack.c.0.s8 %v3682
    %v3684 = vlaneseq
    %v3685 = vshrl.u32 %v3684, 7
    %v3686 = vsub.s32 %v3683, %v3685
    %v3687 = vrot.slane %v3680, %v3686
    %v3688 = vcombine.low %v3676, %v3677
    %v3690 = vunpack.c.l.s4 1983009808
    %v3691 = vunpack.c.0.s8 %v3690
    %v3692 = vlaneseq
    %v3693 = vshrl.u32 %v3692, 7
    %v3694 = vsub.s32 %v3691, %v3693
    %v3695 = vrot.slane %v3688, %v3694
    %v3696 = vcombine.low %v3668, %v3675
    %v3698 = vunpack.c.l.s4 1983009808
    %v3699 = vunpack.c.0.s8 %v3698
    %v3700 = vlaneseq
    %v3701 = vshrl.u32 %v3700, 7
    %v3702 = vsub.s32 %v3699, %v3701
    %v3703 = vrot.slane %v3696, %v3702
    %v3704 = vcombine.low %v3678, %v3679
    %v3706 = vunpack.c.l.s4 1983009808
    %v3707 = vunpack.c.0.s8 %v3706
    %v3708 = vlaneseq
    %v3709 = vshrl.u32 %v3708, 7
    %v3710 = vsub.s32 %v3707, %v3709
    %v3711 = vrot.slane %v3704, %v3710
    %v3712 = vcombine.low %v3687, %v3695
    %v3713 = vcombine.high %v3687, %v3695
    %v3715 = vunpack.c.l.s4 1934713408
    %v3716 = vunpack.c.0.s8 %v3715
    %v3717 = vlaneseq
    %v3718 = vshrl.u32 %v3717, 7
    %v3719 = vsub.s32 %v3716, %v3718
    %v3720 = vrot.slane %v3712, %v3719
    %v3722 = vunpack.c.l.s4 1934713408
    %v3723 = vunpack.c.0.s8 %v3722
    %v3724 = vlaneseq
    %v3725 = vshrl.u32 %v3724, 7
    %v3726 = vsub.s32 %v3723, %v3725
    %v3727 = vrot.slane %v3713, %v3726
    %v3728 = vcombine.low %v3703, %v3711
    %v3729 = vcombine.high %v3703, %v3711
    %v3731 = vunpack.c.l.s4 1934713408
    %v3732 = vunpack.c.0.s8 %v3731
    %v3733 = vlaneseq
    %v3734 = vshrl.u32 %v3733, 7
    %v3735 = vsub.s32 %v3732, %v3734
    %v3736 = vrot.slane %v3728, %v3735
    %v3738 = vunpack.c.l.s4 1934713408
    %v3739 = vunpack.c.0.s8 %v3738
    %v3740 = vlaneseq
    %v3741 = vshrl.u32 %v3740, 7
    %v3742 = vsub.s32 %v3739, %v3741
    %v3743 = vrot.slane %v3729, %v3742
    %v3744 = vcombine.low %v3720, %v3736
    %v3745 = vcombine.high %v3720, %v3736
    %v3746 = vcombine.low %v3727, %v3743
    %v3747 = vcombine.high %v3727, %v3743
    %v3749 = vsel %vm2506, %v3450, 0
    %v3752 = vsel %vm2506, %v3598, 0
    %3754 = vmatprep.subr.mxu0 0.0
    %3755 = vmatpush1.xpose.msra.mxu0 0.0
    %3756 = vmatprep.subr.mxu0 0.0
    %3757 = vmatpush1.xpose.msra.mxu0 0.0
    %3758 = vmatprep.subr.mxu0 0.0
    %3759 = vmatpush1.xpose.msra.mxu0 0.0
    %3760 = vmatprep.subr.mxu0 0.0
    %3761 = vmatpush1.xpose.msra.mxu0 0.0
    %3762 = vmatprep.subr.mxu0 0.0
    %3763 = vmatpush1.xpose.msra.mxu0 0.0
    %3764 = vmatprep.subr.mxu0 0.0
    %3765 = vmatpush1.xpose.msra.mxu0 0.0
    %3766 = vmatprep.subr.mxu0 0.0
    %3767 = vmatpush1.xpose.msra.mxu0 0.0
    %3768 = vmatprep.subr.mxu0 0.0
    %3769 = vmatpush1.xpose.msra.mxu0 0.0
    %3770 = vmatprep.subr.mxu0 0.0
    %3771 = vmatpush1.xpose.msra.mxu0 0.0
    %3772 = vmatprep.subr.mxu0 0.0
    %3773 = vmatpush1.xpose.msra.mxu0 0.0
    %3774 = vmatprep.subr.mxu0 0.0
    %3775 = vmatpush1.xpose.msra.mxu0 0.0
    %3776 = vmatprep.subr.mxu0 0.0
    %3777 = vmatpush1.xpose.msra.mxu0 0.0
    %3778 = vmatprep.subr.mxu0 0.0
    %3779 = vmatpush1.xpose.msra.mxu0 0.0
    %3780 = vmatprep.subr.mxu0 0.0
    %3781 = vmatpush1.xpose.msra.mxu0 0.0
    %3782 = vmatprep.subr.mxu0 0.0
    %3783 = vmatpush1.xpose.msra.mxu0 0.0
    %3784 = vmatprep.subr.mxu0 0.0
    %3785 = vmatpush1.xpose.msra.mxu0 %v3752
    %3786 = vmatprep.subr.mxu0 0.0
    %3787 = vmatpush2.xpose.msra.mxu0 0.0
    %3788 = vmatprep.subr.mxu0 0.0
    %3789 = vmatpush2.xpose.msra.mxu0 0.0
    %3790 = vmatprep.subr.mxu0 0.0
    %3791 = vmatpush2.xpose.msra.mxu0 0.0
    %3792 = vmatprep.subr.mxu0 0.0
    %3793 = vmatpush2.xpose.msra.mxu0 0.0
    %3794 = vmatprep.subr.mxu0 0.0
    %3795 = vmatpush2.xpose.msra.mxu0 0.0
    %3796 = vmatprep.subr.mxu0 0.0
    %3797 = vmatpush2.xpose.msra.mxu0 0.0
    %3798 = vmatprep.subr.mxu0 0.0
    %3799 = vmatpush2.xpose.msra.mxu0 0.0
    %3800 = vmatprep.subr.mxu0 0.0
    %3801 = vmatpush2.xpose.msra.mxu0 0.0
    %3802 = vmatprep.subr.mxu0 0.0
    %3803 = vmatpush2.xpose.msra.mxu0 0.0
    %3804 = vmatprep.subr.mxu0 0.0
    %3805 = vmatpush2.xpose.msra.mxu0 0.0
    %3806 = vmatprep.subr.mxu0 0.0
    %3807 = vmatpush2.xpose.msra.mxu0 0.0
    %3808 = vmatprep.subr.mxu0 0.0
    %3809 = vmatpush2.xpose.msra.mxu0 0.0
    %3810 = vmatprep.subr.mxu0 0.0
    %3811 = vmatpush2.xpose.msra.mxu0 0.0
    %3812 = vmatprep.subr.mxu0 0.0
    %3813 = vmatpush2.xpose.msra.mxu0 0.0
    %3814 = vmatprep.subr.mxu0 0.0
    %3815 = vmatpush2.xpose.msra.mxu0 0.0
    %3816 = vmatprep.subr.mxu0 0.0
    %3817 = vmatpush2.xpose.msra.mxu0 0.0
    %3818 = vmatprep.mubr.f32.mxu0 0.0
    %3819 = vmatmul.mubr.f32.gmra.mxu0 %v3749
    %v3820 = vpop.f32.mrf.mxu0
    %v3821 = vadd.f32 0.0, %v3820
    %v3822 = vpop.f32.mrf.mxu0
    %3823 = vdwg.mxu0
    %v3825 = vsel %vm2506, %v3451, 0
    %v3828 = vsel %vm2506, %v3599, 0
    %3830 = vmatprep.subr.mxu0 0.0
    %3831 = vmatpush1.xpose.msra.mxu0 0.0
    %3832 = vmatprep.subr.mxu0 0.0
    %3833 = vmatpush1.xpose.msra.mxu0 0.0
    %3834 = vmatprep.subr.mxu0 0.0
    %3835 = vmatpush1.xpose.msra.mxu0 0.0
    %3836 = vmatprep.subr.mxu0 0.0
    %3837 = vmatpush1.xpose.msra.mxu0 0.0
    %3838 = vmatprep.subr.mxu0 0.0
    %3839 = vmatpush1.xpose.msra.mxu0 0.0
    %3840 = vmatprep.subr.mxu0 0.0
    %3841 = vmatpush1.xpose.msra.mxu0 0.0
    %3842 = vmatprep.subr.mxu0 0.0
    %3843 = vmatpush1.xpose.msra.mxu0 0.0
    %3844 = vmatprep.subr.mxu0 0.0
    %3845 = vmatpush1.xpose.msra.mxu0 0.0
    %3846 = vmatprep.subr.mxu0 0.0
    %3847 = vmatpush1.xpose.msra.mxu0 0.0
    %3848 = vmatprep.subr.mxu0 0.0
    %3849 = vmatpush1.xpose.msra.mxu0 0.0
    %3850 = vmatprep.subr.mxu0 0.0
    %3851 = vmatpush1.xpose.msra.mxu0 0.0
    %3852 = vmatprep.subr.mxu0 0.0
    %3853 = vmatpush1.xpose.msra.mxu0 0.0
    %3854 = vmatprep.subr.mxu0 0.0
    %3855 = vmatpush1.xpose.msra.mxu0 0.0
    %3856 = vmatprep.subr.mxu0 0.0
    %3857 = vmatpush1.xpose.msra.mxu0 0.0
    %3858 = vmatprep.subr.mxu0 0.0
    %3859 = vmatpush1.xpose.msra.mxu0 0.0
    %3860 = vmatprep.subr.mxu0 0.0
    %3861 = vmatpush1.xpose.msra.mxu0 %v3828
    %3862 = vmatprep.subr.mxu0 0.0
    %3863 = vmatpush2.xpose.msra.mxu0 0.0
    %3864 = vmatprep.subr.mxu0 0.0
    %3865 = vmatpush2.xpose.msra.mxu0 0.0
    %3866 = vmatprep.subr.mxu0 0.0
    %3867 = vmatpush2.xpose.msra.mxu0 0.0
    %3868 = vmatprep.subr.mxu0 0.0
    %3869 = vmatpush2.xpose.msra.mxu0 0.0
    %3870 = vmatprep.subr.mxu0 0.0
    %3871 = vmatpush2.xpose.msra.mxu0 0.0
    %3872 = vmatprep.subr.mxu0 0.0
    %3873 = vmatpush2.xpose.msra.mxu0 0.0
    %3874 = vmatprep.subr.mxu0 0.0
    %3875 = vmatpush2.xpose.msra.mxu0 0.0
    %3876 = vmatprep.subr.mxu0 0.0
    %3877 = vmatpush2.xpose.msra.mxu0 0.0
    %3878 = vmatprep.subr.mxu0 0.0
    %3879 = vmatpush2.xpose.msra.mxu0 0.0
    %3880 = vmatprep.subr.mxu0 0.0
    %3881 = vmatpush2.xpose.msra.mxu0 0.0
    %3882 = vmatprep.subr.mxu0 0.0
    %3883 = vmatpush2.xpose.msra.mxu0 0.0
    %3884 = vmatprep.subr.mxu0 0.0
    %3885 = vmatpush2.xpose.msra.mxu0 0.0
    %3886 = vmatprep.subr.mxu0 0.0
    %3887 = vmatpush2.xpose.msra.mxu0 0.0
    %3888 = vmatprep.subr.mxu0 0.0
    %3889 = vmatpush2.xpose.msra.mxu0 0.0
    %3890 = vmatprep.subr.mxu0 0.0
    %3891 = vmatpush2.xpose.msra.mxu0 0.0
    %3892 = vmatprep.subr.mxu0 0.0
    %3893 = vmatpush2.xpose.msra.mxu0 0.0
    %3894 = vmatprep.mubr.f32.mxu0 0.0
    %3895 = vmatmul.mubr.f32.gmra.mxu0 %v3825
    %v3896 = vpop.f32.mrf.mxu0
    %v3897 = vadd.f32 0.0, %v3896
    %v3898 = vpop.f32.mrf.mxu0
    %3899 = vdwg.mxu0
    %v3901 = vsel %vm2506, %v3452, 0
    %v3904 = vsel %vm2506, %v3600, 0
    %3906 = vmatprep.subr.mxu0 0.0
    %3907 = vmatpush1.xpose.msra.mxu0 0.0
    %3908 = vmatprep.subr.mxu0 0.0
    %3909 = vmatpush1.xpose.msra.mxu0 0.0
    %3910 = vmatprep.subr.mxu0 0.0
    %3911 = vmatpush1.xpose.msra.mxu0 0.0
    %3912 = vmatprep.subr.mxu0 0.0
    %3913 = vmatpush1.xpose.msra.mxu0 0.0
    %3914 = vmatprep.subr.mxu0 0.0
    %3915 = vmatpush1.xpose.msra.mxu0 0.0
    %3916 = vmatprep.subr.mxu0 0.0
    %3917 = vmatpush1.xpose.msra.mxu0 0.0
    %3918 = vmatprep.subr.mxu0 0.0
    %3919 = vmatpush1.xpose.msra.mxu0 0.0
    %3920 = vmatprep.subr.mxu0 0.0
    %3921 = vmatpush1.xpose.msra.mxu0 0.0
    %3922 = vmatprep.subr.mxu0 0.0
    %3923 = vmatpush1.xpose.msra.mxu0 0.0
    %3924 = vmatprep.subr.mxu0 0.0
    %3925 = vmatpush1.xpose.msra.mxu0 0.0
    %3926 = vmatprep.subr.mxu0 0.0
    %3927 = vmatpush1.xpose.msra.mxu0 0.0
    %3928 = vmatprep.subr.mxu0 0.0
    %3929 = vmatpush1.xpose.msra.mxu0 0.0
    %3930 = vmatprep.subr.mxu0 0.0
    %3931 = vmatpush1.xpose.msra.mxu0 0.0
    %3932 = vmatprep.subr.mxu0 0.0
    %3933 = vmatpush1.xpose.msra.mxu0 0.0
    %3934 = vmatprep.subr.mxu0 0.0
    %3935 = vmatpush1.xpose.msra.mxu0 0.0
    %3936 = vmatprep.subr.mxu0 0.0
    %3937 = vmatpush1.xpose.msra.mxu0 %v3904
    %3938 = vmatprep.subr.mxu0 0.0
    %3939 = vmatpush2.xpose.msra.mxu0 0.0
    %3940 = vmatprep.subr.mxu0 0.0
    %3941 = vmatpush2.xpose.msra.mxu0 0.0
    %3942 = vmatprep.subr.mxu0 0.0
    %3943 = vmatpush2.xpose.msra.mxu0 0.0
    %3944 = vmatprep.subr.mxu0 0.0
    %3945 = vmatpush2.xpose.msra.mxu0 0.0
    %3946 = vmatprep.subr.mxu0 0.0
    %3947 = vmatpush2.xpose.msra.mxu0 0.0
    %3948 = vmatprep.subr.mxu0 0.0
    %3949 = vmatpush2.xpose.msra.mxu0 0.0
    %3950 = vmatprep.subr.mxu0 0.0
    %3951 = vmatpush2.xpose.msra.mxu0 0.0
    %3952 = vmatprep.subr.mxu0 0.0
    %3953 = vmatpush2.xpose.msra.mxu0 0.0
    %3954 = vmatprep.subr.mxu0 0.0
    %3955 = vmatpush2.xpose.msra.mxu0 0.0
    %3956 = vmatprep.subr.mxu0 0.0
    %3957 = vmatpush2.xpose.msra.mxu0 0.0
    %3958 = vmatprep.subr.mxu0 0.0
    %3959 = vmatpush2.xpose.msra.mxu0 0.0
    %3960 = vmatprep.subr.mxu0 0.0
    %3961 = vmatpush2.xpose.msra.mxu0 0.0
    %3962 = vmatprep.subr.mxu0 0.0
    %3963 = vmatpush2.xpose.msra.mxu0 0.0
    %3964 = vmatprep.subr.mxu0 0.0
    %3965 = vmatpush2.xpose.msra.mxu0 0.0
    %3966 = vmatprep.subr.mxu0 0.0
    %3967 = vmatpush2.xpose.msra.mxu0 0.0
    %3968 = vmatprep.subr.mxu0 0.0
    %3969 = vmatpush2.xpose.msra.mxu0 0.0
    %3970 = vmatprep.mubr.f32.mxu0 0.0
    %3971 = vmatmul.mubr.f32.gmra.mxu0 %v3901
    %v3972 = vpop.f32.mrf.mxu0
    %v3973 = vadd.f32 0.0, %v3972
    %v3974 = vpop.f32.mrf.mxu0
    %3975 = vdwg.mxu0
    %v3977 = vsel %vm2506, %v3453, 0
    %v3980 = vsel %vm2506, %v3601, 0
    %3982 = vmatprep.subr.mxu0 0.0
    %3983 = vmatpush1.xpose.msra.mxu0 0.0
    %3984 = vmatprep.subr.mxu0 0.0
    %3985 = vmatpush1.xpose.msra.mxu0 0.0
    %3986 = vmatprep.subr.mxu0 0.0
    %3987 = vmatpush1.xpose.msra.mxu0 0.0
    %3988 = vmatprep.subr.mxu0 0.0
    %3989 = vmatpush1.xpose.msra.mxu0 0.0
    %3990 = vmatprep.subr.mxu0 0.0
    %3991 = vmatpush1.xpose.msra.mxu0 0.0
    %3992 = vmatprep.subr.mxu0 0.0
    %3993 = vmatpush1.xpose.msra.mxu0 0.0
    %3994 = vmatprep.subr.mxu0 0.0
    %3995 = vmatpush1.xpose.msra.mxu0 0.0
    %3996 = vmatprep.subr.mxu0 0.0
    %3997 = vmatpush1.xpose.msra.mxu0 0.0
    %3998 = vmatprep.subr.mxu0 0.0
    %3999 = vmatpush1.xpose.msra.mxu0 0.0
    %4000 = vmatprep.subr.mxu0 0.0
    %4001 = vmatpush1.xpose.msra.mxu0 0.0
    %4002 = vmatprep.subr.mxu0 0.0
    %4003 = vmatpush1.xpose.msra.mxu0 0.0
    %4004 = vmatprep.subr.mxu0 0.0
    %4005 = vmatpush1.xpose.msra.mxu0 0.0
    %4006 = vmatprep.subr.mxu0 0.0
    %4007 = vmatpush1.xpose.msra.mxu0 0.0
    %4008 = vmatprep.subr.mxu0 0.0
    %4009 = vmatpush1.xpose.msra.mxu0 0.0
    %4010 = vmatprep.subr.mxu0 0.0
    %4011 = vmatpush1.xpose.msra.mxu0 0.0
    %4012 = vmatprep.subr.mxu0 0.0
    %4013 = vmatpush1.xpose.msra.mxu0 %v3980
    %4014 = vmatprep.subr.mxu0 0.0
    %4015 = vmatpush2.xpose.msra.mxu0 0.0
    %4016 = vmatprep.subr.mxu0 0.0
    %4017 = vmatpush2.xpose.msra.mxu0 0.0
    %4018 = vmatprep.subr.mxu0 0.0
    %4019 = vmatpush2.xpose.msra.mxu0 0.0
    %4020 = vmatprep.subr.mxu0 0.0
    %4021 = vmatpush2.xpose.msra.mxu0 0.0
    %4022 = vmatprep.subr.mxu0 0.0
    %4023 = vmatpush2.xpose.msra.mxu0 0.0
    %4024 = vmatprep.subr.mxu0 0.0
    %4025 = vmatpush2.xpose.msra.mxu0 0.0
    %4026 = vmatprep.subr.mxu0 0.0
    %4027 = vmatpush2.xpose.msra.mxu0 0.0
    %4028 = vmatprep.subr.mxu0 0.0
    %4029 = vmatpush2.xpose.msra.mxu0 0.0
    %4030 = vmatprep.subr.mxu0 0.0
    %4031 = vmatpush2.xpose.msra.mxu0 0.0
    %4032 = vmatprep.subr.mxu0 0.0
    %4033 = vmatpush2.xpose.msra.mxu0 0.0
    %4034 = vmatprep.subr.mxu0 0.0
    %4035 = vmatpush2.xpose.msra.mxu0 0.0
    %4036 = vmatprep.subr.mxu0 0.0
    %4037 = vmatpush2.xpose.msra.mxu0 0.0
    %4038 = vmatprep.subr.mxu0 0.0
    %4039 = vmatpush2.xpose.msra.mxu0 0.0
    %4040 = vmatprep.subr.mxu0 0.0
    %4041 = vmatpush2.xpose.msra.mxu0 0.0
    %4042 = vmatprep.subr.mxu0 0.0
    %4043 = vmatpush2.xpose.msra.mxu0 0.0
    %4044 = vmatprep.subr.mxu0 0.0
    %4045 = vmatpush2.xpose.msra.mxu0 0.0
    %4046 = vmatprep.mubr.f32.mxu0 0.0
    %4047 = vmatmul.mubr.f32.gmra.mxu0 %v3977
    %v4048 = vpop.f32.mrf.mxu0
    %v4049 = vadd.f32 0.0, %v4048
    %v4050 = vpop.f32.mrf.mxu0
    %4051 = vdwg.mxu0
    %v4052 = vmul.f32 %v3821, 0.25
    %v4053 = vmul.f32 %v3897, 0.25
    %v4054 = vmul.f32 %v3973, 0.25
    %v4055 = vmul.f32 %v4049, 0.25
    %v4056 = vsel %vm2815, %v4052, -inf
    %4057 = vmax.xlane.f32.xlu0 %v4056
    %v4058 = vpop.xlane.xlu0 %4057
    %v4059 = vsel %vm2815, %v4053, -inf
    %4060 = vmax.xlane.f32.xlu0 %v4059
    %v4061 = vpop.xlane.xlu0 %4060
    %v4062 = vsel %vm2815, %v4054, -inf
    %4063 = vmax.xlane.f32.xlu0 %v4062
    %v4064 = vpop.xlane.xlu0 %4063
    %v4065 = vsel %vm2815, %v4055, -inf
    %4066 = vmax.xlane.f32.xlu0 %v4065
    %v4067 = vpop.xlane.xlu0 %4066
    %v4068 = vsub.f32 %v4052, %v4058
    %v4069 = vsub.f32 %v4053, %v4061
    %v4070 = vsub.f32 %v4054, %v4064
    %v4071 = vsub.f32 %v4055, %v4067
    %v4072 = vmul.f32 %v4068, 1.442695
    %v4073 = vpow.pop %v4072
    %v4074 = vmul.f32 %v4069, 1.442695
    %v4075 = vpow.pop %v4074
    %v4076 = vmul.f32 %v4070, 1.442695
    %v4077 = vpow.pop %v4076
    %v4078 = vmul.f32 %v4071, 1.442695
    %v4079 = vpow.pop %v4078
    %v4080 = vsel %vm2815, %v4073, 0.0
    %4081 = vadd.xlane.f32.xlu0 %v4080
    %v4082 = vpop.xlane.xlu0 %4081
    %v4083 = vsel %vm2815, %v4075, 0.0
    %4084 = vadd.xlane.f32.xlu0 %v4083
    %v4085 = vpop.xlane.xlu0 %4084
    %v4086 = vsel %vm2815, %v4077, 0.0
    %4087 = vadd.xlane.f32.xlu0 %v4086
    %v4088 = vpop.xlane.xlu0 %4087
    %v4089 = vsel %vm2815, %v4079, 0.0
    %4090 = vadd.xlane.f32.xlu0 %v4089
    %v4091 = vpop.xlane.xlu0 %4090
    %v4092 = vrcp.pop %v4082
    %v4093 = vmul.f32 %v4073, %v4092
    %v4094 = vrcp.pop %v4085
    %v4095 = vmul.f32 %v4075, %v4094
    %v4096 = vrcp.pop %v4088
    %v4097 = vmul.f32 %v4077, %v4096
    %v4098 = vrcp.pop %v4091
    %v4099 = vmul.f32 %v4079, %v4098
    %s4100 = scalar_lea.vmem [#allocation6], 32
    %4101 = vst.msk [vmem:[%s4100] sm:$0xff] %vm2815, %v4093
    %4102 = vst.msk [vmem:[%s4100 + $0x8] sm:$0xff] %vm2815, %v4095
    %4103 = vst.msk [vmem:[%s4100 + $0x10] sm:$0xff] %vm2815, %v4097
    %4104 = vst.msk [vmem:[%s4100 + $0x18] sm:$0xff] %vm2815, %v4099
    %v4106 = vsel %vm2815, %v4093, 0
    %4108 = vmatprep.subr.mxu0 0.0
    %4109 = vmatpush1.msra.mxu0 0.0
    %4110 = vmatprep.subr.mxu0 0.0
    %4111 = vmatpush1.msra.mxu0 0.0
    %4112 = vmatprep.subr.mxu0 0.0
    %4113 = vmatpush1.msra.mxu0 0.0
    %4114 = vmatprep.subr.mxu0 0.0
    %4115 = vmatpush1.msra.mxu0 0.0
    %4116 = vmatprep.subr.mxu0 0.0
    %4117 = vmatpush1.msra.mxu0 0.0
    %4118 = vmatprep.subr.mxu0 0.0
    %4119 = vmatpush1.msra.mxu0 0.0
    %4120 = vmatprep.subr.mxu0 0.0
    %4121 = vmatpush1.msra.mxu0 0.0
    %4122 = vmatprep.subr.mxu0 0.0
    %4123 = vmatpush1.msra.mxu0 0.0
    %4124 = vmatprep.subr.mxu0 0.0
    %4125 = vmatpush1.msra.mxu0 0.0
    %4126 = vmatprep.subr.mxu0 0.0
    %4127 = vmatpush1.msra.mxu0 0.0
    %4128 = vmatprep.subr.mxu0 0.0
    %4129 = vmatpush1.msra.mxu0 0.0
    %4130 = vmatprep.subr.mxu0 0.0
    %4131 = vmatpush1.msra.mxu0 0.0
    %4132 = vmatprep.subr.mxu0 0.0
    %4133 = vmatpush1.msra.mxu0 0.0
    %4134 = vmatprep.subr.mxu0 0.0
    %4135 = vmatpush1.msra.mxu0 0.0
    %4136 = vmatprep.subr.mxu0 0.0
    %4137 = vmatpush1.msra.mxu0 0.0
    %4138 = vmatprep.subr.mxu0 0.0
    %4139 = vmatpush1.msra.mxu0 %v3744
    %4140 = vmatprep.subr.mxu0 0.0
    %4141 = vmatpush2.msra.mxu0 0.0
    %4142 = vmatprep.subr.mxu0 0.0
    %4143 = vmatpush2.msra.mxu0 0.0
    %4144 = vmatprep.subr.mxu0 0.0
    %4145 = vmatpush2.msra.mxu0 0.0
    %4146 = vmatprep.subr.mxu0 0.0
    %4147 = vmatpush2.msra.mxu0 0.0
    %4148 = vmatprep.subr.mxu0 0.0
    %4149 = vmatpush2.msra.mxu0 0.0
    %4150 = vmatprep.subr.mxu0 0.0
    %4151 = vmatpush2.msra.mxu0 0.0
    %4152 = vmatprep.subr.mxu0 0.0
    %4153 = vmatpush2.msra.mxu0 0.0
    %4154 = vmatprep.subr.mxu0 0.0
    %4155 = vmatpush2.msra.mxu0 0.0
    %4156 = vmatprep.subr.mxu0 0.0
    %4157 = vmatpush2.msra.mxu0 0.0
    %4158 = vmatprep.subr.mxu0 0.0
    %4159 = vmatpush2.msra.mxu0 0.0
    %4160 = vmatprep.subr.mxu0 0.0
    %4161 = vmatpush2.msra.mxu0 0.0
    %4162 = vmatprep.subr.mxu0 0.0
    %4163 = vmatpush2.msra.mxu0 0.0
    %4164 = vmatprep.subr.mxu0 0.0
    %4165 = vmatpush2.msra.mxu0 0.0
    %4166 = vmatprep.subr.mxu0 0.0
    %4167 = vmatpush2.msra.mxu0 0.0
    %4168 = vmatprep.subr.mxu0 0.0
    %4169 = vmatpush2.msra.mxu0 0.0
    %4170 = vmatprep.subr.mxu0 0.0
    %4171 = vmatpush2.msra.mxu0 0.0
    %4172 = vmatprep.mubr.f32.mxu0 0.0
    %4173 = vmatmul.mubr.f32.gmra.mxu0 %v4106
    %v4174 = vpop.f32.mrf.mxu0
    %v4175 = vadd.f32 0.0, %v4174
    %v4176 = vpop.f32.mrf.mxu0
    %4177 = vdwg.mxu0
    %v4179 = vsel %vm2815, %v4095, 0
    %4181 = vmatprep.subr.mxu0 0.0
    %4182 = vmatpush1.msra.mxu0 0.0
    %4183 = vmatprep.subr.mxu0 0.0
    %4184 = vmatpush1.msra.mxu0 0.0
    %4185 = vmatprep.subr.mxu0 0.0
    %4186 = vmatpush1.msra.mxu0 0.0
    %4187 = vmatprep.subr.mxu0 0.0
    %4188 = vmatpush1.msra.mxu0 0.0
    %4189 = vmatprep.subr.mxu0 0.0
    %4190 = vmatpush1.msra.mxu0 0.0
    %4191 = vmatprep.subr.mxu0 0.0
    %4192 = vmatpush1.msra.mxu0 0.0
    %4193 = vmatprep.subr.mxu0 0.0
    %4194 = vmatpush1.msra.mxu0 0.0
    %4195 = vmatprep.subr.mxu0 0.0
    %4196 = vmatpush1.msra.mxu0 0.0
    %4197 = vmatprep.subr.mxu0 0.0
    %4198 = vmatpush1.msra.mxu0 0.0
    %4199 = vmatprep.subr.mxu0 0.0
    %4200 = vmatpush1.msra.mxu0 0.0
    %4201 = vmatprep.subr.mxu0 0.0
    %4202 = vmatpush1.msra.mxu0 0.0
    %4203 = vmatprep.subr.mxu0 0.0
    %4204 = vmatpush1.msra.mxu0 0.0
    %4205 = vmatprep.subr.mxu0 0.0
    %4206 = vmatpush1.msra.mxu0 0.0
    %4207 = vmatprep.subr.mxu0 0.0
    %4208 = vmatpush1.msra.mxu0 0.0
    %4209 = vmatprep.subr.mxu0 0.0
    %4210 = vmatpush1.msra.mxu0 0.0
    %4211 = vmatprep.subr.mxu0 0.0
    %4212 = vmatpush1.msra.mxu0 %v3745
    %4213 = vmatprep.subr.mxu0 0.0
    %4214 = vmatpush2.msra.mxu0 0.0
    %4215 = vmatprep.subr.mxu0 0.0
    %4216 = vmatpush2.msra.mxu0 0.0
    %4217 = vmatprep.subr.mxu0 0.0
    %4218 = vmatpush2.msra.mxu0 0.0
    %4219 = vmatprep.subr.mxu0 0.0
    %4220 = vmatpush2.msra.mxu0 0.0
    %4221 = vmatprep.subr.mxu0 0.0
    %4222 = vmatpush2.msra.mxu0 0.0
    %4223 = vmatprep.subr.mxu0 0.0
    %4224 = vmatpush2.msra.mxu0 0.0
    %4225 = vmatprep.subr.mxu0 0.0
    %4226 = vmatpush2.msra.mxu0 0.0
    %4227 = vmatprep.subr.mxu0 0.0
    %4228 = vmatpush2.msra.mxu0 0.0
    %4229 = vmatprep.subr.mxu0 0.0
    %4230 = vmatpush2.msra.mxu0 0.0
    %4231 = vmatprep.subr.mxu0 0.0
    %4232 = vmatpush2.msra.mxu0 0.0
    %4233 = vmatprep.subr.mxu0 0.0
    %4234 = vmatpush2.msra.mxu0 0.0
    %4235 = vmatprep.subr.mxu0 0.0
    %4236 = vmatpush2.msra.mxu0 0.0
    %4237 = vmatprep.subr.mxu0 0.0
    %4238 = vmatpush2.msra.mxu0 0.0
    %4239 = vmatprep.subr.mxu0 0.0
    %4240 = vmatpush2.msra.mxu0 0.0
    %4241 = vmatprep.subr.mxu0 0.0
    %4242 = vmatpush2.msra.mxu0 0.0
    %4243 = vmatprep.subr.mxu0 0.0
    %4244 = vmatpush2.msra.mxu0 0.0
    %4245 = vmatprep.mubr.f32.mxu0 0.0
    %4246 = vmatmul.mubr.f32.gmra.mxu0 %v4179
    %v4247 = vpop.f32.mrf.mxu0
    %v4248 = vadd.f32 0.0, %v4247
    %v4249 = vpop.f32.mrf.mxu0
    %4250 = vdwg.mxu0
    %v4252 = vsel %vm2815, %v4097, 0
    %4254 = vmatprep.subr.mxu0 0.0
    %4255 = vmatpush1.msra.mxu0 0.0
    %4256 = vmatprep.subr.mxu0 0.0
    %4257 = vmatpush1.msra.mxu0 0.0
    %4258 = vmatprep.subr.mxu0 0.0
    %4259 = vmatpush1.msra.mxu0 0.0
    %4260 = vmatprep.subr.mxu0 0.0
    %4261 = vmatpush1.msra.mxu0 0.0
    %4262 = vmatprep.subr.mxu0 0.0
    %4263 = vmatpush1.msra.mxu0 0.0
    %4264 = vmatprep.subr.mxu0 0.0
    %4265 = vmatpush1.msra.mxu0 0.0
    %4266 = vmatprep.subr.mxu0 0.0
    %4267 = vmatpush1.msra.mxu0 0.0
    %4268 = vmatprep.subr.mxu0 0.0
    %4269 = vmatpush1.msra.mxu0 0.0
    %4270 = vmatprep.subr.mxu0 0.0
    %4271 = vmatpush1.msra.mxu0 0.0
    %4272 = vmatprep.subr.mxu0 0.0
    %4273 = vmatpush1.msra.mxu0 0.0
    %4274 = vmatprep.subr.mxu0 0.0
    %4275 = vmatpush1.msra.mxu0 0.0
    %4276 = vmatprep.subr.mxu0 0.0
    %4277 = vmatpush1.msra.mxu0 0.0
    %4278 = vmatprep.subr.mxu0 0.0
    %4279 = vmatpush1.msra.mxu0 0.0
    %4280 = vmatprep.subr.mxu0 0.0
    %4281 = vmatpush1.msra.mxu0 0.0
    %4282 = vmatprep.subr.mxu0 0.0
    %4283 = vmatpush1.msra.mxu0 0.0
    %4284 = vmatprep.subr.mxu0 0.0
    %4285 = vmatpush1.msra.mxu0 %v3746
    %4286 = vmatprep.subr.mxu0 0.0
    %4287 = vmatpush2.msra.mxu0 0.0
    %4288 = vmatprep.subr.mxu0 0.0
    %4289 = vmatpush2.msra.mxu0 0.0
    %4290 = vmatprep.subr.mxu0 0.0
    %4291 = vmatpush2.msra.mxu0 0.0
    %4292 = vmatprep.subr.mxu0 0.0
    %4293 = vmatpush2.msra.mxu0 0.0
    %4294 = vmatprep.subr.mxu0 0.0
    %4295 = vmatpush2.msra.mxu0 0.0
    %4296 = vmatprep.subr.mxu0 0.0
    %4297 = vmatpush2.msra.mxu0 0.0
    %4298 = vmatprep.subr.mxu0 0.0
    %4299 = vmatpush2.msra.mxu0 0.0
    %4300 = vmatprep.subr.mxu0 0.0
    %4301 = vmatpush2.msra.mxu0 0.0
    %4302 = vmatprep.subr.mxu0 0.0
    %4303 = vmatpush2.msra.mxu0 0.0
    %4304 = vmatprep.subr.mxu0 0.0
    %4305 = vmatpush2.msra.mxu0 0.0
    %4306 = vmatprep.subr.mxu0 0.0
    %4307 = vmatpush2.msra.mxu0 0.0
    %4308 = vmatprep.subr.mxu0 0.0
    %4309 = vmatpush2.msra.mxu0 0.0
    %4310 = vmatprep.subr.mxu0 0.0
    %4311 = vmatpush2.msra.mxu0 0.0
    %4312 = vmatprep.subr.mxu0 0.0
    %4313 = vmatpush2.msra.mxu0 0.0
    %4314 = vmatprep.subr.mxu0 0.0
    %4315 = vmatpush2.msra.mxu0 0.0
    %4316 = vmatprep.subr.mxu0 0.0
    %4317 = vmatpush2.msra.mxu0 0.0
    %4318 = vmatprep.mubr.f32.mxu0 0.0
    %4319 = vmatmul.mubr.f32.gmra.mxu0 %v4252
    %v4320 = vpop.f32.mrf.mxu0
    %v4321 = vadd.f32 0.0, %v4320
    %v4322 = vpop.f32.mrf.mxu0
    %4323 = vdwg.mxu0
    %v4325 = vsel %vm2815, %v4099, 0
    %4327 = vmatprep.subr.mxu0 0.0
    %4328 = vmatpush1.msra.mxu0 0.0
    %4329 = vmatprep.subr.mxu0 0.0
    %4330 = vmatpush1.msra.mxu0 0.0
    %4331 = vmatprep.subr.mxu0 0.0
    %4332 = vmatpush1.msra.mxu0 0.0
    %4333 = vmatprep.subr.mxu0 0.0
    %4334 = vmatpush1.msra.mxu0 0.0
    %4335 = vmatprep.subr.mxu0 0.0
    %4336 = vmatpush1.msra.mxu0 0.0
    %4337 = vmatprep.subr.mxu0 0.0
    %4338 = vmatpush1.msra.mxu0 0.0
    %4339 = vmatprep.subr.mxu0 0.0
    %4340 = vmatpush1.msra.mxu0 0.0
    %4341 = vmatprep.subr.mxu0 0.0
    %4342 = vmatpush1.msra.mxu0 0.0
    %4343 = vmatprep.subr.mxu0 0.0
    %4344 = vmatpush1.msra.mxu0 0.0
    %4345 = vmatprep.subr.mxu0 0.0
    %4346 = vmatpush1.msra.mxu0 0.0
    %4347 = vmatprep.subr.mxu0 0.0
    %4348 = vmatpush1.msra.mxu0 0.0
    %4349 = vmatprep.subr.mxu0 0.0
    %4350 = vmatpush1.msra.mxu0 0.0
    %4351 = vmatprep.subr.mxu0 0.0
    %4352 = vmatpush1.msra.mxu0 0.0
    %4353 = vmatprep.subr.mxu0 0.0
    %4354 = vmatpush1.msra.mxu0 0.0
    %4355 = vmatprep.subr.mxu0 0.0
    %4356 = vmatpush1.msra.mxu0 0.0
    %4357 = vmatprep.subr.mxu0 0.0
    %4358 = vmatpush1.msra.mxu0 %v3747
    %4359 = vmatprep.subr.mxu0 0.0
    %4360 = vmatpush2.msra.mxu0 0.0
    %4361 = vmatprep.subr.mxu0 0.0
    %4362 = vmatpush2.msra.mxu0 0.0
    %4363 = vmatprep.subr.mxu0 0.0
    %4364 = vmatpush2.msra.mxu0 0.0
    %4365 = vmatprep.subr.mxu0 0.0
    %4366 = vmatpush2.msra.mxu0 0.0
    %4367 = vmatprep.subr.mxu0 0.0
    %4368 = vmatpush2.msra.mxu0 0.0
    %4369 = vmatprep.subr.mxu0 0.0
    %4370 = vmatpush2.msra.mxu0 0.0
    %4371 = vmatprep.subr.mxu0 0.0
    %4372 = vmatpush2.msra.mxu0 0.0
    %4373 = vmatprep.subr.mxu0 0.0
    %4374 = vmatpush2.msra.mxu0 0.0
    %4375 = vmatprep.subr.mxu0 0.0
    %4376 = vmatpush2.msra.mxu0 0.0
    %4377 = vmatprep.subr.mxu0 0.0
    %4378 = vmatpush2.msra.mxu0 0.0
    %4379 = vmatprep.subr.mxu0 0.0
    %4380 = vmatpush2.msra.mxu0 0.0
    %4381 = vmatprep.subr.mxu0 0.0
    %4382 = vmatpush2.msra.mxu0 0.0
    %4383 = vmatprep.subr.mxu0 0.0
    %4384 = vmatpush2.msra.mxu0 0.0
    %4385 = vmatprep.subr.mxu0 0.0
    %4386 = vmatpush2.msra.mxu0 0.0
    %4387 = vmatprep.subr.mxu0 0.0
    %4388 = vmatpush2.msra.mxu0 0.0
    %4389 = vmatprep.subr.mxu0 0.0
    %4390 = vmatpush2.msra.mxu0 0.0
    %4391 = vmatprep.mubr.f32.mxu0 0.0
    %4392 = vmatmul.mubr.f32.gmra.mxu0 %v4325
    %v4393 = vpop.f32.mrf.mxu0
    %v4394 = vadd.f32 0.0, %v4393
    %v4395 = vpop.f32.mrf.mxu0
    %4396 = vdwg.mxu0
    %v4397 = vcombine.low %v4175, %v4321
    %v4398 = vcombine.high %v4175, %v4321
    %v4400 = vunpack.c.l.s4 1983009808
    %v4401 = vunpack.c.0.s8 %v4400
    %v4402 = vlaneseq
    %v4403 = vshrl.u32 %v4402, 7
    %v4404 = vsub.s32 %v4401, %v4403
    %v4405 = vrot.slane %v4397, %v4404
    %v4407 = vunpack.c.l.s4 1983009808
    %v4408 = vunpack.c.0.s8 %v4407
    %v4409 = vlaneseq
    %v4410 = vshrl.u32 %v4409, 7
    %v4411 = vsub.s32 %v4408, %v4410
    %v4412 = vrot.slane %v4398, %v4411
    %v4413 = vcombine.low %v4248, %v4394
    %v4414 = vcombine.high %v4248, %v4394
    %v4416 = vunpack.c.l.s4 1983009808
    %v4417 = vunpack.c.0.s8 %v4416
    %v4418 = vlaneseq
    %v4419 = vshrl.u32 %v4418, 7
    %v4420 = vsub.s32 %v4417, %v4419
    %v4421 = vrot.slane %v4413, %v4420
    %v4423 = vunpack.c.l.s4 1983009808
    %v4424 = vunpack.c.0.s8 %v4423
    %v4425 = vlaneseq
    %v4426 = vshrl.u32 %v4425, 7
    %v4427 = vsub.s32 %v4424, %v4426
    %v4428 = vrot.slane %v4414, %v4427
    %v4429 = vcombine.low %v4405, %v4421
    %v4430 = vcombine.high %v4405, %v4421
    %v4432 = vunpack.c.l.s4 1934713408
    %v4433 = vunpack.c.0.s8 %v4432
    %v4434 = vlaneseq
    %v4435 = vshrl.u32 %v4434, 7
    %v4436 = vsub.s32 %v4433, %v4435
    %v4437 = vrot.slane %v4429, %v4436
    %v4439 = vunpack.c.l.s4 1934713408
    %v4440 = vunpack.c.0.s8 %v4439
    %v4441 = vlaneseq
    %v4442 = vshrl.u32 %v4441, 7
    %v4443 = vsub.s32 %v4440, %v4442
    %v4444 = vrot.slane %v4430, %v4443
    %v4445 = vcombine.low %v4412, %v4428
    %v4446 = vcombine.high %v4412, %v4428
    %v4448 = vunpack.c.l.s4 1934713408
    %v4449 = vunpack.c.0.s8 %v4448
    %v4450 = vlaneseq
    %v4451 = vshrl.u32 %v4450, 7
    %v4452 = vsub.s32 %v4449, %v4451
    %v4453 = vrot.slane %v4445, %v4452
    %v4455 = vunpack.c.l.s4 1934713408
    %v4456 = vunpack.c.0.s8 %v4455
    %v4457 = vlaneseq
    %v4458 = vshrl.u32 %v4457, 7
    %v4459 = vsub.s32 %v4456, %v4458
    %v4460 = vrot.slane %v4446, %v4459
    %v4461 = vcombine.high %v4437, 0.0
    %v4462 = vcombine.high %v4444, 0.0
    %v4463 = vcombine.high %v4453, 0.0
    %v4464 = vcombine.high %v4460, 0.0
    %v4465 = vcombine.low %v4437, %v4444
    %v4467 = vunpack.c.l.s4 1983009808
    %v4468 = vunpack.c.0.s8 %v4467
    %v4469 = vlaneseq
    %v4470 = vshrl.u32 %v4469, 7
    %v4471 = vsub.s32 %v4468, %v4470
    %v4472 = vrot.slane %v4465, %v4471
    %v4473 = vcombine.low %v4461, %v4462
    %v4475 = vunpack.c.l.s4 1983009808
    %v4476 = vunpack.c.0.s8 %v4475
    %v4477 = vlaneseq
    %v4478 = vshrl.u32 %v4477, 7
    %v4479 = vsub.s32 %v4476, %v4478
    %v4480 = vrot.slane %v4473, %v4479
    %v4481 = vcombine.low %v4453, %v4460
    %v4483 = vunpack.c.l.s4 1983009808
    %v4484 = vunpack.c.0.s8 %v4483
    %v4485 = vlaneseq
    %v4486 = vshrl.u32 %v4485, 7
    %v4487 = vsub.s32 %v4484, %v4486
    %v4488 = vrot.slane %v4481, %v4487
    %v4489 = vcombine.low %v4463, %v4464
    %v4491 = vunpack.c.l.s4 1983009808
    %v4492 = vunpack.c.0.s8 %v4491
    %v4493 = vlaneseq
    %v4494 = vshrl.u32 %v4493, 7
    %v4495 = vsub.s32 %v4492, %v4494
    %v4496 = vrot.slane %v4489, %v4495
    %v4497 = vcombine.low %v4472, %v4480
    %v4498 = vcombine.high %v4472, %v4480
    %v4500 = vunpack.c.l.s4 1934713408
    %v4501 = vunpack.c.0.s8 %v4500
    %v4502 = vlaneseq
    %v4503 = vshrl.u32 %v4502, 7
    %v4504 = vsub.s32 %v4501, %v4503
    %v4505 = vrot.slane %v4497, %v4504
    %v4507 = vunpack.c.l.s4 1934713408
    %v4508 = vunpack.c.0.s8 %v4507
    %v4509 = vlaneseq
    %v4510 = vshrl.u32 %v4509, 7
    %v4511 = vsub.s32 %v4508, %v4510
    %v4512 = vrot.slane %v4498, %v4511
    %v4513 = vcombine.low %v4488, %v4496
    %v4514 = vcombine.high %v4488, %v4496
    %v4516 = vunpack.c.l.s4 1934713408
    %v4517 = vunpack.c.0.s8 %v4516
    %v4518 = vlaneseq
    %v4519 = vshrl.u32 %v4518, 7
    %v4520 = vsub.s32 %v4517, %v4519
    %v4521 = vrot.slane %v4513, %v4520
    %v4523 = vunpack.c.l.s4 1934713408
    %v4524 = vunpack.c.0.s8 %v4523
    %v4525 = vlaneseq
    %v4526 = vshrl.u32 %v4525, 7
    %v4527 = vsub.s32 %v4524, %v4526
    %v4528 = vrot.slane %v4514, %v4527
    %v4529 = vcombine.low %v4505, %v4521
    %v4530 = vcombine.high %v4505, %v4521
    %v4531 = vcombine.low %v4512, %v4528
    %v4532 = vcombine.high %v4512, %v4528
    %4534 = vrot.lane.b32.xlu0 %v4530, 16
    %v4535 = vpop.permute.xlu0 %4534
    %4538 = vrot.lane.b32.xlu0 %v4531, 32
    %v4539 = vpop.permute.xlu0 %4538
    %4542 = vrot.lane.b32.xlu0 %v4532, 48
    %v4543 = vpop.permute.xlu0 %4542
    %v4545 = vsel %vm2506, %v4529, %v4535
    %v4546 = vsel %vm71, %v4545, %v4539
    %v4547 = vsel %vm3306, %v4546, %v4543
    %v4548 = vld [vmem:[%s7] sm:$0xff]
    %v4549 = vld [vmem:[%s7 + $0x8] sm:$0xff]
    %v4550 = vld [vmem:[%s7 + $0x10] sm:$0xff]
    %v4551 = vld [vmem:[%s7 + $0x18] sm:$0xff]
    %v4552 = vld [vmem:[%s7 + $0x20] sm:$0xff]
    %v4553 = vld [vmem:[%s7 + $0x28] sm:$0xff]
    %v4554 = vld [vmem:[%s7 + $0x30] sm:$0xff]
    %v4555 = vld [vmem:[%s7 + $0x38] sm:$0xff]
    %v4556 = vld [vmem:[%s8] sm:$0x1]
    %v4558 = vlaneseq
    %v4559 = vshrl.u32 %v4558, 7
    %v4560 = vsub.s32 0, %v4559
    %v4561 = vrot.slane %v4556, %v4560
    %v4564 = vsel %vm1982, %v3307, 0
    %v4567 = vsel %vm1982, %v4547, 0
    %4569 = vmatprep.subr.mxu0 0.0
    %4570 = vmatpush1.msra.mxu0 0.0
    %4571 = vmatprep.subr.mxu0 0.0
    %4572 = vmatpush1.msra.mxu0 0.0
    %4573 = vmatprep.subr.mxu0 0.0
    %4574 = vmatpush1.msra.mxu0 0.0
    %4575 = vmatprep.subr.mxu0 0.0
    %4576 = vmatpush1.msra.mxu0 0.0
    %4577 = vmatprep.subr.mxu0 0.0
    %4578 = vmatpush1.msra.mxu0 0.0
    %4579 = vmatprep.subr.mxu0 0.0
    %4580 = vmatpush1.msra.mxu0 0.0
    %4581 = vmatprep.subr.mxu0 0.0
    %4582 = vmatpush1.msra.mxu0 0.0
    %4583 = vmatprep.subr.mxu0 0.0
    %4584 = vmatpush1.msra.mxu0 0.0
    %4585 = vmatprep.subr.mxu0 0.0
    %4586 = vmatpush1.msra.mxu0 %v4555
    %4587 = vmatprep.subr.mxu0 0.0
    %4588 = vmatpush1.msra.mxu0 %v4554
    %4589 = vmatprep.subr.mxu0 0.0
    %4590 = vmatpush1.msra.mxu0 %v4553
    %4591 = vmatprep.subr.mxu0 0.0
    %4592 = vmatpush1.msra.mxu0 %v4552
    %4593 = vmatprep.subr.mxu0 0.0
    %4594 = vmatpush1.msra.mxu0 %v4551
    %4595 = vmatprep.subr.mxu0 0.0
    %4596 = vmatpush1.msra.mxu0 %v4550
    %4597 = vmatprep.subr.mxu0 0.0
    %4598 = vmatpush1.msra.mxu0 %v4549
    %4599 = vmatprep.subr.mxu0 0.0
    %4600 = vmatpush1.msra.mxu0 %v4548
    %4601 = vmatprep.subr.mxu0 0.0
    %4602 = vmatpush2.msra.mxu0 0.0
    %4603 = vmatprep.subr.mxu0 0.0
    %4604 = vmatpush2.msra.mxu0 0.0
    %4605 = vmatprep.subr.mxu0 0.0
    %4606 = vmatpush2.msra.mxu0 0.0
    %4607 = vmatprep.subr.mxu0 0.0
    %4608 = vmatpush2.msra.mxu0 0.0
    %4609 = vmatprep.subr.mxu0 0.0
    %4610 = vmatpush2.msra.mxu0 0.0
    %4611 = vmatprep.subr.mxu0 0.0
    %4612 = vmatpush2.msra.mxu0 0.0
    %4613 = vmatprep.subr.mxu0 0.0
    %4614 = vmatpush2.msra.mxu0 0.0
    %4615 = vmatprep.subr.mxu0 0.0
    %4616 = vmatpush2.msra.mxu0 0.0
    %4617 = vmatprep.subr.mxu0 0.0
    %4618 = vmatpush2.msra.mxu0 0.0
    %4619 = vmatprep.subr.mxu0 0.0
    %4620 = vmatpush2.msra.mxu0 0.0
    %4621 = vmatprep.subr.mxu0 0.0
    %4622 = vmatpush2.msra.mxu0 0.0
    %4623 = vmatprep.subr.mxu0 0.0
    %4624 = vmatpush2.msra.mxu0 0.0
    %4625 = vmatprep.subr.mxu0 0.0
    %4626 = vmatpush2.msra.mxu0 0.0
    %4627 = vmatprep.subr.mxu0 0.0
    %4628 = vmatpush2.msra.mxu0 0.0
    %4629 = vmatprep.subr.mxu0 0.0
    %4630 = vmatpush2.msra.mxu0 0.0
    %4631 = vmatprep.subr.mxu0 0.0
    %4632 = vmatpush2.msra.mxu0 0.0
    %4633 = vmatprep.mubr.f32.mxu0 0.0
    %4634 = vmatmul.mubr.f32.gmra.mxu0 %v4564
    %v4635 = vpop.f32.mrf.mxu0
    %v4636 = vadd.f32 %v4561, %v4635
    %v4637 = vpop.f32.mrf.mxu0
    %4638 = vmatprep.mubr.f32.mxu0 0.0
    %4639 = vmatmul.mubr.f32.gmra.mxu0 %v4567
    %v4640 = vpop.f32.mrf.mxu0
    %v4641 = vadd.f32 %v4561, %v4640
    %v4642 = vpop.f32.mrf.mxu0
    %4643 = vdwg.mxu0
    %v4644 = vsel %vm1982, %v1903, 0.0
    %4645 = vadd.xlane.f32.xlu0 %v4644
    %v4646 = vpop.xlane.xlu0 %4645
    %v4647 = vsel %vm1982, %v1953, 0.0
    %4648 = vadd.xlane.f32.xlu0 %v4647
    %v4649 = vpop.xlane.xlu0 %4648
    %v4650 = vsel %vm1982, %v4636, 0.0
    %4651 = vadd.xlane.f32.xlu0 %v4650
    %v4652 = vpop.xlane.xlu0 %4651
    %v4653 = vsel %vm1982, %v4641, 0.0
    %4654 = vadd.xlane.f32.xlu0 %v4653
    %v4655 = vpop.xlane.xlu0 %4654
    %v4656 = vrcp.pop 64.0
    %v4657 = vmul.f32 %v4646, %v4656
    %v4658 = vmul.f32 %v4649, %v4656
    %v4659 = vmul.f32 %v4652, %v4656
    %v4660 = vmul.f32 %v4655, %v4656
    %v4661 = vsub.f32 %v1903, %v4657
    %v4662 = vsub.f32 %v1953, %v4658
    %v4663 = vsub.f32 %v4636, %v4659
    %v4664 = vsub.f32 %v4641, %v4660
    %v4665 = vmul.f32 %v4661, %v4661
    %v4666 = vmul.f32 %v4662, %v4662
    %v4667 = vmul.f32 %v4663, %v4663
    %v4668 = vmul.f32 %v4664, %v4664
    %v4669 = vsel %vm1982, %v4665, 0.0
    %4670 = vadd.xlane.f32.xlu0 %v4669
    %v4671 = vpop.xlane.xlu0 %4670
    %v4672 = vsel %vm1982, %v4666, 0.0
    %4673 = vadd.xlane.f32.xlu0 %v4672
    %v4674 = vpop.xlane.xlu0 %4673
    %v4675 = vsel %vm1982, %v4667, 0.0
    %4676 = vadd.xlane.f32.xlu0 %v4675
    %v4677 = vpop.xlane.xlu0 %4676
    %v4678 = vsel %vm1982, %v4668, 0.0
    %4679 = vadd.xlane.f32.xlu0 %v4678
    %v4680 = vpop.xlane.xlu0 %4679
    %v4681 = vmul.f32 %v4671, %v4656
    %v4682 = vmul.f32 %v4674, %v4656
    %v4683 = vmul.f32 %v4677, %v4656
    %v4684 = vmul.f32 %v4680, %v4656
    %v4685 = vadd.f32 %v4681, 1e-05
    %v4686 = vadd.f32 %v4682, 1e-05
    %v4687 = vadd.f32 %v4683, 1e-05
    %v4688 = vadd.f32 %v4684, 1e-05
    %v4689 = vrsqrt.pop %v4685
    %v4690 = vrsqrt.pop %v4686
    %v4691 = vrsqrt.pop %v4687
    %v4692 = vrsqrt.pop %v4688
    %v4693 = vmul.f32 %v4661, %v4689
    %v4694 = vmul.f32 %v4662, %v4690
    %v4695 = vmul.f32 %v4663, %v4691
    %v4696 = vmul.f32 %v4664, %v4692
    %v4697 = vld [vmem:[%s9] sm:$0x1]
    %v4699 = vlaneseq
    %v4700 = vshrl.u32 %v4699, 7
    %v4701 = vsub.s32 0, %v4700
    %v4702 = vrot.slane %v4697, %v4701
    %v4704 = vmul.f32 %v4693, %v4702
    %v4705 = vmul.f32 %v4694, %v4702
    %v4706 = vmul.f32 %v4695, %v4702
    %v4707 = vmul.f32 %v4696, %v4702
    %v4708 = vld [vmem:[%s10] sm:$0x1]
    %v4710 = vlaneseq
    %v4711 = vshrl.u32 %v4710, 7
    %v4712 = vsub.s32 0, %v4711
    %v4713 = vrot.slane %v4708, %v4712
    %v4715 = vadd.f32 %v4704, %v4713
    %v4716 = vadd.f32 %v4705, %v4713
    %v4717 = vadd.f32 %v4706, %v4713
    %v4718 = vadd.f32 %v4707, %v4713
    %v4719 = vld [vmem:[%s11] sm:$0xff]
    %v4720 = vld [vmem:[%s11 + $0x8] sm:$0xff]
    %v4721 = vld [vmem:[%s11 + $0x10] sm:$0xff]
    %v4722 = vld [vmem:[%s11 + $0x18] sm:$0xff]
    %v4723 = vld [vmem:[%s11 + $0x20] sm:$0xff]
    %v4724 = vld [vmem:[%s11 + $0x28] sm:$0xff]
    %v4725 = vld [vmem:[%s11 + $0x30] sm:$0xff]
    %v4726 = vld [vmem:[%s11 + $0x38] sm:$0xff]
    %v4727 = vld [vmem:[%s12] sm:$0x1]
    %v4729 = vlaneseq
    %v4730 = vshrl.u32 %v4729, 7
    %v4731 = vsub.s32 0, %v4730
    %v4732 = vrot.slane %v4727, %v4731
    %v4735 = vsel %vm1982, %v4715, 0
    %v4738 = vsel %vm1982, %v4716, 0
    %4740 = vmatprep.subr.mxu0 0.0
    %4741 = vmatpush1.msra.mxu0 0.0
    %4742 = vmatprep.subr.mxu0 0.0
    %4743 = vmatpush1.msra.mxu0 0.0
    %4744 = vmatprep.subr.mxu0 0.0
    %4745 = vmatpush1.msra.mxu0 0.0
    %4746 = vmatprep.subr.mxu0 0.0
    %4747 = vmatpush1.msra.mxu0 0.0
    %4748 = vmatprep.subr.mxu0 0.0
    %4749 = vmatpush1.msra.mxu0 0.0
    %4750 = vmatprep.subr.mxu0 0.0
    %4751 = vmatpush1.msra.mxu0 0.0
    %4752 = vmatprep.subr.mxu0 0.0
    %4753 = vmatpush1.msra.mxu0 0.0
    %4754 = vmatprep.subr.mxu0 0.0
    %4755 = vmatpush1.msra.mxu0 0.0
    %4756 = vmatprep.subr.mxu0 0.0
    %4757 = vmatpush1.msra.mxu0 %v4726
    %4758 = vmatprep.subr.mxu0 0.0
    %4759 = vmatpush1.msra.mxu0 %v4725
    %4760 = vmatprep.subr.mxu0 0.0
    %4761 = vmatpush1.msra.mxu0 %v4724
    %4762 = vmatprep.subr.mxu0 0.0
    %4763 = vmatpush1.msra.mxu0 %v4723
    %4764 = vmatprep.subr.mxu0 0.0
    %4765 = vmatpush1.msra.mxu0 %v4722
    %4766 = vmatprep.subr.mxu0 0.0
    %4767 = vmatpush1.msra.mxu0 %v4721
    %4768 = vmatprep.subr.mxu0 0.0
    %4769 = vmatpush1.msra.mxu0 %v4720
    %4770 = vmatprep.subr.mxu0 0.0
    %4771 = vmatpush1.msra.mxu0 %v4719
    %4772 = vmatprep.subr.mxu0 0.0
    %4773 = vmatpush2.msra.mxu0 0.0
    %4774 = vmatprep.subr.mxu0 0.0
    %4775 = vmatpush2.msra.mxu0 0.0
    %4776 = vmatprep.subr.mxu0 0.0
    %4777 = vmatpush2.msra.mxu0 0.0
    %4778 = vmatprep.subr.mxu0 0.0
    %4779 = vmatpush2.msra.mxu0 0.0
    %4780 = vmatprep.subr.mxu0 0.0
    %4781 = vmatpush2.msra.mxu0 0.0
    %4782 = vmatprep.subr.mxu0 0.0
    %4783 = vmatpush2.msra.mxu0 0.0
    %4784 = vmatprep.subr.mxu0 0.0
    %4785 = vmatpush2.msra.mxu0 0.0
    %4786 = vmatprep.subr.mxu0 0.0
    %4787 = vmatpush2.msra.mxu0 0.0
    %4788 = vmatprep.subr.mxu0 0.0
    %4789 = vmatpush2.msra.mxu0 0.0
    %4790 = vmatprep.subr.mxu0 0.0
    %4791 = vmatpush2.msra.mxu0 0.0
    %4792 = vmatprep.subr.mxu0 0.0
    %4793 = vmatpush2.msra.mxu0 0.0
    %4794 = vmatprep.subr.mxu0 0.0
    %4795 = vmatpush2.msra.mxu0 0.0
    %4796 = vmatprep.subr.mxu0 0.0
    %4797 = vmatpush2.msra.mxu0 0.0
    %4798 = vmatprep.subr.mxu0 0.0
    %4799 = vmatpush2.msra.mxu0 0.0
    %4800 = vmatprep.subr.mxu0 0.0
    %4801 = vmatpush2.msra.mxu0 0.0
    %4802 = vmatprep.subr.mxu0 0.0
    %4803 = vmatpush2.msra.mxu0 0.0
    %4804 = vmatprep.mubr.f32.mxu0 0.0
    %4805 = vmatmul.mubr.f32.gmra.mxu0 %v4735
    %v4806 = vpop.f32.mrf.mxu0
    %v4807 = vadd.f32 %v4732, %v4806
    %v4808 = vpop.f32.mrf.mxu0
    %4809 = vmatprep.mubr.f32.mxu0 0.0
    %4810 = vmatmul.mubr.f32.gmra.mxu0 %v4738
    %v4811 = vpop.f32.mrf.mxu0
    %v4812 = vadd.f32 %v4732, %v4811
    %v4813 = vpop.f32.mrf.mxu0
    %4814 = vdwg.mxu0
    %4815 = vst.msk [vmem:[#allocation2] sm:$0xff] %vm2815, %v4807
    %4816 = vst.msk [vmem:[#allocation4] sm:$0xff] %vm1982, %v4717
    %s4817 = scalar_lea.vmem [#allocation2], 8
    %4818 = vst.msk [vmem:[%s4817] sm:$0xff] %vm2815, %v4812
    %s4819 = scalar_lea.vmem [#allocation4], 8
    %4820 = vst.msk [vmem:[%s4819] sm:$0xff] %vm1982, %v4718
    // Predicated region
    $region54: #{bilstm_crf_attn_forward.1} parent=1 // pred_check
      _
    $region55: #{bilstm_crf_attn_forward.1} parent=1 // pred_check_branch
      %4822 = sbr.rel (0) target = $region57
    $region56: #{bilstm_crf_attn_forward.1} parent=1 // pred_region
      %s4824 = ssub.s32 256, 256
      %4825 = vsyncadd [#allocation3], %s4824
      %s4826 = sshll.u32 [#allocation2], 4
      %s4827 = int_to_ptr.vmem [resolvable:$true] %s4826
      %4832 = dma.vmem_to_hbm [thread:$0]  %s4827, 256, %s13, [#allocation3], 128, 128, 8
    $region57: #{bilstm_crf_attn_forward.1} parent=1 // pred_fallthru
      _
    // Predicated region
    $region58: #{bilstm_crf_attn_forward.1} parent=1 // pred_check
      _
    $region59: #{bilstm_crf_attn_forward.1} parent=1 // pred_check_branch
      %4834 = sbr.rel (0) target = $region61
    $region60: #{bilstm_crf_attn_forward.1} parent=1 // pred_region
      %s4836 = ssub.s32 256, 256
      %4837 = vsyncadd [#allocation5], %s4836
      %s4838 = sshll.u32 [#allocation4], 4
      %s4839 = int_to_ptr.vmem [resolvable:$true] %s4838
      %4844 = dma.vmem_to_hbm [thread:$0]  %s4839, 256, %s14, [#allocation5], 128, 128, 8
    $region61: #{bilstm_crf_attn_forward.1} parent=1 // pred_fallthru
      _
    // Predicated region
    $region62: #{bilstm_crf_attn_forward.1} parent=1 // pred_check
      _
    $region63: #{bilstm_crf_attn_forward.1} parent=1 // pred_check_branch
      %4846 = sbr.rel (0) target = $region65
    $region64: #{bilstm_crf_attn_forward.1} parent=1 // pred_region
      %s4848 = ssub.s32 1024, 1024
      %4849 = vsyncadd [#allocation5], %s4848
      %s4850 = sshll.u32 [#allocation6], 4
      %s4851 = int_to_ptr.vmem [resolvable:$true] %s4850
      %4856 = dma.vmem_to_hbm [thread:$0]  %s4851, 1024, %s15, [#allocation5], 128, 128, 8
    $region65: #{bilstm_crf_attn_forward.1} parent=1 // pred_fallthru
      _
    // Predicated region
    $region66: #{bilstm_crf_attn_forward.1} parent=1 // pred_check
      _
    $region67: #{bilstm_crf_attn_forward.1} parent=1 // pred_check_branch
      %4858 = sbr.rel (0) target = $region69
    $region68: #{bilstm_crf_attn_forward.1} parent=1 // pred_region
      %4859 = dma.done [#allocation3], 256
    $region69: #{bilstm_crf_attn_forward.1} parent=1 // pred_fallthru
      _
    // Predicated region
    $region70: #{bilstm_crf_attn_forward.1} parent=1 // pred_check
      _
    $region71: #{bilstm_crf_attn_forward.1} parent=1 // pred_check_branch
      %4861 = sbr.rel (0) target = $region73
    $region72: #{bilstm_crf_attn_forward.1} parent=1 // pred_region
      %4862 = dma.done [#allocation5], 256
    $region73: #{bilstm_crf_attn_forward.1} parent=1 // pred_fallthru
      _
    // Predicated region
    $region74: #{bilstm_crf_attn_forward.1} parent=1 // pred_check
      _
    $region75: #{bilstm_crf_attn_forward.1} parent=1 // pred_check_branch
      %4864 = sbr.rel (0) target = $region77
    $region76: #{bilstm_crf_attn_forward.1} parent=1 // pred_region
      %4865 = dma.done [#allocation5], 1024
    $region77: #{bilstm_crf_attn_forward.1} parent=1 // pred_fallthru
      _
    %4866 = vsyncpa [#allocation3], 1
    %4867 = vsyncpa [#allocation5], 1

</llo_original>
